<compile_context>
chip_gen: v6e
topology: v6e:2x2x1
jax: 0.10.0
libtpu: 0.0.40
codegen_flags: <defaults>
</compile_context>

<pallas_src>
import jax
import jax.numpy as jnp
from jax import lax
from jax.experimental import pallas as pl
from jax.experimental.pallas import tpu as pltpu


# ---------------------------------------------------------------------------
# Pallas kernel
# ---------------------------------------------------------------------------
def dqn_kernel(x_ref, bal_ref, shr_ref,
               wih0_ref, b0_ref, wfused_ref, whh1_ref, b1_ref,
               w1h_ref, w1b_ref, w1s_ref, bfc1_ref,
               w2_ref, b2_ref,
               q_ref, xproj_ref):
    B = bal_ref.shape[0]
    H = whh1_ref.shape[0]                    # LSTM hidden size (64)
    T = x_ref.shape[0] // B                  # x is time-major, rows = t*B + b

    # Hoisted layer-0 input projection: one (T*B, D) @ (D, 4H) matmul with the
    # bias folded in.  Removes T tiny MXU pushes + T bias adds from the serial
    # critical path of the recurrence.
    xproj_ref[...] = (
        jnp.dot(x_ref[...], wih0_ref[...], preferred_element_type=jnp.float32)
        + b0_ref[...])

    wfused = wfused_ref[...]                 # (H, 8H) = [W_hh0 | W_ih1]
    whh1 = whh1_ref[...]                     # (H, 4H)
    b1 = b1_ref[...]                         # (1, 4H)

    def gates_to_hc(gates, c):
        # Gate column order is (i, f, o, g): the three sigmoid gates are
        # contiguous lanes [0:3H], tanh gate is [3H:4H] -> 2 transcendental
        # launches per cell instead of 4.
        sig = jax.nn.sigmoid(gates[:, 0:3 * H])
        g = jnp.tanh(gates[:, 3 * H:4 * H])
        i = sig[:, 0:H]
        f = sig[:, H:2 * H]
        o = sig[:, 2 * H:3 * H]
        c_new = f * c + i * g
        h_new = o * jnp.tanh(c_new)
        return h_new, c_new

    def step(t, carry):
        # hh0 carries h0_{t-1} @ W_hh0 (computed by the fused matmul of the
        # previous step); zero at t=0 since the initial hidden state is zero.
        hh0, h1, c0, c1 = carry
        gates0 = xproj_ref[pl.ds(t * B, B), :] + hh0
        h0, c0 = gates_to_hc(gates0, c0)

        # Single fused matmul on h0_t: left half feeds layer-0's recurrence at
        # step t+1, right half is layer-1's input-gate contribution at step t.
        big = jnp.dot(h0, wfused, preferred_element_type=jnp.float32)   # (B, 8H)
        hh0_next = big[:, 0:4 * H]
        gates1 = (big[:, 4 * H:8 * H]
                  + jnp.dot(h1, whh1, preferred_element_type=jnp.float32)
                  + b1)
        h1, c1 = gates_to_hc(gates1, c1)
        return (hh0_next, h1, c0, c1)

    zH = jnp.zeros((B, H), jnp.float32)
    init = (jnp.zeros((B, 4 * H), jnp.float32), zH, zH, zH)
    _, h1, _, _ = lax.fori_loop(0, T, step, init, unroll=True)

    # fc1 on concat([h_last, balance, num_shares]) expressed as a split
    # matmul + two broadcast multiplies (no (B, 66) concat needed in-kernel).
    z = (jnp.dot(h1, w1h_ref[...], preferred_element_type=jnp.float32)
         + bal_ref[...] * w1b_ref[...]
         + shr_ref[...] * w1s_ref[...]
         + bfc1_ref[...])
    z = jnp.maximum(z, 0.0)

    # fc2 head (plain DQN per the spec: no dueling combine).
    q_ref[...] = (jnp.dot(z, w2_ref[...], preferred_element_type=jnp.float32)
                  + b2_ref[...])


# ---------------------------------------------------------------------------
# Wrapper
# ---------------------------------------------------------------------------
def dqn_forward(params, x_price, x_balance, x_num_shares):
    """x_price: (B, T, D) batch-first (PyTorch convention);
       x_balance / x_num_shares: (B,) or (B, 1)."""
    B, T, D = x_price.shape
    H = params["whh1"].shape[0]
    F = params["bfc1"].shape[1]
    O = params["b2"].shape[1]

    # Time-major rows: row t*B + b == x_price[b, t, :].
    x2d = (jnp.transpose(x_price, (1, 0, 2))
           .reshape(T * B, D).astype(jnp.float32))
    bal = jnp.reshape(x_balance, (-1, 1)).astype(jnp.float32)     # (B, 1)
    shr = jnp.reshape(x_num_shares, (-1, 1)).astype(jnp.float32)  # (B, 1)

    inputs = (x2d, bal, shr,
              params["wih0"], params["b0"], params["wfused"],
              params["whh1"], params["b1"],
              params["w1h"], params["w1b"], params["w1s"], params["bfc1"],
              params["w2"], params["b2"])

    flops = 2 * (T * B * D * 4 * H          # hoisted input projection
                 + T * B * H * 12 * H       # per-step fused + whh1 matmuls
                 + B * H * F + B * F * O)   # fc1 + fc2
    transcendentals = T * 2 * 5 * B * H     # 2 cells x (3H sig + 2H tanh)
    bytes_accessed = 4 * (sum(int(a.size) for a in inputs) + B * O)

    vmem = pl.BlockSpec(memory_space=pltpu.MemorySpace.VMEM)
    # TODO(synk): for large-batch use on v7x, add a leading batch grid with
    # dimension_semantics=("parallel",) so both TensorCores split the batch;
    # at B=2 a single gridless program is the right shape.
    return pl.pallas_call(
        dqn_kernel,
        out_shape=jax.ShapeDtypeStruct((B, O), jnp.float32),
        in_specs=[vmem] * len(inputs),
        out_specs=vmem,
        scratch_shapes=[pltpu.VMEM((T * B, 4 * H), jnp.float32)],
        cost_estimate=pl.CostEstimate(flops=flops,
                                      transcendentals=transcendentals,
                                      bytes_accessed=bytes_accessed),
    )(*inputs)


# ---------------------------------------------------------------------------
# Synthetic parameters in PyTorch layout (gate order i, f, g, o)
# ---------------------------------------------------------------------------
def make_torch_params(number_of_data, hidden_lstm=64, hidden_fc=32, out=3, seed=0):
    key = jax.random.PRNGKey(seed)
    ks = jax.random.split(key, 12)
    H = hidden_lstm
    kl = 1.0 / (H ** 0.5)
    u = lambda k, shape, b: jax.random.uniform(k, shape, jnp.float32, -b, b)

    p = {}
    p["weight_ih_l0"] = u(ks[0], (4 * H, number_of_data), kl)
    p["weight_hh_l0"] = u(ks[1], (4 * H, H), kl)
    p["bias_ih_l0"] = u(ks[2], (4 * H,), kl)
    p["bias_hh_l0"] = u(ks[3], (4 * H,), kl)
    p["weight_ih_l1"] = u(ks[4], (4 * H, H), kl)
    p["weight_hh_l1"] = u(ks[5], (4 * H, H), kl)
    p["bias_ih_l1"] = u(ks[6], (4 * H,), kl)
    p["bias_hh_l1"] = u(ks[7], (4 * H,), kl)

    in1 = H + 2
    k1 = 1.0 / (in1 ** 0.5)
    p["fc1_w"] = u(ks[8], (hidden_fc, in1), k1)
    p["fc1_b"] = u(ks[9], (hidden_fc,), k1)
    k2 = 1.0 / (hidden_fc ** 0.5)
    p["fc2_w"] = u(ks[10], (out, hidden_fc), k2)
    p["fc2_b"] = u(ks[11], (out,), k2)
    return p


# ---------------------------------------------------------------------------
# Pack PyTorch-layout params into the kernel layout
#   - transpose weights so features are on the lane axis
#   - reorder gate columns (i, f, g, o) -> (i, f, o, g)
#   - fold the two LSTM biases, fuse [W_hh0 | W_ih1], split fc1 columns
# ---------------------------------------------------------------------------
def pack_params(tp):
    H = tp["weight_hh_l0"].shape[1]
    perm = jnp.concatenate([jnp.arange(0, 2 * H),        # i, f
                            jnp.arange(3 * H, 4 * H),    # o
                            jnp.arange(2 * H, 3 * H)])   # g

    wih0 = tp["weight_ih_l0"][perm].T                            # (D, 4H)
    b0 = (tp["bias_ih_l0"] + tp["bias_hh_l0"])[perm].reshape(1, 4 * H)
    whh0 = tp["weight_hh_l0"][perm].T                            # (H, 4H)
    wih1 = tp["weight_ih_l1"][perm].T                            # (H, 4H)
    wfused = jnp.concatenate([whh0, wih1], axis=1)               # (H, 8H)
    whh1 = tp["weight_hh_l1"][perm].T                            # (H, 4H)
    b1 = (tp["bias_ih_l1"] + tp["bias_hh_l1"])[perm].reshape(1, 4 * H)

    w1 = tp["fc1_w"].T                                           # (H+2, 32)
    return {
        "wih0": wih0, "b0": b0, "wfused": wfused, "whh1": whh1, "b1": b1,
        "w1h": w1[:H], "w1b": w1[H:H + 1], "w1s": w1[H + 1:H + 2],
        "bfc1": tp["fc1_b"].reshape(1, -1),
        "w2": tp["fc2_w"].T, "b2": tp["fc2_b"].reshape(1, -1),
    }


# ---------------------------------------------------------------------------
# Pure-JAX reference in PyTorch semantics (correctness check only)
# ---------------------------------------------------------------------------
def dqn_reference(tp, x_price, x_balance, x_num_shares):
    B, T, D = x_price.shape
    H = tp["weight_hh_l0"].shape[1]

    def cell(x_t, h, c, wih, whh, bih, bhh):
        gates = x_t @ wih.T + h @ whh.T + bih + bhh
        i = jax.nn.sigmoid(gates[:, 0:H])
        f = jax.nn.sigmoid(gates[:, H:2 * H])
        g = jnp.tanh(gates[:, 2 * H:3 * H])
        o = jax.nn.sigmoid(gates[:, 3 * H:4 * H])
        c = f * c + i * g
        return o * jnp.tanh(c), c

    h0 = c0 = h1 = c1 = jnp.zeros((B, H), jnp.float32)
    for t in range(T):
        x_t = x_price[:, t, :]
        h0, c0 = cell(x_t, h0, c0, tp["weight_ih_l0"], tp["weight_hh_l0"],
                      tp["bias_ih_l0"], tp["bias_hh_l0"])
        h1, c1 = cell(h0, h1, c1, tp["weight_ih_l1"], tp["weight_hh_l1"],
                      tp["bias_ih_l1"], tp["bias_hh_l1"])

    feat = jnp.concatenate([h1,
                            jnp.reshape(x_balance, (-1, 1)),
                            jnp.reshape(x_num_shares, (-1, 1))], axis=1)
    z = jnp.maximum(feat @ tp["fc1_w"].T + tp["fc1_b"], 0.0)
    return z @ tp["fc2_w"].T + tp["fc2_b"]


if __name__ == "__main__":
    B, T, D = 2, 8, 4                      # batch, sequence length, number_of_data
    key = jax.random.PRNGKey(0)
    k_x, k_b, k_s = jax.random.split(key, 3)
    x_price = jax.random.normal(k_x, (B, T, D), jnp.float32)
    x_balance = jax.random.normal(k_b, (B,), jnp.float32)
    x_num_shares = jax.random.normal(k_s, (B,), jnp.float32)

    torch_params = make_torch_params(number_of_data=D, seed=0)
    params = pack_params(torch_params)

    q = dqn_forward(params, x_price, x_balance, x_num_shares)
    jax.block_until_ready(q)

    q_ref = dqn_reference(torch_params, x_price, x_balance, x_num_shares)
    assert q.shape == (B, 3)
    assert jnp.allclose(q, q_ref, atol=1e-4, rtol=1e-4), (q, q_ref)
    print("KERNEL_OK")
</pallas_src>

<mosaic_0001>
module attributes {stable_mosaic.version = 11 : i64} {
  func.func @dqn_kernel(%arg0: memref<16x4xf32, #tpu.memory_space<vmem>>, %arg1: memref<2x1xf32, #tpu.memory_space<vmem>>, %arg2: memref<2x1xf32, #tpu.memory_space<vmem>>, %arg3: memref<4x256xf32, #tpu.memory_space<vmem>>, %arg4: memref<1x256xf32, #tpu.memory_space<vmem>>, %arg5: memref<64x512xf32, #tpu.memory_space<vmem>>, %arg6: memref<64x256xf32, #tpu.memory_space<vmem>>, %arg7: memref<1x256xf32, #tpu.memory_space<vmem>>, %arg8: memref<64x32xf32, #tpu.memory_space<vmem>>, %arg9: memref<1x32xf32, #tpu.memory_space<vmem>>, %arg10: memref<1x32xf32, #tpu.memory_space<vmem>>, %arg11: memref<1x32xf32, #tpu.memory_space<vmem>>, %arg12: memref<32x3xf32, #tpu.memory_space<vmem>>, %arg13: memref<1x3xf32, #tpu.memory_space<vmem>>, %arg14: memref<2x3xf32, #tpu.memory_space<vmem>>, %arg15: memref<16x256xf32, #tpu.memory_space<vmem>>) attributes {dimension_semantics = [], scalar_prefetch = 0 : i64, scratch_operands = 1 : i64, tpu.core_type = #tpu.core_type<tc>} {
    %c0 = arith.constant 0 : index
    %c0_0 = arith.constant 0 : index
    %0 = vector.load %arg0[%c0, %c0_0] : memref<16x4xf32, #tpu.memory_space<vmem>>, vector<16x4xf32>
    %c0_1 = arith.constant 0 : index
    %c0_2 = arith.constant 0 : index
    %1 = vector.load %arg3[%c0_1, %c0_2] : memref<4x256xf32, #tpu.memory_space<vmem>>, vector<4x256xf32>
    %cst = arith.constant dense<0.000000e+00> : vector<16x256xf32>
    %2 = tpu.matmul %0, %1, %cst {dimension_numbers = #tpu.dot_dimension_numbers<[1], [0], [0], [1], [0, 0, 1, 1], [], []>} : vector<16x4xf32>, vector<4x256xf32>, vector<16x256xf32> -> vector<16x256xf32>
    %c0_3 = arith.constant 0 : index
    %c0_4 = arith.constant 0 : index
    %3 = vector.load %arg4[%c0_3, %c0_4] : memref<1x256xf32, #tpu.memory_space<vmem>>, vector<1x256xf32>
    %4 = vector.broadcast %3 : vector<1x256xf32> to vector<16x256xf32>
    %5 = arith.addf %2, %4 : vector<16x256xf32>
    %c0_5 = arith.constant 0 : index
    %c0_6 = arith.constant 0 : index
    %6 = vector.load %arg15[%c0_5, %c0_6] : memref<16x256xf32, #tpu.memory_space<vmem>>, vector<16x256xf32>
    tpu.vector_store %arg15[%c0_5, %c0_6], %5 {strides = array<i32>} : memref<16x256xf32, #tpu.memory_space<vmem>>, vector<16x256xf32>,
    %c0_7 = arith.constant 0 : index
    %c0_8 = arith.constant 0 : index
    %7 = vector.load %arg5[%c0_7, %c0_8] : memref<64x512xf32, #tpu.memory_space<vmem>>, vector<64x512xf32>
    %c0_9 = arith.constant 0 : index
    %c0_10 = arith.constant 0 : index
    %8 = vector.load %arg6[%c0_9, %c0_10] : memref<64x256xf32, #tpu.memory_space<vmem>>, vector<64x256xf32>
    %c0_11 = arith.constant 0 : index
    %c0_12 = arith.constant 0 : index
    %9 = vector.load %arg7[%c0_11, %c0_12] : memref<1x256xf32, #tpu.memory_space<vmem>>, vector<1x256xf32>
    %cst_13 = arith.constant 0.000000e+00 : f32
    %10 = vector.broadcast %cst_13 : f32 to vector<2x64xf32>
    %cst_14 = arith.constant 0.000000e+00 : f32
    %11 = vector.broadcast %cst_14 : f32 to vector<2x256xf32>
    %c0_i32 = arith.constant 0 : i32
    %c2_i32 = arith.constant 2 : i32
    %12 = arith.muli %c0_i32, %c2_i32 : i32
    %13 = arith.index_cast %12 : i32 to index
    %c0_15 = arith.constant 0 : index
    %14 = vector.load %arg15[%13, %c0_15] : memref<16x256xf32, #tpu.memory_space<vmem>>, vector<2x256xf32>
    %15 = arith.addf %14, %11 : vector<2x256xf32>
    %16 = vector.extract_strided_slice %15 {offsets = [0, 0], sizes = [2, 192], strides = [1, 1]} : vector<2x256xf32> to vector<2x192xf32>
    %17 = arith.negf %16 : vector<2x192xf32>
    %18 = math.exp %17 : vector<2x192xf32>
    %cst_16 = arith.constant 1.000000e+00 : f32
    %19 = vector.broadcast %cst_16 : f32 to vector<2x192xf32>
    %20 = arith.addf %19, %18 : vector<2x192xf32>
    %21 = arith.divf %19, %20 : vector<2x192xf32>
    %22 = vector.extract_strided_slice %15 {offsets = [0, 192], sizes = [2, 64], strides = [1, 1]} : vector<2x256xf32> to vector<2x64xf32>
    %23 = math.tanh %22 : vector<2x64xf32>
    %24 = vector.extract_strided_slice %21 {offsets = [0, 0], sizes = [2, 64], strides = [1, 1]} : vector<2x192xf32> to vector<2x64xf32>
    %25 = vector.extract_strided_slice %21 {offsets = [0, 64], sizes = [2, 64], strides = [1, 1]} : vector<2x192xf32> to vector<2x64xf32>
    %26 = vector.extract_strided_slice %21 {offsets = [0, 128], sizes = [2, 64], strides = [1, 1]} : vector<2x192xf32> to vector<2x64xf32>
    %27 = arith.mulf %25, %10 : vector<2x64xf32>
    %28 = arith.mulf %24, %23 : vector<2x64xf32>
    %29 = arith.addf %27, %28 : vector<2x64xf32>
    %30 = math.tanh %29 : vector<2x64xf32>
    %31 = arith.mulf %26, %30 : vector<2x64xf32>
    %cst_17 = arith.constant dense<0.000000e+00> : vector<2x512xf32>
    %32 = tpu.matmul %31, %7, %cst_17 {dimension_numbers = #tpu.dot_dimension_numbers<[1], [0], [0], [1], [0, 0, 1, 1], [], []>} : vector<2x64xf32>, vector<64x512xf32>, vector<2x512xf32> -> vector<2x512xf32>
    %33 = vector.extract_strided_slice %32 {offsets = [0, 0], sizes = [2, 256], strides = [1, 1]} : vector<2x512xf32> to vector<2x256xf32>
    %34 = vector.extract_strided_slice %32 {offsets = [0, 256], sizes = [2, 256], strides = [1, 1]} : vector<2x512xf32> to vector<2x256xf32>
    %cst_18 = arith.constant dense<0.000000e+00> : vector<2x256xf32>
    %35 = tpu.matmul %10, %8, %cst_18 {dimension_numbers = #tpu.dot_dimension_numbers<[1], [0], [0], [1], [0, 0, 1, 1], [], []>} : vector<2x64xf32>, vector<64x256xf32>, vector<2x256xf32> -> vector<2x256xf32>
    %36 = arith.addf %34, %35 : vector<2x256xf32>
    %37 = vector.broadcast %9 : vector<1x256xf32> to vector<2x256xf32>
    %38 = arith.addf %36, %37 : vector<2x256xf32>
    %39 = vector.extract_strided_slice %38 {offsets = [0, 0], sizes = [2, 192], strides = [1, 1]} : vector<2x256xf32> to vector<2x192xf32>
    %40 = arith.negf %39 : vector<2x192xf32>
    %41 = math.exp %40 : vector<2x192xf32>
    %cst_19 = arith.constant 1.000000e+00 : f32
    %42 = vector.broadcast %cst_19 : f32 to vector<2x192xf32>
    %43 = arith.addf %42, %41 : vector<2x192xf32>
    %44 = arith.divf %42, %43 : vector<2x192xf32>
    %45 = vector.extract_strided_slice %38 {offsets = [0, 192], sizes = [2, 64], strides = [1, 1]} : vector<2x256xf32> to vector<2x64xf32>
    %46 = math.tanh %45 : vector<2x64xf32>
    %47 = vector.extract_strided_slice %44 {offsets = [0, 0], sizes = [2, 64], strides = [1, 1]} : vector<2x192xf32> to vector<2x64xf32>
    %48 = vector.extract_strided_slice %44 {offsets = [0, 64], sizes = [2, 64], strides = [1, 1]} : vector<2x192xf32> to vector<2x64xf32>
    %49 = vector.extract_strided_slice %44 {offsets = [0, 128], sizes = [2, 64], strides = [1, 1]} : vector<2x192xf32> to vector<2x64xf32>
    %50 = arith.mulf %48, %10 : vector<2x64xf32>
    %51 = arith.mulf %47, %46 : vector<2x64xf32>
    %52 = arith.addf %50, %51 : vector<2x64xf32>
    %53 = math.tanh %52 : vector<2x64xf32>
    %54 = arith.mulf %49, %53 : vector<2x64xf32>
    %c1_i32 = arith.constant 1 : i32
    %c2_i32_20 = arith.constant 2 : i32
    %55 = arith.muli %c1_i32, %c2_i32_20 : i32
    %56 = arith.index_cast %55 : i32 to index
    %c0_21 = arith.constant 0 : index
    %57 = vector.load %arg15[%56, %c0_21] : memref<16x256xf32, #tpu.memory_space<vmem>>, vector<2x256xf32>
    %58 = arith.addf %57, %33 : vector<2x256xf32>
    %59 = vector.extract_strided_slice %58 {offsets = [0, 0], sizes = [2, 192], strides = [1, 1]} : vector<2x256xf32> to vector<2x192xf32>
    %60 = arith.negf %59 : vector<2x192xf32>
    %61 = math.exp %60 : vector<2x192xf32>
    %cst_22 = arith.constant 1.000000e+00 : f32
    %62 = vector.broadcast %cst_22 : f32 to vector<2x192xf32>
    %63 = arith.addf %62, %61 : vector<2x192xf32>
    %64 = arith.divf %62, %63 : vector<2x192xf32>
    %65 = vector.extract_strided_slice %58 {offsets = [0, 192], sizes = [2, 64], strides = [1, 1]} : vector<2x256xf32> to vector<2x64xf32>
    %66 = math.tanh %65 : vector<2x64xf32>
    %67 = vector.extract_strided_slice %64 {offsets = [0, 0], sizes = [2, 64], strides = [1, 1]} : vector<2x192xf32> to vector<2x64xf32>
    %68 = vector.extract_strided_slice %64 {offsets = [0, 64], sizes = [2, 64], strides = [1, 1]} : vector<2x192xf32> to vector<2x64xf32>
    %69 = vector.extract_strided_slice %64 {offsets = [0, 128], sizes = [2, 64], strides = [1, 1]} : vector<2x192xf32> to vector<2x64xf32>
    %70 = arith.mulf %68, %29 : vector<2x64xf32>
    %71 = arith.mulf %67, %66 : vector<2x64xf32>
    %72 = arith.addf %70, %71 : vector<2x64xf32>
    %73 = math.tanh %72 : vector<2x64xf32>
    %74 = arith.mulf %69, %73 : vector<2x64xf32>
    %cst_23 = arith.constant dense<0.000000e+00> : vector<2x512xf32>
    %75 = tpu.matmul %74, %7, %cst_23 {dimension_numbers = #tpu.dot_dimension_numbers<[1], [0], [0], [1], [0, 0, 1, 1], [], []>} : vector<2x64xf32>, vector<64x512xf32>, vector<2x512xf32> -> vector<2x512xf32>
    %76 = vector.extract_strided_slice %75 {offsets = [0, 0], sizes = [2, 256], strides = [1, 1]} : vector<2x512xf32> to vector<2x256xf32>
    %77 = vector.extract_strided_slice %75 {offsets = [0, 256], sizes = [2, 256], strides = [1, 1]} : vector<2x512xf32> to vector<2x256xf32>
    %cst_24 = arith.constant dense<0.000000e+00> : vector<2x256xf32>
    %78 = tpu.matmul %54, %8, %cst_24 {dimension_numbers = #tpu.dot_dimension_numbers<[1], [0], [0], [1], [0, 0, 1, 1], [], []>} : vector<2x64xf32>, vector<64x256xf32>, vector<2x256xf32> -> vector<2x256xf32>
    %79 = arith.addf %77, %78 : vector<2x256xf32>
    %80 = vector.broadcast %9 : vector<1x256xf32> to vector<2x256xf32>
    %81 = arith.addf %79, %80 : vector<2x256xf32>
    %82 = vector.extract_strided_slice %81 {offsets = [0, 0], sizes = [2, 192], strides = [1, 1]} : vector<2x256xf32> to vector<2x192xf32>
    %83 = arith.negf %82 : vector<2x192xf32>
    %84 = math.exp %83 : vector<2x192xf32>
    %cst_25 = arith.constant 1.000000e+00 : f32
    %85 = vector.broadcast %cst_25 : f32 to vector<2x192xf32>
    %86 = arith.addf %85, %84 : vector<2x192xf32>
    %87 = arith.divf %85, %86 : vector<2x192xf32>
    %88 = vector.extract_strided_slice %81 {offsets = [0, 192], sizes = [2, 64], strides = [1, 1]} : vector<2x256xf32> to vector<2x64xf32>
    %89 = math.tanh %88 : vector<2x64xf32>
    %90 = vector.extract_strided_slice %87 {offsets = [0, 0], sizes = [2, 64], strides = [1, 1]} : vector<2x192xf32> to vector<2x64xf32>
    %91 = vector.extract_strided_slice %87 {offsets = [0, 64], sizes = [2, 64], strides = [1, 1]} : vector<2x192xf32> to vector<2x64xf32>
    %92 = vector.extract_strided_slice %87 {offsets = [0, 128], sizes = [2, 64], strides = [1, 1]} : vector<2x192xf32> to vector<2x64xf32>
    %93 = arith.mulf %91, %52 : vector<2x64xf32>
    %94 = arith.mulf %90, %89 : vector<2x64xf32>
    %95 = arith.addf %93, %94 : vector<2x64xf32>
    %96 = math.tanh %95 : vector<2x64xf32>
    %97 = arith.mulf %92, %96 : vector<2x64xf32>
    %c2_i32_26 = arith.constant 2 : i32
    %c2_i32_27 = arith.constant 2 : i32
    %98 = arith.muli %c2_i32_26, %c2_i32_27 : i32
    %99 = arith.index_cast %98 : i32 to index
    %c0_28 = arith.constant 0 : index
    %100 = vector.load %arg15[%99, %c0_28] : memref<16x256xf32, #tpu.memory_space<vmem>>, vector<2x256xf32>
    %101 = arith.addf %100, %76 : vector<2x256xf32>
    %102 = vector.extract_strided_slice %101 {offsets = [0, 0], sizes = [2, 192], strides = [1, 1]} : vector<2x256xf32> to vector<2x192xf32>
    %103 = arith.negf %102 : vector<2x192xf32>
    %104 = math.exp %103 : vector<2x192xf32>
    %cst_29 = arith.constant 1.000000e+00 : f32
    %105 = vector.broadcast %cst_29 : f32 to vector<2x192xf32>
    %106 = arith.addf %105, %104 : vector<2x192xf32>
    %107 = arith.divf %105, %106 : vector<2x192xf32>
    %108 = vector.extract_strided_slice %101 {offsets = [0, 192], sizes = [2, 64], strides = [1, 1]} : vector<2x256xf32> to vector<2x64xf32>
    %109 = math.tanh %108 : vector<2x64xf32>
    %110 = vector.extract_strided_slice %107 {offsets = [0, 0], sizes = [2, 64], strides = [1, 1]} : vector<2x192xf32> to vector<2x64xf32>
    %111 = vector.extract_strided_slice %107 {offsets = [0, 64], sizes = [2, 64], strides = [1, 1]} : vector<2x192xf32> to vector<2x64xf32>
    %112 = vector.extract_strided_slice %107 {offsets = [0, 128], sizes = [2, 64], strides = [1, 1]} : vector<2x192xf32> to vector<2x64xf32>
    %113 = arith.mulf %111, %72 : vector<2x64xf32>
    %114 = arith.mulf %110, %109 : vector<2x64xf32>
    %115 = arith.addf %113, %114 : vector<2x64xf32>
    %116 = math.tanh %115 : vector<2x64xf32>
    %117 = arith.mulf %112, %116 : vector<2x64xf32>
    %cst_30 = arith.constant dense<0.000000e+00> : vector<2x512xf32>
    %118 = tpu.matmul %117, %7, %cst_30 {dimension_numbers = #tpu.dot_dimension_numbers<[1], [0], [0], [1], [0, 0, 1, 1], [], []>} : vector<2x64xf32>, vector<64x512xf32>, vector<2x512xf32> -> vector<2x512xf32>
    %119 = vector.extract_strided_slice %118 {offsets = [0, 0], sizes = [2, 256], strides = [1, 1]} : vector<2x512xf32> to vector<2x256xf32>
    %120 = vector.extract_strided_slice %118 {offsets = [0, 256], sizes = [2, 256], strides = [1, 1]} : vector<2x512xf32> to vector<2x256xf32>
    %cst_31 = arith.constant dense<0.000000e+00> : vector<2x256xf32>
    %121 = tpu.matmul %97, %8, %cst_31 {dimension_numbers = #tpu.dot_dimension_numbers<[1], [0], [0], [1], [0, 0, 1, 1], [], []>} : vector<2x64xf32>, vector<64x256xf32>, vector<2x256xf32> -> vector<2x256xf32>
    %122 = arith.addf %120, %121 : vector<2x256xf32>
    %123 = vector.broadcast %9 : vector<1x256xf32> to vector<2x256xf32>
    %124 = arith.addf %122, %123 : vector<2x256xf32>
    %125 = vector.extract_strided_slice %124 {offsets = [0, 0], sizes = [2, 192], strides = [1, 1]} : vector<2x256xf32> to vector<2x192xf32>
    %126 = arith.negf %125 : vector<2x192xf32>
    %127 = math.exp %126 : vector<2x192xf32>
    %cst_32 = arith.constant 1.000000e+00 : f32
    %128 = vector.broadcast %cst_32 : f32 to vector<2x192xf32>
    %129 = arith.addf %128, %127 : vector<2x192xf32>
    %130 = arith.divf %128, %129 : vector<2x192xf32>
    %131 = vector.extract_strided_slice %124 {offsets = [0, 192], sizes = [2, 64], strides = [1, 1]} : vector<2x256xf32> to vector<2x64xf32>
    %132 = math.tanh %131 : vector<2x64xf32>
    %133 = vector.extract_strided_slice %130 {offsets = [0, 0], sizes = [2, 64], strides = [1, 1]} : vector<2x192xf32> to vector<2x64xf32>
    %134 = vector.extract_strided_slice %130 {offsets = [0, 64], sizes = [2, 64], strides = [1, 1]} : vector<2x192xf32> to vector<2x64xf32>
    %135 = vector.extract_strided_slice %130 {offsets = [0, 128], sizes = [2, 64], strides = [1, 1]} : vector<2x192xf32> to vector<2x64xf32>
    %136 = arith.mulf %134, %95 : vector<2x64xf32>
    %137 = arith.mulf %133, %132 : vector<2x64xf32>
    %138 = arith.addf %136, %137 : vector<2x64xf32>
    %139 = math.tanh %138 : vector<2x64xf32>
    %140 = arith.mulf %135, %139 : vector<2x64xf32>
    %c3_i32 = arith.constant 3 : i32
    %c2_i32_33 = arith.constant 2 : i32
    %141 = arith.muli %c3_i32, %c2_i32_33 : i32
    %142 = arith.index_cast %141 : i32 to index
    %c0_34 = arith.constant 0 : index
    %143 = vector.load %arg15[%142, %c0_34] : memref<16x256xf32, #tpu.memory_space<vmem>>, vector<2x256xf32>
    %144 = arith.addf %143, %119 : vector<2x256xf32>
    %145 = vector.extract_strided_slice %144 {offsets = [0, 0], sizes = [2, 192], strides = [1, 1]} : vector<2x256xf32> to vector<2x192xf32>
    %146 = arith.negf %145 : vector<2x192xf32>
    %147 = math.exp %146 : vector<2x192xf32>
    %cst_35 = arith.constant 1.000000e+00 : f32
    %148 = vector.broadcast %cst_35 : f32 to vector<2x192xf32>
    %149 = arith.addf %148, %147 : vector<2x192xf32>
    %150 = arith.divf %148, %149 : vector<2x192xf32>
    %151 = vector.extract_strided_slice %144 {offsets = [0, 192], sizes = [2, 64], strides = [1, 1]} : vector<2x256xf32> to vector<2x64xf32>
    %152 = math.tanh %151 : vector<2x64xf32>
    %153 = vector.extract_strided_slice %150 {offsets = [0, 0], sizes = [2, 64], strides = [1, 1]} : vector<2x192xf32> to vector<2x64xf32>
    %154 = vector.extract_strided_slice %150 {offsets = [0, 64], sizes = [2, 64], strides = [1, 1]} : vector<2x192xf32> to vector<2x64xf32>
    %155 = vector.extract_strided_slice %150 {offsets = [0, 128], sizes = [2, 64], strides = [1, 1]} : vector<2x192xf32> to vector<2x64xf32>
    %156 = arith.mulf %154, %115 : vector<2x64xf32>
    %157 = arith.mulf %153, %152 : vector<2x64xf32>
    %158 = arith.addf %156, %157 : vector<2x64xf32>
    %159 = math.tanh %158 : vector<2x64xf32>
    %160 = arith.mulf %155, %159 : vector<2x64xf32>
    %cst_36 = arith.constant dense<0.000000e+00> : vector<2x512xf32>
    %161 = tpu.matmul %160, %7, %cst_36 {dimension_numbers = #tpu.dot_dimension_numbers<[1], [0], [0], [1], [0, 0, 1, 1], [], []>} : vector<2x64xf32>, vector<64x512xf32>, vector<2x512xf32> -> vector<2x512xf32>
    %162 = vector.extract_strided_slice %161 {offsets = [0, 0], sizes = [2, 256], strides = [1, 1]} : vector<2x512xf32> to vector<2x256xf32>
    %163 = vector.extract_strided_slice %161 {offsets = [0, 256], sizes = [2, 256], strides = [1, 1]} : vector<2x512xf32> to vector<2x256xf32>
    %cst_37 = arith.constant dense<0.000000e+00> : vector<2x256xf32>
    %164 = tpu.matmul %140, %8, %cst_37 {dimension_numbers = #tpu.dot_dimension_numbers<[1], [0], [0], [1], [0, 0, 1, 1], [], []>} : vector<2x64xf32>, vector<64x256xf32>, vector<2x256xf32> -> vector<2x256xf32>
    %165 = arith.addf %163, %164 : vector<2x256xf32>
    %166 = vector.broadcast %9 : vector<1x256xf32> to vector<2x256xf32>
    %167 = arith.addf %165, %166 : vector<2x256xf32>
    %168 = vector.extract_strided_slice %167 {offsets = [0, 0], sizes = [2, 192], strides = [1, 1]} : vector<2x256xf32> to vector<2x192xf32>
    %169 = arith.negf %168 : vector<2x192xf32>
    %170 = math.exp %169 : vector<2x192xf32>
    %cst_38 = arith.constant 1.000000e+00 : f32
    %171 = vector.broadcast %cst_38 : f32 to vector<2x192xf32>
    %172 = arith.addf %171, %170 : vector<2x192xf32>
    %173 = arith.divf %171, %172 : vector<2x192xf32>
    %174 = vector.extract_strided_slice %167 {offsets = [0, 192], sizes = [2, 64], strides = [1, 1]} : vector<2x256xf32> to vector<2x64xf32>
    %175 = math.tanh %174 : vector<2x64xf32>
    %176 = vector.extract_strided_slice %173 {offsets = [0, 0], sizes = [2, 64], strides = [1, 1]} : vector<2x192xf32> to vector<2x64xf32>
    %177 = vector.extract_strided_slice %173 {offsets = [0, 64], sizes = [2, 64], strides = [1, 1]} : vector<2x192xf32> to vector<2x64xf32>
    %178 = vector.extract_strided_slice %173 {offsets = [0, 128], sizes = [2, 64], strides = [1, 1]} : vector<2x192xf32> to vector<2x64xf32>
    %179 = arith.mulf %177, %138 : vector<2x64xf32>
    %180 = arith.mulf %176, %175 : vector<2x64xf32>
    %181 = arith.addf %179, %180 : vector<2x64xf32>
    %182 = math.tanh %181 : vector<2x64xf32>
    %183 = arith.mulf %178, %182 : vector<2x64xf32>
    %c4_i32 = arith.constant 4 : i32
    %c2_i32_39 = arith.constant 2 : i32
    %184 = arith.muli %c4_i32, %c2_i32_39 : i32
    %185 = arith.index_cast %184 : i32 to index
    %c0_40 = arith.constant 0 : index
    %186 = vector.load %arg15[%185, %c0_40] : memref<16x256xf32, #tpu.memory_space<vmem>>, vector<2x256xf32>
    %187 = arith.addf %186, %162 : vector<2x256xf32>
    %188 = vector.extract_strided_slice %187 {offsets = [0, 0], sizes = [2, 192], strides = [1, 1]} : vector<2x256xf32> to vector<2x192xf32>
    %189 = arith.negf %188 : vector<2x192xf32>
    %190 = math.exp %189 : vector<2x192xf32>
    %cst_41 = arith.constant 1.000000e+00 : f32
    %191 = vector.broadcast %cst_41 : f32 to vector<2x192xf32>
    %192 = arith.addf %191, %190 : vector<2x192xf32>
    %193 = arith.divf %191, %192 : vector<2x192xf32>
    %194 = vector.extract_strided_slice %187 {offsets = [0, 192], sizes = [2, 64], strides = [1, 1]} : vector<2x256xf32> to vector<2x64xf32>
    %195 = math.tanh %194 : vector<2x64xf32>
    %196 = vector.extract_strided_slice %193 {offsets = [0, 0], sizes = [2, 64], strides = [1, 1]} : vector<2x192xf32> to vector<2x64xf32>
    %197 = vector.extract_strided_slice %193 {offsets = [0, 64], sizes = [2, 64], strides = [1, 1]} : vector<2x192xf32> to vector<2x64xf32>
    %198 = vector.extract_strided_slice %193 {offsets = [0, 128], sizes = [2, 64], strides = [1, 1]} : vector<2x192xf32> to vector<2x64xf32>
    %199 = arith.mulf %197, %158 : vector<2x64xf32>
    %200 = arith.mulf %196, %195 : vector<2x64xf32>
    %201 = arith.addf %199, %200 : vector<2x64xf32>
    %202 = math.tanh %201 : vector<2x64xf32>
    %203 = arith.mulf %198, %202 : vector<2x64xf32>
    %cst_42 = arith.constant dense<0.000000e+00> : vector<2x512xf32>
    %204 = tpu.matmul %203, %7, %cst_42 {dimension_numbers = #tpu.dot_dimension_numbers<[1], [0], [0], [1], [0, 0, 1, 1], [], []>} : vector<2x64xf32>, vector<64x512xf32>, vector<2x512xf32> -> vector<2x512xf32>
    %205 = vector.extract_strided_slice %204 {offsets = [0, 0], sizes = [2, 256], strides = [1, 1]} : vector<2x512xf32> to vector<2x256xf32>
    %206 = vector.extract_strided_slice %204 {offsets = [0, 256], sizes = [2, 256], strides = [1, 1]} : vector<2x512xf32> to vector<2x256xf32>
    %cst_43 = arith.constant dense<0.000000e+00> : vector<2x256xf32>
    %207 = tpu.matmul %183, %8, %cst_43 {dimension_numbers = #tpu.dot_dimension_numbers<[1], [0], [0], [1], [0, 0, 1, 1], [], []>} : vector<2x64xf32>, vector<64x256xf32>, vector<2x256xf32> -> vector<2x256xf32>
    %208 = arith.addf %206, %207 : vector<2x256xf32>
    %209 = vector.broadcast %9 : vector<1x256xf32> to vector<2x256xf32>
    %210 = arith.addf %208, %209 : vector<2x256xf32>
    %211 = vector.extract_strided_slice %210 {offsets = [0, 0], sizes = [2, 192], strides = [1, 1]} : vector<2x256xf32> to vector<2x192xf32>
    %212 = arith.negf %211 : vector<2x192xf32>
    %213 = math.exp %212 : vector<2x192xf32>
    %cst_44 = arith.constant 1.000000e+00 : f32
    %214 = vector.broadcast %cst_44 : f32 to vector<2x192xf32>
    %215 = arith.addf %214, %213 : vector<2x192xf32>
    %216 = arith.divf %214, %215 : vector<2x192xf32>
    %217 = vector.extract_strided_slice %210 {offsets = [0, 192], sizes = [2, 64], strides = [1, 1]} : vector<2x256xf32> to vector<2x64xf32>
    %218 = math.tanh %217 : vector<2x64xf32>
    %219 = vector.extract_strided_slice %216 {offsets = [0, 0], sizes = [2, 64], strides = [1, 1]} : vector<2x192xf32> to vector<2x64xf32>
    %220 = vector.extract_strided_slice %216 {offsets = [0, 64], sizes = [2, 64], strides = [1, 1]} : vector<2x192xf32> to vector<2x64xf32>
    %221 = vector.extract_strided_slice %216 {offsets = [0, 128], sizes = [2, 64], strides = [1, 1]} : vector<2x192xf32> to vector<2x64xf32>
    %222 = arith.mulf %220, %181 : vector<2x64xf32>
    %223 = arith.mulf %219, %218 : vector<2x64xf32>
    %224 = arith.addf %222, %223 : vector<2x64xf32>
    %225 = math.tanh %224 : vector<2x64xf32>
    %226 = arith.mulf %221, %225 : vector<2x64xf32>
    %c5_i32 = arith.constant 5 : i32
    %c2_i32_45 = arith.constant 2 : i32
    %227 = arith.muli %c5_i32, %c2_i32_45 : i32
    %228 = arith.index_cast %227 : i32 to index
    %c0_46 = arith.constant 0 : index
    %229 = vector.load %arg15[%228, %c0_46] : memref<16x256xf32, #tpu.memory_space<vmem>>, vector<2x256xf32>
    %230 = arith.addf %229, %205 : vector<2x256xf32>
    %231 = vector.extract_strided_slice %230 {offsets = [0, 0], sizes = [2, 192], strides = [1, 1]} : vector<2x256xf32> to vector<2x192xf32>
    %232 = arith.negf %231 : vector<2x192xf32>
    %233 = math.exp %232 : vector<2x192xf32>
    %cst_47 = arith.constant 1.000000e+00 : f32
    %234 = vector.broadcast %cst_47 : f32 to vector<2x192xf32>
    %235 = arith.addf %234, %233 : vector<2x192xf32>
    %236 = arith.divf %234, %235 : vector<2x192xf32>
    %237 = vector.extract_strided_slice %230 {offsets = [0, 192], sizes = [2, 64], strides = [1, 1]} : vector<2x256xf32> to vector<2x64xf32>
    %238 = math.tanh %237 : vector<2x64xf32>
    %239 = vector.extract_strided_slice %236 {offsets = [0, 0], sizes = [2, 64], strides = [1, 1]} : vector<2x192xf32> to vector<2x64xf32>
    %240 = vector.extract_strided_slice %236 {offsets = [0, 64], sizes = [2, 64], strides = [1, 1]} : vector<2x192xf32> to vector<2x64xf32>
    %241 = vector.extract_strided_slice %236 {offsets = [0, 128], sizes = [2, 64], strides = [1, 1]} : vector<2x192xf32> to vector<2x64xf32>
    %242 = arith.mulf %240, %201 : vector<2x64xf32>
    %243 = arith.mulf %239, %238 : vector<2x64xf32>
    %244 = arith.addf %242, %243 : vector<2x64xf32>
    %245 = math.tanh %244 : vector<2x64xf32>
    %246 = arith.mulf %241, %245 : vector<2x64xf32>
    %cst_48 = arith.constant dense<0.000000e+00> : vector<2x512xf32>
    %247 = tpu.matmul %246, %7, %cst_48 {dimension_numbers = #tpu.dot_dimension_numbers<[1], [0], [0], [1], [0, 0, 1, 1], [], []>} : vector<2x64xf32>, vector<64x512xf32>, vector<2x512xf32> -> vector<2x512xf32>
    %248 = vector.extract_strided_slice %247 {offsets = [0, 0], sizes = [2, 256], strides = [1, 1]} : vector<2x512xf32> to vector<2x256xf32>
    %249 = vector.extract_strided_slice %247 {offsets = [0, 256], sizes = [2, 256], strides = [1, 1]} : vector<2x512xf32> to vector<2x256xf32>
    %cst_49 = arith.constant dense<0.000000e+00> : vector<2x256xf32>
    %250 = tpu.matmul %226, %8, %cst_49 {dimension_numbers = #tpu.dot_dimension_numbers<[1], [0], [0], [1], [0, 0, 1, 1], [], []>} : vector<2x64xf32>, vector<64x256xf32>, vector<2x256xf32> -> vector<2x256xf32>
    %251 = arith.addf %249, %250 : vector<2x256xf32>
    %252 = vector.broadcast %9 : vector<1x256xf32> to vector<2x256xf32>
    %253 = arith.addf %251, %252 : vector<2x256xf32>
    %254 = vector.extract_strided_slice %253 {offsets = [0, 0], sizes = [2, 192], strides = [1, 1]} : vector<2x256xf32> to vector<2x192xf32>
    %255 = arith.negf %254 : vector<2x192xf32>
    %256 = math.exp %255 : vector<2x192xf32>
    %cst_50 = arith.constant 1.000000e+00 : f32
    %257 = vector.broadcast %cst_50 : f32 to vector<2x192xf32>
    %258 = arith.addf %257, %256 : vector<2x192xf32>
    %259 = arith.divf %257, %258 : vector<2x192xf32>
    %260 = vector.extract_strided_slice %253 {offsets = [0, 192], sizes = [2, 64], strides = [1, 1]} : vector<2x256xf32> to vector<2x64xf32>
    %261 = math.tanh %260 : vector<2x64xf32>
    %262 = vector.extract_strided_slice %259 {offsets = [0, 0], sizes = [2, 64], strides = [1, 1]} : vector<2x192xf32> to vector<2x64xf32>
    %263 = vector.extract_strided_slice %259 {offsets = [0, 64], sizes = [2, 64], strides = [1, 1]} : vector<2x192xf32> to vector<2x64xf32>
    %264 = vector.extract_strided_slice %259 {offsets = [0, 128], sizes = [2, 64], strides = [1, 1]} : vector<2x192xf32> to vector<2x64xf32>
    %265 = arith.mulf %263, %224 : vector<2x64xf32>
    %266 = arith.mulf %262, %261 : vector<2x64xf32>
    %267 = arith.addf %265, %266 : vector<2x64xf32>
    %268 = math.tanh %267 : vector<2x64xf32>
    %269 = arith.mulf %264, %268 : vector<2x64xf32>
    %c6_i32 = arith.constant 6 : i32
    %c2_i32_51 = arith.constant 2 : i32
    %270 = arith.muli %c6_i32, %c2_i32_51 : i32
    %271 = arith.index_cast %270 : i32 to index
    %c0_52 = arith.constant 0 : index
    %272 = vector.load %arg15[%271, %c0_52] : memref<16x256xf32, #tpu.memory_space<vmem>>, vector<2x256xf32>
    %273 = arith.addf %272, %248 : vector<2x256xf32>
    %274 = vector.extract_strided_slice %273 {offsets = [0, 0], sizes = [2, 192], strides = [1, 1]} : vector<2x256xf32> to vector<2x192xf32>
    %275 = arith.negf %274 : vector<2x192xf32>
    %276 = math.exp %275 : vector<2x192xf32>
    %cst_53 = arith.constant 1.000000e+00 : f32
    %277 = vector.broadcast %cst_53 : f32 to vector<2x192xf32>
    %278 = arith.addf %277, %276 : vector<2x192xf32>
    %279 = arith.divf %277, %278 : vector<2x192xf32>
    %280 = vector.extract_strided_slice %273 {offsets = [0, 192], sizes = [2, 64], strides = [1, 1]} : vector<2x256xf32> to vector<2x64xf32>
    %281 = math.tanh %280 : vector<2x64xf32>
    %282 = vector.extract_strided_slice %279 {offsets = [0, 0], sizes = [2, 64], strides = [1, 1]} : vector<2x192xf32> to vector<2x64xf32>
    %283 = vector.extract_strided_slice %279 {offsets = [0, 64], sizes = [2, 64], strides = [1, 1]} : vector<2x192xf32> to vector<2x64xf32>
    %284 = vector.extract_strided_slice %279 {offsets = [0, 128], sizes = [2, 64], strides = [1, 1]} : vector<2x192xf32> to vector<2x64xf32>
    %285 = arith.mulf %283, %244 : vector<2x64xf32>
    %286 = arith.mulf %282, %281 : vector<2x64xf32>
    %287 = arith.addf %285, %286 : vector<2x64xf32>
    %288 = math.tanh %287 : vector<2x64xf32>
    %289 = arith.mulf %284, %288 : vector<2x64xf32>
    %cst_54 = arith.constant dense<0.000000e+00> : vector<2x512xf32>
    %290 = tpu.matmul %289, %7, %cst_54 {dimension_numbers = #tpu.dot_dimension_numbers<[1], [0], [0], [1], [0, 0, 1, 1], [], []>} : vector<2x64xf32>, vector<64x512xf32>, vector<2x512xf32> -> vector<2x512xf32>
    %291 = vector.extract_strided_slice %290 {offsets = [0, 0], sizes = [2, 256], strides = [1, 1]} : vector<2x512xf32> to vector<2x256xf32>
    %292 = vector.extract_strided_slice %290 {offsets = [0, 256], sizes = [2, 256], strides = [1, 1]} : vector<2x512xf32> to vector<2x256xf32>
    %cst_55 = arith.constant dense<0.000000e+00> : vector<2x256xf32>
    %293 = tpu.matmul %269, %8, %cst_55 {dimension_numbers = #tpu.dot_dimension_numbers<[1], [0], [0], [1], [0, 0, 1, 1], [], []>} : vector<2x64xf32>, vector<64x256xf32>, vector<2x256xf32> -> vector<2x256xf32>
    %294 = arith.addf %292, %293 : vector<2x256xf32>
    %295 = vector.broadcast %9 : vector<1x256xf32> to vector<2x256xf32>
    %296 = arith.addf %294, %295 : vector<2x256xf32>
    %297 = vector.extract_strided_slice %296 {offsets = [0, 0], sizes = [2, 192], strides = [1, 1]} : vector<2x256xf32> to vector<2x192xf32>
    %298 = arith.negf %297 : vector<2x192xf32>
    %299 = math.exp %298 : vector<2x192xf32>
    %cst_56 = arith.constant 1.000000e+00 : f32
    %300 = vector.broadcast %cst_56 : f32 to vector<2x192xf32>
    %301 = arith.addf %300, %299 : vector<2x192xf32>
    %302 = arith.divf %300, %301 : vector<2x192xf32>
    %303 = vector.extract_strided_slice %296 {offsets = [0, 192], sizes = [2, 64], strides = [1, 1]} : vector<2x256xf32> to vector<2x64xf32>
    %304 = math.tanh %303 : vector<2x64xf32>
    %305 = vector.extract_strided_slice %302 {offsets = [0, 0], sizes = [2, 64], strides = [1, 1]} : vector<2x192xf32> to vector<2x64xf32>
    %306 = vector.extract_strided_slice %302 {offsets = [0, 64], sizes = [2, 64], strides = [1, 1]} : vector<2x192xf32> to vector<2x64xf32>
    %307 = vector.extract_strided_slice %302 {offsets = [0, 128], sizes = [2, 64], strides = [1, 1]} : vector<2x192xf32> to vector<2x64xf32>
    %308 = arith.mulf %306, %267 : vector<2x64xf32>
    %309 = arith.mulf %305, %304 : vector<2x64xf32>
    %310 = arith.addf %308, %309 : vector<2x64xf32>
    %311 = math.tanh %310 : vector<2x64xf32>
    %312 = arith.mulf %307, %311 : vector<2x64xf32>
    %c7_i32 = arith.constant 7 : i32
    %c2_i32_57 = arith.constant 2 : i32
    %313 = arith.muli %c7_i32, %c2_i32_57 : i32
    %314 = arith.index_cast %313 : i32 to index
    %c0_58 = arith.constant 0 : index
    %315 = vector.load %arg15[%314, %c0_58] : memref<16x256xf32, #tpu.memory_space<vmem>>, vector<2x256xf32>
    %316 = arith.addf %315, %291 : vector<2x256xf32>
    %317 = vector.extract_strided_slice %316 {offsets = [0, 0], sizes = [2, 192], strides = [1, 1]} : vector<2x256xf32> to vector<2x192xf32>
    %318 = arith.negf %317 : vector<2x192xf32>
    %319 = math.exp %318 : vector<2x192xf32>
    %cst_59 = arith.constant 1.000000e+00 : f32
    %320 = vector.broadcast %cst_59 : f32 to vector<2x192xf32>
    %321 = arith.addf %320, %319 : vector<2x192xf32>
    %322 = arith.divf %320, %321 : vector<2x192xf32>
    %323 = vector.extract_strided_slice %316 {offsets = [0, 192], sizes = [2, 64], strides = [1, 1]} : vector<2x256xf32> to vector<2x64xf32>
    %324 = math.tanh %323 : vector<2x64xf32>
    %325 = vector.extract_strided_slice %322 {offsets = [0, 0], sizes = [2, 64], strides = [1, 1]} : vector<2x192xf32> to vector<2x64xf32>
    %326 = vector.extract_strided_slice %322 {offsets = [0, 64], sizes = [2, 64], strides = [1, 1]} : vector<2x192xf32> to vector<2x64xf32>
    %327 = vector.extract_strided_slice %322 {offsets = [0, 128], sizes = [2, 64], strides = [1, 1]} : vector<2x192xf32> to vector<2x64xf32>
    %328 = arith.mulf %326, %287 : vector<2x64xf32>
    %329 = arith.mulf %325, %324 : vector<2x64xf32>
    %330 = arith.addf %328, %329 : vector<2x64xf32>
    %331 = math.tanh %330 : vector<2x64xf32>
    %332 = arith.mulf %327, %331 : vector<2x64xf32>
    %cst_60 = arith.constant dense<0.000000e+00> : vector<2x512xf32>
    %333 = tpu.matmul %332, %7, %cst_60 {dimension_numbers = #tpu.dot_dimension_numbers<[1], [0], [0], [1], [0, 0, 1, 1], [], []>} : vector<2x64xf32>, vector<64x512xf32>, vector<2x512xf32> -> vector<2x512xf32>
    %334 = vector.extract_strided_slice %333 {offsets = [0, 0], sizes = [2, 256], strides = [1, 1]} : vector<2x512xf32> to vector<2x256xf32>
    %335 = vector.extract_strided_slice %333 {offsets = [0, 256], sizes = [2, 256], strides = [1, 1]} : vector<2x512xf32> to vector<2x256xf32>
    %cst_61 = arith.constant dense<0.000000e+00> : vector<2x256xf32>
    %336 = tpu.matmul %312, %8, %cst_61 {dimension_numbers = #tpu.dot_dimension_numbers<[1], [0], [0], [1], [0, 0, 1, 1], [], []>} : vector<2x64xf32>, vector<64x256xf32>, vector<2x256xf32> -> vector<2x256xf32>
    %337 = arith.addf %335, %336 : vector<2x256xf32>
    %338 = vector.broadcast %9 : vector<1x256xf32> to vector<2x256xf32>
    %339 = arith.addf %337, %338 : vector<2x256xf32>
    %340 = vector.extract_strided_slice %339 {offsets = [0, 0], sizes = [2, 192], strides = [1, 1]} : vector<2x256xf32> to vector<2x192xf32>
    %341 = arith.negf %340 : vector<2x192xf32>
    %342 = math.exp %341 : vector<2x192xf32>
    %cst_62 = arith.constant 1.000000e+00 : f32
    %343 = vector.broadcast %cst_62 : f32 to vector<2x192xf32>
    %344 = arith.addf %343, %342 : vector<2x192xf32>
    %345 = arith.divf %343, %344 : vector<2x192xf32>
    %346 = vector.extract_strided_slice %339 {offsets = [0, 192], sizes = [2, 64], strides = [1, 1]} : vector<2x256xf32> to vector<2x64xf32>
    %347 = math.tanh %346 : vector<2x64xf32>
    %348 = vector.extract_strided_slice %345 {offsets = [0, 0], sizes = [2, 64], strides = [1, 1]} : vector<2x192xf32> to vector<2x64xf32>
    %349 = vector.extract_strided_slice %345 {offsets = [0, 64], sizes = [2, 64], strides = [1, 1]} : vector<2x192xf32> to vector<2x64xf32>
    %350 = vector.extract_strided_slice %345 {offsets = [0, 128], sizes = [2, 64], strides = [1, 1]} : vector<2x192xf32> to vector<2x64xf32>
    %351 = arith.mulf %349, %310 : vector<2x64xf32>
    %352 = arith.mulf %348, %347 : vector<2x64xf32>
    %353 = arith.addf %351, %352 : vector<2x64xf32>
    %354 = math.tanh %353 : vector<2x64xf32>
    %355 = arith.mulf %350, %354 : vector<2x64xf32>
    %c8_i32 = arith.constant 8 : i32
    %c0_63 = arith.constant 0 : index
    %c0_64 = arith.constant 0 : index
    %356 = vector.load %arg8[%c0_63, %c0_64] : memref<64x32xf32, #tpu.memory_space<vmem>>, vector<64x32xf32>
    %cst_65 = arith.constant dense<0.000000e+00> : vector<2x32xf32>
    %357 = tpu.matmul %355, %356, %cst_65 {dimension_numbers = #tpu.dot_dimension_numbers<[1], [0], [0], [1], [0, 0, 1, 1], [], []>} : vector<2x64xf32>, vector<64x32xf32>, vector<2x32xf32> -> vector<2x32xf32>
    %c0_66 = arith.constant 0 : index
    %c0_67 = arith.constant 0 : index
    %358 = vector.load %arg1[%c0_66, %c0_67] : memref<2x1xf32, #tpu.memory_space<vmem>>, vector<2x1xf32>
    %c0_68 = arith.constant 0 : index
    %c0_69 = arith.constant 0 : index
    %359 = vector.load %arg9[%c0_68, %c0_69] : memref<1x32xf32, #tpu.memory_space<vmem>>, vector<1x32xf32>
    %360 = vector.broadcast %358 : vector<2x1xf32> to vector<2x32xf32>
    %361 = vector.broadcast %359 : vector<1x32xf32> to vector<2x32xf32>
    %362 = arith.mulf %360, %361 : vector<2x32xf32>
    %363 = arith.addf %357, %362 : vector<2x32xf32>
    %c0_70 = arith.constant 0 : index
    %c0_71 = arith.constant 0 : index
    %364 = vector.load %arg2[%c0_70, %c0_71] : memref<2x1xf32, #tpu.memory_space<vmem>>, vector<2x1xf32>
    %c0_72 = arith.constant 0 : index
    %c0_73 = arith.constant 0 : index
    %365 = vector.load %arg10[%c0_72, %c0_73] : memref<1x32xf32, #tpu.memory_space<vmem>>, vector<1x32xf32>
    %366 = vector.broadcast %364 : vector<2x1xf32> to vector<2x32xf32>
    %367 = vector.broadcast %365 : vector<1x32xf32> to vector<2x32xf32>
    %368 = arith.mulf %366, %367 : vector<2x32xf32>
    %369 = arith.addf %363, %368 : vector<2x32xf32>
    %c0_74 = arith.constant 0 : index
    %c0_75 = arith.constant 0 : index
    %370 = vector.load %arg11[%c0_74, %c0_75] : memref<1x32xf32, #tpu.memory_space<vmem>>, vector<1x32xf32>
    %371 = vector.broadcast %370 : vector<1x32xf32> to vector<2x32xf32>
    %372 = arith.addf %369, %371 : vector<2x32xf32>
    %cst_76 = arith.constant 0.000000e+00 : f32
    %373 = vector.broadcast %cst_76 : f32 to vector<2x32xf32>
    %374 = arith.maximumf %372, %373 : vector<2x32xf32>
    %c0_77 = arith.constant 0 : index
    %c0_78 = arith.constant 0 : index
    %375 = vector.load %arg12[%c0_77, %c0_78] : memref<32x3xf32, #tpu.memory_space<vmem>>, vector<32x3xf32>
    %cst_79 = arith.constant dense<0.000000e+00> : vector<2x3xf32>
    %376 = tpu.matmul %374, %375, %cst_79 {dimension_numbers = #tpu.dot_dimension_numbers<[1], [0], [0], [1], [0, 0, 1, 1], [], []>} : vector<2x32xf32>, vector<32x3xf32>, vector<2x3xf32> -> vector<2x3xf32>
    %c0_80 = arith.constant 0 : index
    %c0_81 = arith.constant 0 : index
    %377 = vector.load %arg13[%c0_80, %c0_81] : memref<1x3xf32, #tpu.memory_space<vmem>>, vector<1x3xf32>
    %378 = vector.broadcast %377 : vector<1x3xf32> to vector<2x3xf32>
    %379 = arith.addf %376, %378 : vector<2x3xf32>
    %c0_82 = arith.constant 0 : index
    %c0_83 = arith.constant 0 : index
    %380 = vector.load %arg14[%c0_82, %c0_83] : memref<2x3xf32, #tpu.memory_space<vmem>>, vector<2x3xf32>
    tpu.vector_store %arg14[%c0_82, %c0_83], %379 {strides = array<i32>} : memref<2x3xf32, #tpu.memory_space<vmem>>, vector<2x3xf32>,
    return
  }
}

</mosaic_0001>

<llo_original>
// kernel: tpu_custom_call.1
$region0: #{tpu_custom_call.1}
  #allocation0 [shape = 'u32[]', space=smem, size = 0x4, offset = 0x4, fixed_abs, tag = 'smem constant byte address 0x4 - core index']
  #allocation1 [shape = 'u32[144,128]{1,0:T(1,128)}', space=vmem, size = 0x12000, scoped, tag = 'internal scratch']
  #allocation2 [shape = 'f32[16,256]{1,0:T(8,128)}', space=vmem, size = 0x4000, scoped, tag = 'scratch operand']
  %s0 = inlined_call_operand.vmem [shape: f32[16,4], index: 0, kind: input, shape index: {}]
  %s1 = inlined_call_operand.vmem [shape: f32[2,1], index: 1, kind: input, shape index: {}]
  %s2 = inlined_call_operand.vmem [shape: f32[2,1], index: 2, kind: input, shape index: {}]
  %s3 = inlined_call_operand.vmem [shape: f32[4,256], index: 3, kind: input, shape index: {}]
  %s4 = inlined_call_operand.hbm [shape: f32[1,256], index: 4, kind: input, shape index: {}]
  %s5 = inlined_call_operand.hbm [shape: f32[64,512], index: 5, kind: input, shape index: {}]
  %s6 = inlined_call_operand.vmem [shape: f32[64,256], index: 6, kind: input, shape index: {}]
  %s7 = inlined_call_operand.hbm [shape: f32[1,256], index: 7, kind: input, shape index: {}]
  %s8 = inlined_call_operand.vmem [shape: f32[64,32], index: 8, kind: input, shape index: {}]
  %s9 = inlined_call_operand.vmem [shape: f32[1,32], index: 9, kind: input, shape index: {}]
  %s10 = inlined_call_operand.vmem [shape: f32[1,32], index: 10, kind: input, shape index: {}]
  %s11 = inlined_call_operand.vmem [shape: f32[1,32], index: 11, kind: input, shape index: {}]
  %s12 = inlined_call_operand.vmem [shape: f32[32,3], index: 12, kind: input, shape index: {}]
  %s13 = inlined_call_operand.vmem [shape: f32[1,3], index: 13, kind: input, shape index: {}]
  %s14 = inlined_call_operand.hbm [shape: f32[2,3], index: 14, kind: output, shape index: {}]
  %s15 = sld [smem:[#allocation0]]
  $region78: #{tpu_custom_call.1} parent=0
    _
  %s17 = ssub.s32 1, %s15
  %s18 = scalar_select 0, %s17, %s15
  $region1: #{tpu_custom_call.1} parent=0
    #allocation3 [shape = 'u8[1024]{0}', space=vmem, size = 0x400, scoped, tag = 'input window, operand 4, single buffered']
    #allocation4 [shape = 's32[1]{0}', space=sflag, size = 0x4, scoped, tag = 'scoped memory for tpu_custom_call.1']
    #allocation5 [shape = 's32[1]{0}', space=sflag, size = 0x4, scoped, tag = 'scoped memory for tpu_custom_call.1']
    #allocation6 [shape = 'u8[131072]{0}', space=vmem, size = 0x20000, scoped, tag = 'input window, operand 5, single buffered']
    #allocation7 [shape = 's32[1]{0}', space=sflag, size = 0x4, scoped, tag = 'scoped memory for tpu_custom_call.1']
    #allocation8 [shape = 'u8[1024]{0}', space=vmem, size = 0x400, scoped, tag = 'input window, operand 7, single buffered']
    #allocation9 [shape = 'u8[1024]{0}', space=vmem, size = 0x400, scoped, tag = 'output window, operand 0, single buffered']
    %19 = vsyncpa [#allocation4], 0
    %20 = vsyncpa [#allocation7], 0
    %21 = vsyncpa [#allocation5], 0
    // Predicated region
    $region2: #{tpu_custom_call.1} parent=1 // pred_check
      _
    $region3: #{tpu_custom_call.1} parent=1 // pred_check_branch
      %23 = sbr.rel (0) target = $region5
    $region4: #{tpu_custom_call.1} parent=1 // pred_region
      _
    $region5: #{tpu_custom_call.1} parent=1 // pred_fallthru
      _
    // Predicated region
    $region6: #{tpu_custom_call.1} parent=1 // pred_check
      _
    $region7: #{tpu_custom_call.1} parent=1 // pred_check_branch
      %25 = sbr.rel (0) target = $region9
    $region8: #{tpu_custom_call.1} parent=1 // pred_region
      _
    $region9: #{tpu_custom_call.1} parent=1 // pred_fallthru
      _
    // Predicated region
    $region10: #{tpu_custom_call.1} parent=1 // pred_check
      _
    $region11: #{tpu_custom_call.1} parent=1 // pred_check_branch
      %27 = sbr.rel (0) target = $region13
    $region12: #{tpu_custom_call.1} parent=1 // pred_region
      _
    $region13: #{tpu_custom_call.1} parent=1 // pred_fallthru
      _
    // Predicated region
    $region14: #{tpu_custom_call.1} parent=1 // pred_check
      _
    $region15: #{tpu_custom_call.1} parent=1 // pred_check_branch
      %29 = sbr.rel (0) target = $region17
    $region16: #{tpu_custom_call.1} parent=1 // pred_region
      _
    $region17: #{tpu_custom_call.1} parent=1 // pred_fallthru
      _
    // Predicated region
    $region18: #{tpu_custom_call.1} parent=1 // pred_check
      _
    $region19: #{tpu_custom_call.1} parent=1 // pred_check_branch
      %31 = sbr.rel (0) target = $region21
    $region20: #{tpu_custom_call.1} parent=1 // pred_region
      %s33 = ssub.s32 32, 32
      %34 = vsyncadd [#allocation4], %s33
      %s36 = sshll.u32 [#allocation3], 4
      %s37 = int_to_ptr.vmem [resolvable:$true] %s36
      %39 = dma.hbm_to_vmem [thread:$0]  %s4, 32, %s37, [#allocation4]
    $region21: #{tpu_custom_call.1} parent=1 // pred_fallthru
      _
    // Predicated region
    $region22: #{tpu_custom_call.1} parent=1 // pred_check
      _
    $region23: #{tpu_custom_call.1} parent=1 // pred_check_branch
      %41 = sbr.rel (0) target = $region25
    $region24: #{tpu_custom_call.1} parent=1 // pred_region
      %s43 = ssub.s32 4096, 4096
      %44 = vsyncadd [#allocation7], %s43
      %s45 = sshll.u32 [#allocation6], 4
      %s46 = int_to_ptr.vmem [resolvable:$true] %s45
      %51 = dma.hbm_to_vmem [thread:$0]  %s5, 4096, %s46, [#allocation7], 512, 512, 32
    $region25: #{tpu_custom_call.1} parent=1 // pred_fallthru
      _
    // Predicated region
    $region26: #{tpu_custom_call.1} parent=1 // pred_check
      _
    $region27: #{tpu_custom_call.1} parent=1 // pred_check_branch
      %53 = sbr.rel (0) target = $region29
    $region28: #{tpu_custom_call.1} parent=1 // pred_region
      _
    $region29: #{tpu_custom_call.1} parent=1 // pred_fallthru
      _
    // Predicated region
    $region30: #{tpu_custom_call.1} parent=1 // pred_check
      _
    $region31: #{tpu_custom_call.1} parent=1 // pred_check_branch
      %55 = sbr.rel (0) target = $region33
    $region32: #{tpu_custom_call.1} parent=1 // pred_region
      %s57 = ssub.s32 32, 32
      %58 = vsyncadd [#allocation7], %s57
      %s60 = sshll.u32 [#allocation8], 4
      %s61 = int_to_ptr.vmem [resolvable:$true] %s60
      %63 = dma.hbm_to_vmem [thread:$0]  %s7, 32, %s61, [#allocation7]
    $region33: #{tpu_custom_call.1} parent=1 // pred_fallthru
      _
    // Predicated region
    $region34: #{tpu_custom_call.1} parent=1 // pred_check
      _
    $region35: #{tpu_custom_call.1} parent=1 // pred_check_branch
      %65 = sbr.rel (0) target = $region37
    $region36: #{tpu_custom_call.1} parent=1 // pred_region
      _
    $region37: #{tpu_custom_call.1} parent=1 // pred_fallthru
      _
    // Predicated region
    $region38: #{tpu_custom_call.1} parent=1 // pred_check
      _
    $region39: #{tpu_custom_call.1} parent=1 // pred_check_branch
      %67 = sbr.rel (0) target = $region41
    $region40: #{tpu_custom_call.1} parent=1 // pred_region
      _
    $region41: #{tpu_custom_call.1} parent=1 // pred_fallthru
      _
    // Predicated region
    $region42: #{tpu_custom_call.1} parent=1 // pred_check
      _
    $region43: #{tpu_custom_call.1} parent=1 // pred_check_branch
      %69 = sbr.rel (0) target = $region45
    $region44: #{tpu_custom_call.1} parent=1 // pred_region
      _
    $region45: #{tpu_custom_call.1} parent=1 // pred_fallthru
      _
    // Predicated region
    $region46: #{tpu_custom_call.1} parent=1 // pred_check
      _
    $region47: #{tpu_custom_call.1} parent=1 // pred_check_branch
      %71 = sbr.rel (0) target = $region49
    $region48: #{tpu_custom_call.1} parent=1 // pred_region
      _
    $region49: #{tpu_custom_call.1} parent=1 // pred_fallthru
      _
    // Predicated region
    $region50: #{tpu_custom_call.1} parent=1 // pred_check
      _
    $region51: #{tpu_custom_call.1} parent=1 // pred_check_branch
      %73 = sbr.rel (0) target = $region53
    $region52: #{tpu_custom_call.1} parent=1 // pred_region
      _
    $region53: #{tpu_custom_call.1} parent=1 // pred_fallthru
      _
    // Predicated region
    $region54: #{tpu_custom_call.1} parent=1 // pred_check
      _
    $region55: #{tpu_custom_call.1} parent=1 // pred_check_branch
      %75 = sbr.rel (0) target = $region57
    $region56: #{tpu_custom_call.1} parent=1 // pred_region
      _
    $region57: #{tpu_custom_call.1} parent=1 // pred_fallthru
      _
    // Predicated region
    $region58: #{tpu_custom_call.1} parent=1 // pred_check
      _
    $region59: #{tpu_custom_call.1} parent=1 // pred_check_branch
      %77 = sbr.rel (0) target = $region61
    $region60: #{tpu_custom_call.1} parent=1 // pred_region
      %78 = dma.done [#allocation4], 32
    $region61: #{tpu_custom_call.1} parent=1 // pred_fallthru
      _
    // Predicated region
    $region62: #{tpu_custom_call.1} parent=1 // pred_check
      _
    $region63: #{tpu_custom_call.1} parent=1 // pred_check_branch
      %80 = sbr.rel (0) target = $region65
    $region64: #{tpu_custom_call.1} parent=1 // pred_region
      %81 = dma.done [#allocation7], 4096
    $region65: #{tpu_custom_call.1} parent=1 // pred_fallthru
      _
    // Predicated region
    $region66: #{tpu_custom_call.1} parent=1 // pred_check
      _
    $region67: #{tpu_custom_call.1} parent=1 // pred_check_branch
      %83 = sbr.rel (0) target = $region69
    $region68: #{tpu_custom_call.1} parent=1 // pred_region
      %84 = dma.done [#allocation7], 32
    $region69: #{tpu_custom_call.1} parent=1 // pred_fallthru
      _
    %v85 = vld [vmem:[%s0] sm:$0xff]
    %v86 = vld [vmem:[%s0 + $0x8] sm:$0xff]
    %v87 = vld [vmem:[%s3] sm:$0xff]
    %v88 = vld [vmem:[#allocation3] sm:$0x3]
    %v90 = vlaneseq
    %v91 = vshrl.u32 %v90, 7
    %v92 = vsub.s32 0, %v91
    %v93 = vrot.slane %v88, %v92
    %v94 = vlaneseq
    %v95 = vshrl.u32 %v94, 7
    %v96 = vsub.s32 1, %v95
    %v97 = vrot.slane %v88, %v96
    %v101 = vcombine.high %v87, %v87
    %vm102 = vcmask 31744
    %v104 = vsel %vm102, %v85, 0
    %v107 = vsel %vm102, %v86, 0
    %vm109 = vcmask 1043456
    %v110 = vsel %vm109, %v87, 0
    %v112 = vsel %vm109, %v101, 0
    %114 = vmatprep.subr.mxu0 0.0
    %115 = vmatpush1.msra.mxu0 0.0
    %116 = vmatprep.subr.mxu0 0.0
    %117 = vmatpush1.msra.mxu0 0.0
    %118 = vmatprep.subr.mxu0 0.0
    %119 = vmatpush1.msra.mxu0 0.0
    %120 = vmatprep.subr.mxu0 0.0
    %121 = vmatpush1.msra.mxu0 0.0
    %122 = vmatprep.subr.mxu0 0.0
    %123 = vmatpush1.msra.mxu0 0.0
    %124 = vmatprep.subr.mxu0 0.0
    %125 = vmatpush1.msra.mxu0 0.0
    %126 = vmatprep.subr.mxu0 0.0
    %127 = vmatpush1.msra.mxu0 0.0
    %128 = vmatprep.subr.mxu0 0.0
    %129 = vmatpush1.msra.mxu0 0.0
    %130 = vmatprep.subr.mxu0 0.0
    %131 = vmatpush1.msra.mxu0 0.0
    %132 = vmatprep.subr.mxu0 0.0
    %133 = vmatpush1.msra.mxu0 0.0
    %134 = vmatprep.subr.mxu0 0.0
    %135 = vmatpush1.msra.mxu0 0.0
    %136 = vmatprep.subr.mxu0 0.0
    %137 = vmatpush1.msra.mxu0 0.0
    %138 = vmatprep.subr.mxu0 0.0
    %139 = vmatpush1.msra.mxu0 0.0
    %140 = vmatprep.subr.mxu0 0.0
    %141 = vmatpush1.msra.mxu0 0.0
    %142 = vmatprep.subr.mxu0 0.0
    %143 = vmatpush1.msra.mxu0 0.0
    %144 = vmatprep.subr.mxu0 %v112
    %145 = vmatpush1.msra.mxu0 %v110
    %146 = vmatprep.subr.mxu0 0.0
    %147 = vmatpush2.msra.mxu0 0.0
    %148 = vmatprep.subr.mxu0 0.0
    %149 = vmatpush2.msra.mxu0 0.0
    %150 = vmatprep.subr.mxu0 0.0
    %151 = vmatpush2.msra.mxu0 0.0
    %152 = vmatprep.subr.mxu0 0.0
    %153 = vmatpush2.msra.mxu0 0.0
    %154 = vmatprep.subr.mxu0 0.0
    %155 = vmatpush2.msra.mxu0 0.0
    %156 = vmatprep.subr.mxu0 0.0
    %157 = vmatpush2.msra.mxu0 0.0
    %158 = vmatprep.subr.mxu0 0.0
    %159 = vmatpush2.msra.mxu0 0.0
    %160 = vmatprep.subr.mxu0 0.0
    %161 = vmatpush2.msra.mxu0 0.0
    %162 = vmatprep.subr.mxu0 0.0
    %163 = vmatpush2.msra.mxu0 0.0
    %164 = vmatprep.subr.mxu0 0.0
    %165 = vmatpush2.msra.mxu0 0.0
    %166 = vmatprep.subr.mxu0 0.0
    %167 = vmatpush2.msra.mxu0 0.0
    %168 = vmatprep.subr.mxu0 0.0
    %169 = vmatpush2.msra.mxu0 0.0
    %170 = vmatprep.subr.mxu0 0.0
    %171 = vmatpush2.msra.mxu0 0.0
    %172 = vmatprep.subr.mxu0 0.0
    %173 = vmatpush2.msra.mxu0 0.0
    %174 = vmatprep.subr.mxu0 0.0
    %175 = vmatpush2.msra.mxu0 0.0
    %176 = vmatprep.subr.mxu0 0.0
    %177 = vmatpush2.msra.mxu0 0.0
    %178 = vmatprep.mubr.f32.mxu0 0.0
    %179 = vmatmul.mubr.f32.gmra.mxu0 %v104
    %v180 = vpop.f32.mrf.mxu0
    %v181 = vadd.f32 %v93, %v180
    %v182 = vpop.f32.mrf.mxu0
    %v183 = vadd.f32 %v97, %v182
    %184 = vmatprep.mubr.f32.mxu0 0.0
    %185 = vmatmul.mubr.f32.gmra.mxu0 %v107
    %v186 = vpop.f32.mrf.mxu0
    %v187 = vadd.f32 %v93, %v186
    %v188 = vpop.f32.mrf.mxu0
    %v189 = vadd.f32 %v97, %v188
    %190 = vdwg.mxu0
    %191 = vst [vmem:[#allocation2] sm:$0xff] %v181
    %192 = vst [vmem:[#allocation2 + $0x8] sm:$0xff] %v183
    %193 = vst [vmem:[#allocation2 + $0x10] sm:$0xff] %v187
    %194 = vst [vmem:[#allocation2 + $0x18] sm:$0xff] %v189
    %v195 = vld [vmem:[#allocation6] sm:$0xff]
    %v196 = vld [vmem:[#allocation6 + $0x8] sm:$0xff]
    %v197 = vld [vmem:[#allocation6 + $0x10] sm:$0xff]
    %v198 = vld [vmem:[#allocation6 + $0x18] sm:$0xff]
    %v199 = vld [vmem:[#allocation6 + $0x20] sm:$0xff]
    %v200 = vld [vmem:[#allocation6 + $0x28] sm:$0xff]
    %v201 = vld [vmem:[#allocation6 + $0x30] sm:$0xff]
    %v202 = vld [vmem:[#allocation6 + $0x38] sm:$0xff]
    %v203 = vld [vmem:[#allocation6 + $0x40] sm:$0xff]
    %v204 = vld [vmem:[#allocation6 + $0x48] sm:$0xff]
    %v205 = vld [vmem:[#allocation6 + $0x50] sm:$0xff]
    %v206 = vld [vmem:[#allocation6 + $0x58] sm:$0xff]
    %v207 = vld [vmem:[#allocation6 + $0x60] sm:$0xff]
    %v208 = vld [vmem:[#allocation6 + $0x68] sm:$0xff]
    %v209 = vld [vmem:[#allocation6 + $0x70] sm:$0xff]
    %v210 = vld [vmem:[#allocation6 + $0x78] sm:$0xff]
    %v211 = vld [vmem:[#allocation6 + $0x80] sm:$0xff]
    %v212 = vld [vmem:[#allocation6 + $0x88] sm:$0xff]
    %v213 = vld [vmem:[#allocation6 + $0x90] sm:$0xff]
    %v214 = vld [vmem:[#allocation6 + $0x98] sm:$0xff]
    %v215 = vld [vmem:[#allocation6 + $0xa0] sm:$0xff]
    %v216 = vld [vmem:[#allocation6 + $0xa8] sm:$0xff]
    %v217 = vld [vmem:[#allocation6 + $0xb0] sm:$0xff]
    %v218 = vld [vmem:[#allocation6 + $0xb8] sm:$0xff]
    %v219 = vld [vmem:[#allocation6 + $0xc0] sm:$0xff]
    %v220 = vld [vmem:[#allocation6 + $0xc8] sm:$0xff]
    %v221 = vld [vmem:[#allocation6 + $0xd0] sm:$0xff]
    %v222 = vld [vmem:[#allocation6 + $0xd8] sm:$0xff]
    %v223 = vld [vmem:[#allocation6 + $0xe0] sm:$0xff]
    %v224 = vld [vmem:[#allocation6 + $0xe8] sm:$0xff]
    %v225 = vld [vmem:[#allocation6 + $0xf0] sm:$0xff]
    %v226 = vld [vmem:[#allocation6 + $0xf8] sm:$0xff]
    %v227 = vld [vmem:[%s6] sm:$0xff]
    %v228 = vld [vmem:[%s6 + $0x8] sm:$0xff]
    %v229 = vld [vmem:[%s6 + $0x10] sm:$0xff]
    %v230 = vld [vmem:[%s6 + $0x18] sm:$0xff]
    %v231 = vld [vmem:[%s6 + $0x20] sm:$0xff]
    %v232 = vld [vmem:[%s6 + $0x28] sm:$0xff]
    %v233 = vld [vmem:[%s6 + $0x30] sm:$0xff]
    %v234 = vld [vmem:[%s6 + $0x38] sm:$0xff]
    %v235 = vld [vmem:[%s6 + $0x40] sm:$0xff]
    %v236 = vld [vmem:[%s6 + $0x48] sm:$0xff]
    %v237 = vld [vmem:[%s6 + $0x50] sm:$0xff]
    %v238 = vld [vmem:[%s6 + $0x58] sm:$0xff]
    %v239 = vld [vmem:[%s6 + $0x60] sm:$0xff]
    %v240 = vld [vmem:[%s6 + $0x68] sm:$0xff]
    %v241 = vld [vmem:[%s6 + $0x70] sm:$0xff]
    %v242 = vld [vmem:[%s6 + $0x78] sm:$0xff]
    %v243 = vld [vmem:[#allocation8] sm:$0x3]
    %v244 = vld [vmem:[#allocation2] sm:$0x3]
    %v245 = vld [vmem:[#allocation2 + $0x8] sm:$0x3]
    %v246 = vadd.f32 %v244, 0.0
    %v247 = vadd.f32 %v245, 0.0
    %v248 = vxor.u32 %v246, 2147483648
    %v249 = vxor.u32 %v247, 2147483648
    %v250 = vmul.f32 %v248, 1.442695
    %v251 = vpow.pop %v250
    %v252 = vmul.f32 %v249, 1.442695
    %v253 = vpow.pop %v252
    %v254 = vadd.f32 %v251, 1.0
    %v255 = vadd.f32 %v253, 1.0
    %v256 = vrcp.pop %v254
    %v257 = vmul.f32 1.0, %v256
    %v258 = vrcp.pop %v255
    %v259 = vmul.f32 1.0, %v258
    %v260 = vtanh.pop %v247
    %v261 = vmul.f32 %v257, 0.0
    %263 = vrot.lane.b32.xlu0 %v260, 64
    %v264 = vpop.permute.xlu0 %263
    %v266 = vmul.f32 %v257, %v264
    %268 = vrot.lane.b32.xlu0 %v266, 64
    %v269 = vpop.permute.xlu0 %268
    %v271 = vadd.f32 %v261, %v269
    %v272 = vtanh.pop %v271
    %274 = vrot.lane.b32.xlu0 %v272, 64
    %v275 = vpop.permute.xlu0 %274
    %v277 = vmul.f32 %v259, %v275
    %vm278 = vcmask 523264
    %v280 = vsel %vm278, %v277, 0
    %282 = vmatprep.subr.mxu0 0.0
    %283 = vmatpush1.msra.mxu0 0.0
    %284 = vmatprep.subr.mxu0 0.0
    %285 = vmatpush1.msra.mxu0 0.0
    %286 = vmatprep.subr.mxu0 0.0
    %287 = vmatpush1.msra.mxu0 0.0
    %288 = vmatprep.subr.mxu0 0.0
    %289 = vmatpush1.msra.mxu0 0.0
    %290 = vmatprep.subr.mxu0 0.0
    %291 = vmatpush1.msra.mxu0 0.0
    %292 = vmatprep.subr.mxu0 0.0
    %293 = vmatpush1.msra.mxu0 0.0
    %294 = vmatprep.subr.mxu0 0.0
    %295 = vmatpush1.msra.mxu0 0.0
    %296 = vmatprep.subr.mxu0 0.0
    %297 = vmatpush1.msra.mxu0 0.0
    %298 = vmatprep.subr.mxu0 %v224
    %299 = vmatpush1.msra.mxu0 %v223
    %300 = vmatprep.subr.mxu0 %v220
    %301 = vmatpush1.msra.mxu0 %v219
    %302 = vmatprep.subr.mxu0 %v216
    %303 = vmatpush1.msra.mxu0 %v215
    %304 = vmatprep.subr.mxu0 %v212
    %305 = vmatpush1.msra.mxu0 %v211
    %306 = vmatprep.subr.mxu0 %v208
    %307 = vmatpush1.msra.mxu0 %v207
    %308 = vmatprep.subr.mxu0 %v204
    %309 = vmatpush1.msra.mxu0 %v203
    %310 = vmatprep.subr.mxu0 %v200
    %311 = vmatpush1.msra.mxu0 %v199
    %312 = vmatprep.subr.mxu0 %v196
    %313 = vmatpush1.msra.mxu0 %v195
    %314 = vmatprep.subr.mxu0 0.0
    %315 = vmatpush2.msra.mxu0 0.0
    %316 = vmatprep.subr.mxu0 0.0
    %317 = vmatpush2.msra.mxu0 0.0
    %318 = vmatprep.subr.mxu0 0.0
    %319 = vmatpush2.msra.mxu0 0.0
    %320 = vmatprep.subr.mxu0 0.0
    %321 = vmatpush2.msra.mxu0 0.0
    %322 = vmatprep.subr.mxu0 0.0
    %323 = vmatpush2.msra.mxu0 0.0
    %324 = vmatprep.subr.mxu0 0.0
    %325 = vmatpush2.msra.mxu0 0.0
    %326 = vmatprep.subr.mxu0 0.0
    %327 = vmatpush2.msra.mxu0 0.0
    %328 = vmatprep.subr.mxu0 0.0
    %329 = vmatpush2.msra.mxu0 0.0
    %330 = vmatprep.subr.mxu0 0.0
    %331 = vmatpush2.msra.mxu0 0.0
    %332 = vmatprep.subr.mxu0 0.0
    %333 = vmatpush2.msra.mxu0 0.0
    %334 = vmatprep.subr.mxu0 0.0
    %335 = vmatpush2.msra.mxu0 0.0
    %336 = vmatprep.subr.mxu0 0.0
    %337 = vmatpush2.msra.mxu0 0.0
    %338 = vmatprep.subr.mxu0 0.0
    %339 = vmatpush2.msra.mxu0 0.0
    %340 = vmatprep.subr.mxu0 0.0
    %341 = vmatpush2.msra.mxu0 0.0
    %342 = vmatprep.subr.mxu0 0.0
    %343 = vmatpush2.msra.mxu0 0.0
    %344 = vmatprep.subr.mxu0 0.0
    %345 = vmatpush2.msra.mxu0 0.0
    %346 = vmatprep.mubr.f32.mxu0 0.0
    %347 = vmatmul.mubr.f32.gmra.mxu0 %v280
    %v348 = vpop.f32.mrf.mxu0
    %v349 = vadd.f32 0.0, %v348
    %v350 = vpop.f32.mrf.mxu0
    %v351 = vadd.f32 0.0, %v350
    %352 = vdwg.mxu0
    %353 = vmatprep.subr.mxu0 0.0
    %354 = vmatpush1.msra.mxu0 0.0
    %355 = vmatprep.subr.mxu0 0.0
    %356 = vmatpush1.msra.mxu0 0.0
    %357 = vmatprep.subr.mxu0 0.0
    %358 = vmatpush1.msra.mxu0 0.0
    %359 = vmatprep.subr.mxu0 0.0
    %360 = vmatpush1.msra.mxu0 0.0
    %361 = vmatprep.subr.mxu0 0.0
    %362 = vmatpush1.msra.mxu0 0.0
    %363 = vmatprep.subr.mxu0 0.0
    %364 = vmatpush1.msra.mxu0 0.0
    %365 = vmatprep.subr.mxu0 0.0
    %366 = vmatpush1.msra.mxu0 0.0
    %367 = vmatprep.subr.mxu0 0.0
    %368 = vmatpush1.msra.mxu0 0.0
    %369 = vmatprep.subr.mxu0 %v226
    %370 = vmatpush1.msra.mxu0 %v225
    %371 = vmatprep.subr.mxu0 %v222
    %372 = vmatpush1.msra.mxu0 %v221
    %373 = vmatprep.subr.mxu0 %v218
    %374 = vmatpush1.msra.mxu0 %v217
    %375 = vmatprep.subr.mxu0 %v214
    %376 = vmatpush1.msra.mxu0 %v213
    %377 = vmatprep.subr.mxu0 %v210
    %378 = vmatpush1.msra.mxu0 %v209
    %379 = vmatprep.subr.mxu0 %v206
    %380 = vmatpush1.msra.mxu0 %v205
    %381 = vmatprep.subr.mxu0 %v202
    %382 = vmatpush1.msra.mxu0 %v201
    %383 = vmatprep.subr.mxu0 %v198
    %384 = vmatpush1.msra.mxu0 %v197
    %385 = vmatprep.subr.mxu0 0.0
    %386 = vmatpush2.msra.mxu0 0.0
    %387 = vmatprep.subr.mxu0 0.0
    %388 = vmatpush2.msra.mxu0 0.0
    %389 = vmatprep.subr.mxu0 0.0
    %390 = vmatpush2.msra.mxu0 0.0
    %391 = vmatprep.subr.mxu0 0.0
    %392 = vmatpush2.msra.mxu0 0.0
    %393 = vmatprep.subr.mxu0 0.0
    %394 = vmatpush2.msra.mxu0 0.0
    %395 = vmatprep.subr.mxu0 0.0
    %396 = vmatpush2.msra.mxu0 0.0
    %397 = vmatprep.subr.mxu0 0.0
    %398 = vmatpush2.msra.mxu0 0.0
    %399 = vmatprep.subr.mxu0 0.0
    %400 = vmatpush2.msra.mxu0 0.0
    %401 = vmatprep.subr.mxu0 0.0
    %402 = vmatpush2.msra.mxu0 0.0
    %403 = vmatprep.subr.mxu0 0.0
    %404 = vmatpush2.msra.mxu0 0.0
    %405 = vmatprep.subr.mxu0 0.0
    %406 = vmatpush2.msra.mxu0 0.0
    %407 = vmatprep.subr.mxu0 0.0
    %408 = vmatpush2.msra.mxu0 0.0
    %409 = vmatprep.subr.mxu0 0.0
    %410 = vmatpush2.msra.mxu0 0.0
    %411 = vmatprep.subr.mxu0 0.0
    %412 = vmatpush2.msra.mxu0 0.0
    %413 = vmatprep.subr.mxu0 0.0
    %414 = vmatpush2.msra.mxu0 0.0
    %415 = vmatprep.subr.mxu0 0.0
    %416 = vmatpush2.msra.mxu0 0.0
    %417 = vmatprep.mubr.f32.mxu0 0.0
    %418 = vmatmul.mubr.f32.gmra.mxu0 %v280
    %v419 = vpop.f32.mrf.mxu0
    %v420 = vadd.f32 0.0, %v419
    %v421 = vpop.f32.mrf.mxu0
    %v422 = vadd.f32 0.0, %v421
    %423 = vdwg.mxu0
    %v425 = vsel %vm278, 0.0, 0
    %427 = vmatprep.subr.mxu0 0.0
    %428 = vmatpush1.msra.mxu0 0.0
    %429 = vmatprep.subr.mxu0 0.0
    %430 = vmatpush1.msra.mxu0 0.0
    %431 = vmatprep.subr.mxu0 0.0
    %432 = vmatpush1.msra.mxu0 0.0
    %433 = vmatprep.subr.mxu0 0.0
    %434 = vmatpush1.msra.mxu0 0.0
    %435 = vmatprep.subr.mxu0 0.0
    %436 = vmatpush1.msra.mxu0 0.0
    %437 = vmatprep.subr.mxu0 0.0
    %438 = vmatpush1.msra.mxu0 0.0
    %439 = vmatprep.subr.mxu0 0.0
    %440 = vmatpush1.msra.mxu0 0.0
    %441 = vmatprep.subr.mxu0 0.0
    %442 = vmatpush1.msra.mxu0 0.0
    %443 = vmatprep.subr.mxu0 %v242
    %444 = vmatpush1.msra.mxu0 %v241
    %445 = vmatprep.subr.mxu0 %v240
    %446 = vmatpush1.msra.mxu0 %v239
    %447 = vmatprep.subr.mxu0 %v238
    %448 = vmatpush1.msra.mxu0 %v237
    %449 = vmatprep.subr.mxu0 %v236
    %450 = vmatpush1.msra.mxu0 %v235
    %451 = vmatprep.subr.mxu0 %v234
    %452 = vmatpush1.msra.mxu0 %v233
    %453 = vmatprep.subr.mxu0 %v232
    %454 = vmatpush1.msra.mxu0 %v231
    %455 = vmatprep.subr.mxu0 %v230
    %456 = vmatpush1.msra.mxu0 %v229
    %457 = vmatprep.subr.mxu0 %v228
    %458 = vmatpush1.msra.mxu0 %v227
    %459 = vmatprep.subr.mxu0 0.0
    %460 = vmatpush2.msra.mxu0 0.0
    %461 = vmatprep.subr.mxu0 0.0
    %462 = vmatpush2.msra.mxu0 0.0
    %463 = vmatprep.subr.mxu0 0.0
    %464 = vmatpush2.msra.mxu0 0.0
    %465 = vmatprep.subr.mxu0 0.0
    %466 = vmatpush2.msra.mxu0 0.0
    %467 = vmatprep.subr.mxu0 0.0
    %468 = vmatpush2.msra.mxu0 0.0
    %469 = vmatprep.subr.mxu0 0.0
    %470 = vmatpush2.msra.mxu0 0.0
    %471 = vmatprep.subr.mxu0 0.0
    %472 = vmatpush2.msra.mxu0 0.0
    %473 = vmatprep.subr.mxu0 0.0
    %474 = vmatpush2.msra.mxu0 0.0
    %475 = vmatprep.subr.mxu0 0.0
    %476 = vmatpush2.msra.mxu0 0.0
    %477 = vmatprep.subr.mxu0 0.0
    %478 = vmatpush2.msra.mxu0 0.0
    %479 = vmatprep.subr.mxu0 0.0
    %480 = vmatpush2.msra.mxu0 0.0
    %481 = vmatprep.subr.mxu0 0.0
    %482 = vmatpush2.msra.mxu0 0.0
    %483 = vmatprep.subr.mxu0 0.0
    %484 = vmatpush2.msra.mxu0 0.0
    %485 = vmatprep.subr.mxu0 0.0
    %486 = vmatpush2.msra.mxu0 0.0
    %487 = vmatprep.subr.mxu0 0.0
    %488 = vmatpush2.msra.mxu0 0.0
    %489 = vmatprep.subr.mxu0 0.0
    %490 = vmatpush2.msra.mxu0 0.0
    %491 = vmatprep.mubr.f32.mxu0 0.0
    %492 = vmatmul.mubr.f32.gmra.mxu0 %v425
    %v493 = vpop.f32.mrf.mxu0
    %v494 = vadd.f32 0.0, %v493
    %v495 = vpop.f32.mrf.mxu0
    %v496 = vadd.f32 0.0, %v495
    %497 = vdwg.mxu0
    %v498 = vadd.f32 %v420, %v494
    %v499 = vadd.f32 %v422, %v496
    %v501 = vlaneseq
    %v502 = vshrl.u32 %v501, 7
    %v503 = vsub.s32 0, %v502
    %v504 = vrot.slane %v243, %v503
    %v505 = vlaneseq
    %v506 = vshrl.u32 %v505, 7
    %v507 = vsub.s32 1, %v506
    %v508 = vrot.slane %v243, %v507
    %v511 = vadd.f32 %v498, %v504
    %v512 = vadd.f32 %v499, %v508
    %v513 = vxor.u32 %v511, 2147483648
    %v514 = vxor.u32 %v512, 2147483648
    %v515 = vmul.f32 %v513, 1.442695
    %v516 = vpow.pop %v515
    %v517 = vmul.f32 %v514, 1.442695
    %v518 = vpow.pop %v517
    %v519 = vadd.f32 %v516, 1.0
    %v520 = vadd.f32 %v518, 1.0
    %v521 = vrcp.pop %v519
    %v522 = vmul.f32 1.0, %v521
    %v523 = vrcp.pop %v520
    %v524 = vmul.f32 1.0, %v523
    %v525 = vtanh.pop %v512
    %v526 = vmul.f32 %v522, 0.0
    %528 = vrot.lane.b32.xlu0 %v525, 64
    %v529 = vpop.permute.xlu0 %528
    %v531 = vmul.f32 %v522, %v529
    %533 = vrot.lane.b32.xlu0 %v531, 64
    %v534 = vpop.permute.xlu0 %533
    %v536 = vadd.f32 %v526, %v534
    %v537 = vtanh.pop %v536
    %539 = vrot.lane.b32.xlu0 %v537, 64
    %v540 = vpop.permute.xlu0 %539
    %v542 = vmul.f32 %v524, %v540
    %v543 = vld [vmem:[#allocation2] sm:$0xc]
    %v544 = vld [vmem:[#allocation2 + $0x8] sm:$0xc]
    %v547 = vrot.slane %v349, 6
    %v548 = vrot.slane %v351, 6
    %v551 = vadd.f32 %v543, %v547
    %v552 = vadd.f32 %v544, %v548
    %v553 = vxor.u32 %v551, 2147483648
    %v554 = vxor.u32 %v552, 2147483648
    %v555 = vmul.f32 %v553, 1.442695
    %v556 = vpow.pop %v555
    %v557 = vmul.f32 %v554, 1.442695
    %v558 = vpow.pop %v557
    %v559 = vadd.f32 %v556, 1.0
    %v560 = vadd.f32 %v558, 1.0
    %v561 = vrcp.pop %v559
    %v562 = vmul.f32 1.0, %v561
    %v563 = vrcp.pop %v560
    %v564 = vmul.f32 1.0, %v563
    %v565 = vtanh.pop %v552
    %v567 = vrot.slane %v271, 6
    %v569 = vmul.f32 %v562, %v567
    %571 = vrot.lane.b32.xlu0 %v565, 64
    %v572 = vpop.permute.xlu0 %571
    %v574 = vmul.f32 %v562, %v572
    %576 = vrot.lane.b32.xlu0 %v574, 64
    %v577 = vpop.permute.xlu0 %576
    %v579 = vadd.f32 %v569, %v577
    %v580 = vtanh.pop %v579
    %582 = vrot.lane.b32.xlu0 %v580, 64
    %v583 = vpop.permute.xlu0 %582
    %v585 = vmul.f32 %v564, %v583
    %v587 = vrot.slane %v585, 2
    %v588 = vsel %vm278, %v587, 0
    %590 = vmatprep.subr.mxu0 0.0
    %591 = vmatpush1.msra.mxu0 0.0
    %592 = vmatprep.subr.mxu0 0.0
    %593 = vmatpush1.msra.mxu0 0.0
    %594 = vmatprep.subr.mxu0 0.0
    %595 = vmatpush1.msra.mxu0 0.0
    %596 = vmatprep.subr.mxu0 0.0
    %597 = vmatpush1.msra.mxu0 0.0
    %598 = vmatprep.subr.mxu0 0.0
    %599 = vmatpush1.msra.mxu0 0.0
    %600 = vmatprep.subr.mxu0 0.0
    %601 = vmatpush1.msra.mxu0 0.0
    %602 = vmatprep.subr.mxu0 0.0
    %603 = vmatpush1.msra.mxu0 0.0
    %604 = vmatprep.subr.mxu0 0.0
    %605 = vmatpush1.msra.mxu0 0.0
    %606 = vmatprep.subr.mxu0 %v224
    %607 = vmatpush1.msra.mxu0 %v223
    %608 = vmatprep.subr.mxu0 %v220
    %609 = vmatpush1.msra.mxu0 %v219
    %610 = vmatprep.subr.mxu0 %v216
    %611 = vmatpush1.msra.mxu0 %v215
    %612 = vmatprep.subr.mxu0 %v212
    %613 = vmatpush1.msra.mxu0 %v211
    %614 = vmatprep.subr.mxu0 %v208
    %615 = vmatpush1.msra.mxu0 %v207
    %616 = vmatprep.subr.mxu0 %v204
    %617 = vmatpush1.msra.mxu0 %v203
    %618 = vmatprep.subr.mxu0 %v200
    %619 = vmatpush1.msra.mxu0 %v199
    %620 = vmatprep.subr.mxu0 %v196
    %621 = vmatpush1.msra.mxu0 %v195
    %622 = vmatprep.subr.mxu0 0.0
    %623 = vmatpush2.msra.mxu0 0.0
    %624 = vmatprep.subr.mxu0 0.0
    %625 = vmatpush2.msra.mxu0 0.0
    %626 = vmatprep.subr.mxu0 0.0
    %627 = vmatpush2.msra.mxu0 0.0
    %628 = vmatprep.subr.mxu0 0.0
    %629 = vmatpush2.msra.mxu0 0.0
    %630 = vmatprep.subr.mxu0 0.0
    %631 = vmatpush2.msra.mxu0 0.0
    %632 = vmatprep.subr.mxu0 0.0
    %633 = vmatpush2.msra.mxu0 0.0
    %634 = vmatprep.subr.mxu0 0.0
    %635 = vmatpush2.msra.mxu0 0.0
    %636 = vmatprep.subr.mxu0 0.0
    %637 = vmatpush2.msra.mxu0 0.0
    %638 = vmatprep.subr.mxu0 0.0
    %639 = vmatpush2.msra.mxu0 0.0
    %640 = vmatprep.subr.mxu0 0.0
    %641 = vmatpush2.msra.mxu0 0.0
    %642 = vmatprep.subr.mxu0 0.0
    %643 = vmatpush2.msra.mxu0 0.0
    %644 = vmatprep.subr.mxu0 0.0
    %645 = vmatpush2.msra.mxu0 0.0
    %646 = vmatprep.subr.mxu0 0.0
    %647 = vmatpush2.msra.mxu0 0.0
    %648 = vmatprep.subr.mxu0 0.0
    %649 = vmatpush2.msra.mxu0 0.0
    %650 = vmatprep.subr.mxu0 0.0
    %651 = vmatpush2.msra.mxu0 0.0
    %652 = vmatprep.subr.mxu0 0.0
    %653 = vmatpush2.msra.mxu0 0.0
    %654 = vmatprep.mubr.f32.mxu0 0.0
    %655 = vmatmul.mubr.f32.gmra.mxu0 %v588
    %v656 = vpop.f32.mrf.mxu0
    %v657 = vadd.f32 0.0, %v656
    %v658 = vpop.f32.mrf.mxu0
    %v659 = vadd.f32 0.0, %v658
    %660 = vdwg.mxu0
    %661 = vmatprep.subr.mxu0 0.0
    %662 = vmatpush1.msra.mxu0 0.0
    %663 = vmatprep.subr.mxu0 0.0
    %664 = vmatpush1.msra.mxu0 0.0
    %665 = vmatprep.subr.mxu0 0.0
    %666 = vmatpush1.msra.mxu0 0.0
    %667 = vmatprep.subr.mxu0 0.0
    %668 = vmatpush1.msra.mxu0 0.0
    %669 = vmatprep.subr.mxu0 0.0
    %670 = vmatpush1.msra.mxu0 0.0
    %671 = vmatprep.subr.mxu0 0.0
    %672 = vmatpush1.msra.mxu0 0.0
    %673 = vmatprep.subr.mxu0 0.0
    %674 = vmatpush1.msra.mxu0 0.0
    %675 = vmatprep.subr.mxu0 0.0
    %676 = vmatpush1.msra.mxu0 0.0
    %677 = vmatprep.subr.mxu0 %v226
    %678 = vmatpush1.msra.mxu0 %v225
    %679 = vmatprep.subr.mxu0 %v222
    %680 = vmatpush1.msra.mxu0 %v221
    %681 = vmatprep.subr.mxu0 %v218
    %682 = vmatpush1.msra.mxu0 %v217
    %683 = vmatprep.subr.mxu0 %v214
    %684 = vmatpush1.msra.mxu0 %v213
    %685 = vmatprep.subr.mxu0 %v210
    %686 = vmatpush1.msra.mxu0 %v209
    %687 = vmatprep.subr.mxu0 %v206
    %688 = vmatpush1.msra.mxu0 %v205
    %689 = vmatprep.subr.mxu0 %v202
    %690 = vmatpush1.msra.mxu0 %v201
    %691 = vmatprep.subr.mxu0 %v198
    %692 = vmatpush1.msra.mxu0 %v197
    %693 = vmatprep.subr.mxu0 0.0
    %694 = vmatpush2.msra.mxu0 0.0
    %695 = vmatprep.subr.mxu0 0.0
    %696 = vmatpush2.msra.mxu0 0.0
    %697 = vmatprep.subr.mxu0 0.0
    %698 = vmatpush2.msra.mxu0 0.0
    %699 = vmatprep.subr.mxu0 0.0
    %700 = vmatpush2.msra.mxu0 0.0
    %701 = vmatprep.subr.mxu0 0.0
    %702 = vmatpush2.msra.mxu0 0.0
    %703 = vmatprep.subr.mxu0 0.0
    %704 = vmatpush2.msra.mxu0 0.0
    %705 = vmatprep.subr.mxu0 0.0
    %706 = vmatpush2.msra.mxu0 0.0
    %707 = vmatprep.subr.mxu0 0.0
    %708 = vmatpush2.msra.mxu0 0.0
    %709 = vmatprep.subr.mxu0 0.0
    %710 = vmatpush2.msra.mxu0 0.0
    %711 = vmatprep.subr.mxu0 0.0
    %712 = vmatpush2.msra.mxu0 0.0
    %713 = vmatprep.subr.mxu0 0.0
    %714 = vmatpush2.msra.mxu0 0.0
    %715 = vmatprep.subr.mxu0 0.0
    %716 = vmatpush2.msra.mxu0 0.0
    %717 = vmatprep.subr.mxu0 0.0
    %718 = vmatpush2.msra.mxu0 0.0
    %719 = vmatprep.subr.mxu0 0.0
    %720 = vmatpush2.msra.mxu0 0.0
    %721 = vmatprep.subr.mxu0 0.0
    %722 = vmatpush2.msra.mxu0 0.0
    %723 = vmatprep.subr.mxu0 0.0
    %724 = vmatpush2.msra.mxu0 0.0
    %725 = vmatprep.mubr.f32.mxu0 0.0
    %726 = vmatmul.mubr.f32.gmra.mxu0 %v588
    %v727 = vpop.f32.mrf.mxu0
    %v728 = vadd.f32 0.0, %v727
    %v729 = vpop.f32.mrf.mxu0
    %v730 = vadd.f32 0.0, %v729
    %731 = vdwg.mxu0
    %v733 = vsel %vm278, %v542, 0
    %735 = vmatprep.subr.mxu0 0.0
    %736 = vmatpush1.msra.mxu0 0.0
    %737 = vmatprep.subr.mxu0 0.0
    %738 = vmatpush1.msra.mxu0 0.0
    %739 = vmatprep.subr.mxu0 0.0
    %740 = vmatpush1.msra.mxu0 0.0
    %741 = vmatprep.subr.mxu0 0.0
    %742 = vmatpush1.msra.mxu0 0.0
    %743 = vmatprep.subr.mxu0 0.0
    %744 = vmatpush1.msra.mxu0 0.0
    %745 = vmatprep.subr.mxu0 0.0
    %746 = vmatpush1.msra.mxu0 0.0
    %747 = vmatprep.subr.mxu0 0.0
    %748 = vmatpush1.msra.mxu0 0.0
    %749 = vmatprep.subr.mxu0 0.0
    %750 = vmatpush1.msra.mxu0 0.0
    %751 = vmatprep.subr.mxu0 %v242
    %752 = vmatpush1.msra.mxu0 %v241
    %753 = vmatprep.subr.mxu0 %v240
    %754 = vmatpush1.msra.mxu0 %v239
    %755 = vmatprep.subr.mxu0 %v238
    %756 = vmatpush1.msra.mxu0 %v237
    %757 = vmatprep.subr.mxu0 %v236
    %758 = vmatpush1.msra.mxu0 %v235
    %759 = vmatprep.subr.mxu0 %v234
    %760 = vmatpush1.msra.mxu0 %v233
    %761 = vmatprep.subr.mxu0 %v232
    %762 = vmatpush1.msra.mxu0 %v231
    %763 = vmatprep.subr.mxu0 %v230
    %764 = vmatpush1.msra.mxu0 %v229
    %765 = vmatprep.subr.mxu0 %v228
    %766 = vmatpush1.msra.mxu0 %v227
    %767 = vmatprep.subr.mxu0 0.0
    %768 = vmatpush2.msra.mxu0 0.0
    %769 = vmatprep.subr.mxu0 0.0
    %770 = vmatpush2.msra.mxu0 0.0
    %771 = vmatprep.subr.mxu0 0.0
    %772 = vmatpush2.msra.mxu0 0.0
    %773 = vmatprep.subr.mxu0 0.0
    %774 = vmatpush2.msra.mxu0 0.0
    %775 = vmatprep.subr.mxu0 0.0
    %776 = vmatpush2.msra.mxu0 0.0
    %777 = vmatprep.subr.mxu0 0.0
    %778 = vmatpush2.msra.mxu0 0.0
    %779 = vmatprep.subr.mxu0 0.0
    %780 = vmatpush2.msra.mxu0 0.0
    %781 = vmatprep.subr.mxu0 0.0
    %782 = vmatpush2.msra.mxu0 0.0
    %783 = vmatprep.subr.mxu0 0.0
    %784 = vmatpush2.msra.mxu0 0.0
    %785 = vmatprep.subr.mxu0 0.0
    %786 = vmatpush2.msra.mxu0 0.0
    %787 = vmatprep.subr.mxu0 0.0
    %788 = vmatpush2.msra.mxu0 0.0
    %789 = vmatprep.subr.mxu0 0.0
    %790 = vmatpush2.msra.mxu0 0.0
    %791 = vmatprep.subr.mxu0 0.0
    %792 = vmatpush2.msra.mxu0 0.0
    %793 = vmatprep.subr.mxu0 0.0
    %794 = vmatpush2.msra.mxu0 0.0
    %795 = vmatprep.subr.mxu0 0.0
    %796 = vmatpush2.msra.mxu0 0.0
    %797 = vmatprep.subr.mxu0 0.0
    %798 = vmatpush2.msra.mxu0 0.0
    %799 = vmatprep.mubr.f32.mxu0 0.0
    %800 = vmatmul.mubr.f32.gmra.mxu0 %v733
    %v801 = vpop.f32.mrf.mxu0
    %v802 = vadd.f32 0.0, %v801
    %v803 = vpop.f32.mrf.mxu0
    %v804 = vadd.f32 0.0, %v803
    %805 = vdwg.mxu0
    %v806 = vadd.f32 %v728, %v802
    %v807 = vadd.f32 %v730, %v804
    %v808 = vadd.f32 %v806, %v504
    %v809 = vadd.f32 %v807, %v508
    %v810 = vxor.u32 %v808, 2147483648
    %v811 = vxor.u32 %v809, 2147483648
    %v812 = vmul.f32 %v810, 1.442695
    %v813 = vpow.pop %v812
    %v814 = vmul.f32 %v811, 1.442695
    %v815 = vpow.pop %v814
    %v816 = vadd.f32 %v813, 1.0
    %v817 = vadd.f32 %v815, 1.0
    %v818 = vrcp.pop %v816
    %v819 = vmul.f32 1.0, %v818
    %v820 = vrcp.pop %v817
    %v821 = vmul.f32 1.0, %v820
    %v822 = vtanh.pop %v809
    %v823 = vmul.f32 %v819, %v536
    %825 = vrot.lane.b32.xlu0 %v822, 64
    %v826 = vpop.permute.xlu0 %825
    %v828 = vmul.f32 %v819, %v826
    %830 = vrot.lane.b32.xlu0 %v828, 64
    %v831 = vpop.permute.xlu0 %830
    %v833 = vadd.f32 %v823, %v831
    %v834 = vtanh.pop %v833
    %836 = vrot.lane.b32.xlu0 %v834, 64
    %v837 = vpop.permute.xlu0 %836
    %v839 = vmul.f32 %v821, %v837
    %v840 = vld [vmem:[#allocation2] sm:$0x30]
    %v841 = vld [vmem:[#allocation2 + $0x8] sm:$0x30]
    %v844 = vrot.slane %v657, 4
    %v845 = vrot.slane %v659, 4
    %v848 = vadd.f32 %v840, %v844
    %v849 = vadd.f32 %v841, %v845
    %v850 = vxor.u32 %v848, 2147483648
    %v851 = vxor.u32 %v849, 2147483648
    %v852 = vmul.f32 %v850, 1.442695
    %v853 = vpow.pop %v852
    %v854 = vmul.f32 %v851, 1.442695
    %v855 = vpow.pop %v854
    %v856 = vadd.f32 %v853, 1.0
    %v857 = vadd.f32 %v855, 1.0
    %v858 = vrcp.pop %v856
    %v859 = vmul.f32 1.0, %v858
    %v860 = vrcp.pop %v857
    %v861 = vmul.f32 1.0, %v860
    %v862 = vtanh.pop %v849
    %v864 = vrot.slane %v579, 6
    %v866 = vmul.f32 %v859, %v864
    %868 = vrot.lane.b32.xlu0 %v862, 64
    %v869 = vpop.permute.xlu0 %868
    %v871 = vmul.f32 %v859, %v869
    %873 = vrot.lane.b32.xlu0 %v871, 64
    %v874 = vpop.permute.xlu0 %873
    %v876 = vadd.f32 %v866, %v874
    %v877 = vtanh.pop %v876
    %879 = vrot.lane.b32.xlu0 %v877, 64
    %v880 = vpop.permute.xlu0 %879
    %v882 = vmul.f32 %v861, %v880
    %v884 = vrot.slane %v882, 4
    %v885 = vsel %vm278, %v884, 0
    %887 = vmatprep.subr.mxu0 0.0
    %888 = vmatpush1.msra.mxu0 0.0
    %889 = vmatprep.subr.mxu0 0.0
    %890 = vmatpush1.msra.mxu0 0.0
    %891 = vmatprep.subr.mxu0 0.0
    %892 = vmatpush1.msra.mxu0 0.0
    %893 = vmatprep.subr.mxu0 0.0
    %894 = vmatpush1.msra.mxu0 0.0
    %895 = vmatprep.subr.mxu0 0.0
    %896 = vmatpush1.msra.mxu0 0.0
    %897 = vmatprep.subr.mxu0 0.0
    %898 = vmatpush1.msra.mxu0 0.0
    %899 = vmatprep.subr.mxu0 0.0
    %900 = vmatpush1.msra.mxu0 0.0
    %901 = vmatprep.subr.mxu0 0.0
    %902 = vmatpush1.msra.mxu0 0.0
    %903 = vmatprep.subr.mxu0 %v224
    %904 = vmatpush1.msra.mxu0 %v223
    %905 = vmatprep.subr.mxu0 %v220
    %906 = vmatpush1.msra.mxu0 %v219
    %907 = vmatprep.subr.mxu0 %v216
    %908 = vmatpush1.msra.mxu0 %v215
    %909 = vmatprep.subr.mxu0 %v212
    %910 = vmatpush1.msra.mxu0 %v211
    %911 = vmatprep.subr.mxu0 %v208
    %912 = vmatpush1.msra.mxu0 %v207
    %913 = vmatprep.subr.mxu0 %v204
    %914 = vmatpush1.msra.mxu0 %v203
    %915 = vmatprep.subr.mxu0 %v200
    %916 = vmatpush1.msra.mxu0 %v199
    %917 = vmatprep.subr.mxu0 %v196
    %918 = vmatpush1.msra.mxu0 %v195
    %919 = vmatprep.subr.mxu0 0.0
    %920 = vmatpush2.msra.mxu0 0.0
    %921 = vmatprep.subr.mxu0 0.0
    %922 = vmatpush2.msra.mxu0 0.0
    %923 = vmatprep.subr.mxu0 0.0
    %924 = vmatpush2.msra.mxu0 0.0
    %925 = vmatprep.subr.mxu0 0.0
    %926 = vmatpush2.msra.mxu0 0.0
    %927 = vmatprep.subr.mxu0 0.0
    %928 = vmatpush2.msra.mxu0 0.0
    %929 = vmatprep.subr.mxu0 0.0
    %930 = vmatpush2.msra.mxu0 0.0
    %931 = vmatprep.subr.mxu0 0.0
    %932 = vmatpush2.msra.mxu0 0.0
    %933 = vmatprep.subr.mxu0 0.0
    %934 = vmatpush2.msra.mxu0 0.0
    %935 = vmatprep.subr.mxu0 0.0
    %936 = vmatpush2.msra.mxu0 0.0
    %937 = vmatprep.subr.mxu0 0.0
    %938 = vmatpush2.msra.mxu0 0.0
    %939 = vmatprep.subr.mxu0 0.0
    %940 = vmatpush2.msra.mxu0 0.0
    %941 = vmatprep.subr.mxu0 0.0
    %942 = vmatpush2.msra.mxu0 0.0
    %943 = vmatprep.subr.mxu0 0.0
    %944 = vmatpush2.msra.mxu0 0.0
    %945 = vmatprep.subr.mxu0 0.0
    %946 = vmatpush2.msra.mxu0 0.0
    %947 = vmatprep.subr.mxu0 0.0
    %948 = vmatpush2.msra.mxu0 0.0
    %949 = vmatprep.subr.mxu0 0.0
    %950 = vmatpush2.msra.mxu0 0.0
    %951 = vmatprep.mubr.f32.mxu0 0.0
    %952 = vmatmul.mubr.f32.gmra.mxu0 %v885
    %v953 = vpop.f32.mrf.mxu0
    %v954 = vadd.f32 0.0, %v953
    %v955 = vpop.f32.mrf.mxu0
    %v956 = vadd.f32 0.0, %v955
    %957 = vdwg.mxu0
    %958 = vmatprep.subr.mxu0 0.0
    %959 = vmatpush1.msra.mxu0 0.0
    %960 = vmatprep.subr.mxu0 0.0
    %961 = vmatpush1.msra.mxu0 0.0
    %962 = vmatprep.subr.mxu0 0.0
    %963 = vmatpush1.msra.mxu0 0.0
    %964 = vmatprep.subr.mxu0 0.0
    %965 = vmatpush1.msra.mxu0 0.0
    %966 = vmatprep.subr.mxu0 0.0
    %967 = vmatpush1.msra.mxu0 0.0
    %968 = vmatprep.subr.mxu0 0.0
    %969 = vmatpush1.msra.mxu0 0.0
    %970 = vmatprep.subr.mxu0 0.0
    %971 = vmatpush1.msra.mxu0 0.0
    %972 = vmatprep.subr.mxu0 0.0
    %973 = vmatpush1.msra.mxu0 0.0
    %974 = vmatprep.subr.mxu0 %v226
    %975 = vmatpush1.msra.mxu0 %v225
    %976 = vmatprep.subr.mxu0 %v222
    %977 = vmatpush1.msra.mxu0 %v221
    %978 = vmatprep.subr.mxu0 %v218
    %979 = vmatpush1.msra.mxu0 %v217
    %980 = vmatprep.subr.mxu0 %v214
    %981 = vmatpush1.msra.mxu0 %v213
    %982 = vmatprep.subr.mxu0 %v210
    %983 = vmatpush1.msra.mxu0 %v209
    %984 = vmatprep.subr.mxu0 %v206
    %985 = vmatpush1.msra.mxu0 %v205
    %986 = vmatprep.subr.mxu0 %v202
    %987 = vmatpush1.msra.mxu0 %v201
    %988 = vmatprep.subr.mxu0 %v198
    %989 = vmatpush1.msra.mxu0 %v197
    %990 = vmatprep.subr.mxu0 0.0
    %991 = vmatpush2.msra.mxu0 0.0
    %992 = vmatprep.subr.mxu0 0.0
    %993 = vmatpush2.msra.mxu0 0.0
    %994 = vmatprep.subr.mxu0 0.0
    %995 = vmatpush2.msra.mxu0 0.0
    %996 = vmatprep.subr.mxu0 0.0
    %997 = vmatpush2.msra.mxu0 0.0
    %998 = vmatprep.subr.mxu0 0.0
    %999 = vmatpush2.msra.mxu0 0.0
    %1000 = vmatprep.subr.mxu0 0.0
    %1001 = vmatpush2.msra.mxu0 0.0
    %1002 = vmatprep.subr.mxu0 0.0
    %1003 = vmatpush2.msra.mxu0 0.0
    %1004 = vmatprep.subr.mxu0 0.0
    %1005 = vmatpush2.msra.mxu0 0.0
    %1006 = vmatprep.subr.mxu0 0.0
    %1007 = vmatpush2.msra.mxu0 0.0
    %1008 = vmatprep.subr.mxu0 0.0
    %1009 = vmatpush2.msra.mxu0 0.0
    %1010 = vmatprep.subr.mxu0 0.0
    %1011 = vmatpush2.msra.mxu0 0.0
    %1012 = vmatprep.subr.mxu0 0.0
    %1013 = vmatpush2.msra.mxu0 0.0
    %1014 = vmatprep.subr.mxu0 0.0
    %1015 = vmatpush2.msra.mxu0 0.0
    %1016 = vmatprep.subr.mxu0 0.0
    %1017 = vmatpush2.msra.mxu0 0.0
    %1018 = vmatprep.subr.mxu0 0.0
    %1019 = vmatpush2.msra.mxu0 0.0
    %1020 = vmatprep.subr.mxu0 0.0
    %1021 = vmatpush2.msra.mxu0 0.0
    %1022 = vmatprep.mubr.f32.mxu0 0.0
    %1023 = vmatmul.mubr.f32.gmra.mxu0 %v885
    %v1024 = vpop.f32.mrf.mxu0
    %v1025 = vadd.f32 0.0, %v1024
    %v1026 = vpop.f32.mrf.mxu0
    %v1027 = vadd.f32 0.0, %v1026
    %1028 = vdwg.mxu0
    %v1030 = vsel %vm278, %v839, 0
    %1032 = vmatprep.subr.mxu0 0.0
    %1033 = vmatpush1.msra.mxu0 0.0
    %1034 = vmatprep.subr.mxu0 0.0
    %1035 = vmatpush1.msra.mxu0 0.0
    %1036 = vmatprep.subr.mxu0 0.0
    %1037 = vmatpush1.msra.mxu0 0.0
    %1038 = vmatprep.subr.mxu0 0.0
    %1039 = vmatpush1.msra.mxu0 0.0
    %1040 = vmatprep.subr.mxu0 0.0
    %1041 = vmatpush1.msra.mxu0 0.0
    %1042 = vmatprep.subr.mxu0 0.0
    %1043 = vmatpush1.msra.mxu0 0.0
    %1044 = vmatprep.subr.mxu0 0.0
    %1045 = vmatpush1.msra.mxu0 0.0
    %1046 = vmatprep.subr.mxu0 0.0
    %1047 = vmatpush1.msra.mxu0 0.0
    %1048 = vmatprep.subr.mxu0 %v242
    %1049 = vmatpush1.msra.mxu0 %v241
    %1050 = vmatprep.subr.mxu0 %v240
    %1051 = vmatpush1.msra.mxu0 %v239
    %1052 = vmatprep.subr.mxu0 %v238
    %1053 = vmatpush1.msra.mxu0 %v237
    %1054 = vmatprep.subr.mxu0 %v236
    %1055 = vmatpush1.msra.mxu0 %v235
    %1056 = vmatprep.subr.mxu0 %v234
    %1057 = vmatpush1.msra.mxu0 %v233
    %1058 = vmatprep.subr.mxu0 %v232
    %1059 = vmatpush1.msra.mxu0 %v231
    %1060 = vmatprep.subr.mxu0 %v230
    %1061 = vmatpush1.msra.mxu0 %v229
    %1062 = vmatprep.subr.mxu0 %v228
    %1063 = vmatpush1.msra.mxu0 %v227
    %1064 = vmatprep.subr.mxu0 0.0
    %1065 = vmatpush2.msra.mxu0 0.0
    %1066 = vmatprep.subr.mxu0 0.0
    %1067 = vmatpush2.msra.mxu0 0.0
    %1068 = vmatprep.subr.mxu0 0.0
    %1069 = vmatpush2.msra.mxu0 0.0
    %1070 = vmatprep.subr.mxu0 0.0
    %1071 = vmatpush2.msra.mxu0 0.0
    %1072 = vmatprep.subr.mxu0 0.0
    %1073 = vmatpush2.msra.mxu0 0.0
    %1074 = vmatprep.subr.mxu0 0.0
    %1075 = vmatpush2.msra.mxu0 0.0
    %1076 = vmatprep.subr.mxu0 0.0
    %1077 = vmatpush2.msra.mxu0 0.0
    %1078 = vmatprep.subr.mxu0 0.0
    %1079 = vmatpush2.msra.mxu0 0.0
    %1080 = vmatprep.subr.mxu0 0.0
    %1081 = vmatpush2.msra.mxu0 0.0
    %1082 = vmatprep.subr.mxu0 0.0
    %1083 = vmatpush2.msra.mxu0 0.0
    %1084 = vmatprep.subr.mxu0 0.0
    %1085 = vmatpush2.msra.mxu0 0.0
    %1086 = vmatprep.subr.mxu0 0.0
    %1087 = vmatpush2.msra.mxu0 0.0
    %1088 = vmatprep.subr.mxu0 0.0
    %1089 = vmatpush2.msra.mxu0 0.0
    %1090 = vmatprep.subr.mxu0 0.0
    %1091 = vmatpush2.msra.mxu0 0.0
    %1092 = vmatprep.subr.mxu0 0.0
    %1093 = vmatpush2.msra.mxu0 0.0
    %1094 = vmatprep.subr.mxu0 0.0
    %1095 = vmatpush2.msra.mxu0 0.0
    %1096 = vmatprep.mubr.f32.mxu0 0.0
    %1097 = vmatmul.mubr.f32.gmra.mxu0 %v1030
    %v1098 = vpop.f32.mrf.mxu0
    %v1099 = vadd.f32 0.0, %v1098
    %v1100 = vpop.f32.mrf.mxu0
    %v1101 = vadd.f32 0.0, %v1100
    %1102 = vdwg.mxu0
    %v1103 = vadd.f32 %v1025, %v1099
    %v1104 = vadd.f32 %v1027, %v1101
    %v1105 = vadd.f32 %v1103, %v504
    %v1106 = vadd.f32 %v1104, %v508
    %v1107 = vxor.u32 %v1105, 2147483648
    %v1108 = vxor.u32 %v1106, 2147483648
    %v1109 = vmul.f32 %v1107, 1.442695
    %v1110 = vpow.pop %v1109
    %v1111 = vmul.f32 %v1108, 1.442695
    %v1112 = vpow.pop %v1111
    %v1113 = vadd.f32 %v1110, 1.0
    %v1114 = vadd.f32 %v1112, 1.0
    %v1115 = vrcp.pop %v1113
    %v1116 = vmul.f32 1.0, %v1115
    %v1117 = vrcp.pop %v1114
    %v1118 = vmul.f32 1.0, %v1117
    %v1119 = vtanh.pop %v1106
    %v1120 = vmul.f32 %v1116, %v833
    %1122 = vrot.lane.b32.xlu0 %v1119, 64
    %v1123 = vpop.permute.xlu0 %1122
    %v1125 = vmul.f32 %v1116, %v1123
    %1127 = vrot.lane.b32.xlu0 %v1125, 64
    %v1128 = vpop.permute.xlu0 %1127
    %v1130 = vadd.f32 %v1120, %v1128
    %v1131 = vtanh.pop %v1130
    %1133 = vrot.lane.b32.xlu0 %v1131, 64
    %v1134 = vpop.permute.xlu0 %1133
    %v1136 = vmul.f32 %v1118, %v1134
    %v1137 = vld [vmem:[#allocation2] sm:$0xc0]
    %v1138 = vld [vmem:[#allocation2 + $0x8] sm:$0xc0]
    %v1141 = vrot.slane %v954, 2
    %v1142 = vrot.slane %v956, 2
    %v1145 = vadd.f32 %v1137, %v1141
    %v1146 = vadd.f32 %v1138, %v1142
    %v1147 = vxor.u32 %v1145, 2147483648
    %v1148 = vxor.u32 %v1146, 2147483648
    %v1149 = vmul.f32 %v1147, 1.442695
    %v1150 = vpow.pop %v1149
    %v1151 = vmul.f32 %v1148, 1.442695
    %v1152 = vpow.pop %v1151
    %v1153 = vadd.f32 %v1150, 1.0
    %v1154 = vadd.f32 %v1152, 1.0
    %v1155 = vrcp.pop %v1153
    %v1156 = vmul.f32 1.0, %v1155
    %v1157 = vrcp.pop %v1154
    %v1158 = vmul.f32 1.0, %v1157
    %v1159 = vtanh.pop %v1146
    %v1161 = vrot.slane %v876, 6
    %v1163 = vmul.f32 %v1156, %v1161
    %1165 = vrot.lane.b32.xlu0 %v1159, 64
    %v1166 = vpop.permute.xlu0 %1165
    %v1168 = vmul.f32 %v1156, %v1166
    %1170 = vrot.lane.b32.xlu0 %v1168, 64
    %v1171 = vpop.permute.xlu0 %1170
    %v1173 = vadd.f32 %v1163, %v1171
    %v1174 = vtanh.pop %v1173
    %1176 = vrot.lane.b32.xlu0 %v1174, 64
    %v1177 = vpop.permute.xlu0 %1176
    %v1179 = vmul.f32 %v1158, %v1177
    %v1181 = vrot.slane %v1179, 6
    %v1182 = vsel %vm278, %v1181, 0
    %1184 = vmatprep.subr.mxu0 0.0
    %1185 = vmatpush1.msra.mxu0 0.0
    %1186 = vmatprep.subr.mxu0 0.0
    %1187 = vmatpush1.msra.mxu0 0.0
    %1188 = vmatprep.subr.mxu0 0.0
    %1189 = vmatpush1.msra.mxu0 0.0
    %1190 = vmatprep.subr.mxu0 0.0
    %1191 = vmatpush1.msra.mxu0 0.0
    %1192 = vmatprep.subr.mxu0 0.0
    %1193 = vmatpush1.msra.mxu0 0.0
    %1194 = vmatprep.subr.mxu0 0.0
    %1195 = vmatpush1.msra.mxu0 0.0
    %1196 = vmatprep.subr.mxu0 0.0
    %1197 = vmatpush1.msra.mxu0 0.0
    %1198 = vmatprep.subr.mxu0 0.0
    %1199 = vmatpush1.msra.mxu0 0.0
    %1200 = vmatprep.subr.mxu0 %v224
    %1201 = vmatpush1.msra.mxu0 %v223
    %1202 = vmatprep.subr.mxu0 %v220
    %1203 = vmatpush1.msra.mxu0 %v219
    %1204 = vmatprep.subr.mxu0 %v216
    %1205 = vmatpush1.msra.mxu0 %v215
    %1206 = vmatprep.subr.mxu0 %v212
    %1207 = vmatpush1.msra.mxu0 %v211
    %1208 = vmatprep.subr.mxu0 %v208
    %1209 = vmatpush1.msra.mxu0 %v207
    %1210 = vmatprep.subr.mxu0 %v204
    %1211 = vmatpush1.msra.mxu0 %v203
    %1212 = vmatprep.subr.mxu0 %v200
    %1213 = vmatpush1.msra.mxu0 %v199
    %1214 = vmatprep.subr.mxu0 %v196
    %1215 = vmatpush1.msra.mxu0 %v195
    %1216 = vmatprep.subr.mxu0 0.0
    %1217 = vmatpush2.msra.mxu0 0.0
    %1218 = vmatprep.subr.mxu0 0.0
    %1219 = vmatpush2.msra.mxu0 0.0
    %1220 = vmatprep.subr.mxu0 0.0
    %1221 = vmatpush2.msra.mxu0 0.0
    %1222 = vmatprep.subr.mxu0 0.0
    %1223 = vmatpush2.msra.mxu0 0.0
    %1224 = vmatprep.subr.mxu0 0.0
    %1225 = vmatpush2.msra.mxu0 0.0
    %1226 = vmatprep.subr.mxu0 0.0
    %1227 = vmatpush2.msra.mxu0 0.0
    %1228 = vmatprep.subr.mxu0 0.0
    %1229 = vmatpush2.msra.mxu0 0.0
    %1230 = vmatprep.subr.mxu0 0.0
    %1231 = vmatpush2.msra.mxu0 0.0
    %1232 = vmatprep.subr.mxu0 0.0
    %1233 = vmatpush2.msra.mxu0 0.0
    %1234 = vmatprep.subr.mxu0 0.0
    %1235 = vmatpush2.msra.mxu0 0.0
    %1236 = vmatprep.subr.mxu0 0.0
    %1237 = vmatpush2.msra.mxu0 0.0
    %1238 = vmatprep.subr.mxu0 0.0
    %1239 = vmatpush2.msra.mxu0 0.0
    %1240 = vmatprep.subr.mxu0 0.0
    %1241 = vmatpush2.msra.mxu0 0.0
    %1242 = vmatprep.subr.mxu0 0.0
    %1243 = vmatpush2.msra.mxu0 0.0
    %1244 = vmatprep.subr.mxu0 0.0
    %1245 = vmatpush2.msra.mxu0 0.0
    %1246 = vmatprep.subr.mxu0 0.0
    %1247 = vmatpush2.msra.mxu0 0.0
    %1248 = vmatprep.mubr.f32.mxu0 0.0
    %1249 = vmatmul.mubr.f32.gmra.mxu0 %v1182
    %v1250 = vpop.f32.mrf.mxu0
    %v1251 = vadd.f32 0.0, %v1250
    %v1252 = vpop.f32.mrf.mxu0
    %v1253 = vadd.f32 0.0, %v1252
    %1254 = vdwg.mxu0
    %1255 = vmatprep.subr.mxu0 0.0
    %1256 = vmatpush1.msra.mxu0 0.0
    %1257 = vmatprep.subr.mxu0 0.0
    %1258 = vmatpush1.msra.mxu0 0.0
    %1259 = vmatprep.subr.mxu0 0.0
    %1260 = vmatpush1.msra.mxu0 0.0
    %1261 = vmatprep.subr.mxu0 0.0
    %1262 = vmatpush1.msra.mxu0 0.0
    %1263 = vmatprep.subr.mxu0 0.0
    %1264 = vmatpush1.msra.mxu0 0.0
    %1265 = vmatprep.subr.mxu0 0.0
    %1266 = vmatpush1.msra.mxu0 0.0
    %1267 = vmatprep.subr.mxu0 0.0
    %1268 = vmatpush1.msra.mxu0 0.0
    %1269 = vmatprep.subr.mxu0 0.0
    %1270 = vmatpush1.msra.mxu0 0.0
    %1271 = vmatprep.subr.mxu0 %v226
    %1272 = vmatpush1.msra.mxu0 %v225
    %1273 = vmatprep.subr.mxu0 %v222
    %1274 = vmatpush1.msra.mxu0 %v221
    %1275 = vmatprep.subr.mxu0 %v218
    %1276 = vmatpush1.msra.mxu0 %v217
    %1277 = vmatprep.subr.mxu0 %v214
    %1278 = vmatpush1.msra.mxu0 %v213
    %1279 = vmatprep.subr.mxu0 %v210
    %1280 = vmatpush1.msra.mxu0 %v209
    %1281 = vmatprep.subr.mxu0 %v206
    %1282 = vmatpush1.msra.mxu0 %v205
    %1283 = vmatprep.subr.mxu0 %v202
    %1284 = vmatpush1.msra.mxu0 %v201
    %1285 = vmatprep.subr.mxu0 %v198
    %1286 = vmatpush1.msra.mxu0 %v197
    %1287 = vmatprep.subr.mxu0 0.0
    %1288 = vmatpush2.msra.mxu0 0.0
    %1289 = vmatprep.subr.mxu0 0.0
    %1290 = vmatpush2.msra.mxu0 0.0
    %1291 = vmatprep.subr.mxu0 0.0
    %1292 = vmatpush2.msra.mxu0 0.0
    %1293 = vmatprep.subr.mxu0 0.0
    %1294 = vmatpush2.msra.mxu0 0.0
    %1295 = vmatprep.subr.mxu0 0.0
    %1296 = vmatpush2.msra.mxu0 0.0
    %1297 = vmatprep.subr.mxu0 0.0
    %1298 = vmatpush2.msra.mxu0 0.0
    %1299 = vmatprep.subr.mxu0 0.0
    %1300 = vmatpush2.msra.mxu0 0.0
    %1301 = vmatprep.subr.mxu0 0.0
    %1302 = vmatpush2.msra.mxu0 0.0
    %1303 = vmatprep.subr.mxu0 0.0
    %1304 = vmatpush2.msra.mxu0 0.0
    %1305 = vmatprep.subr.mxu0 0.0
    %1306 = vmatpush2.msra.mxu0 0.0
    %1307 = vmatprep.subr.mxu0 0.0
    %1308 = vmatpush2.msra.mxu0 0.0
    %1309 = vmatprep.subr.mxu0 0.0
    %1310 = vmatpush2.msra.mxu0 0.0
    %1311 = vmatprep.subr.mxu0 0.0
    %1312 = vmatpush2.msra.mxu0 0.0
    %1313 = vmatprep.subr.mxu0 0.0
    %1314 = vmatpush2.msra.mxu0 0.0
    %1315 = vmatprep.subr.mxu0 0.0
    %1316 = vmatpush2.msra.mxu0 0.0
    %1317 = vmatprep.subr.mxu0 0.0
    %1318 = vmatpush2.msra.mxu0 0.0
    %1319 = vmatprep.mubr.f32.mxu0 0.0
    %1320 = vmatmul.mubr.f32.gmra.mxu0 %v1182
    %v1321 = vpop.f32.mrf.mxu0
    %v1322 = vadd.f32 0.0, %v1321
    %v1323 = vpop.f32.mrf.mxu0
    %v1324 = vadd.f32 0.0, %v1323
    %1325 = vdwg.mxu0
    %v1327 = vsel %vm278, %v1136, 0
    %1329 = vmatprep.subr.mxu0 0.0
    %1330 = vmatpush1.msra.mxu0 0.0
    %1331 = vmatprep.subr.mxu0 0.0
    %1332 = vmatpush1.msra.mxu0 0.0
    %1333 = vmatprep.subr.mxu0 0.0
    %1334 = vmatpush1.msra.mxu0 0.0
    %1335 = vmatprep.subr.mxu0 0.0
    %1336 = vmatpush1.msra.mxu0 0.0
    %1337 = vmatprep.subr.mxu0 0.0
    %1338 = vmatpush1.msra.mxu0 0.0
    %1339 = vmatprep.subr.mxu0 0.0
    %1340 = vmatpush1.msra.mxu0 0.0
    %1341 = vmatprep.subr.mxu0 0.0
    %1342 = vmatpush1.msra.mxu0 0.0
    %1343 = vmatprep.subr.mxu0 0.0
    %1344 = vmatpush1.msra.mxu0 0.0
    %1345 = vmatprep.subr.mxu0 %v242
    %1346 = vmatpush1.msra.mxu0 %v241
    %1347 = vmatprep.subr.mxu0 %v240
    %1348 = vmatpush1.msra.mxu0 %v239
    %1349 = vmatprep.subr.mxu0 %v238
    %1350 = vmatpush1.msra.mxu0 %v237
    %1351 = vmatprep.subr.mxu0 %v236
    %1352 = vmatpush1.msra.mxu0 %v235
    %1353 = vmatprep.subr.mxu0 %v234
    %1354 = vmatpush1.msra.mxu0 %v233
    %1355 = vmatprep.subr.mxu0 %v232
    %1356 = vmatpush1.msra.mxu0 %v231
    %1357 = vmatprep.subr.mxu0 %v230
    %1358 = vmatpush1.msra.mxu0 %v229
    %1359 = vmatprep.subr.mxu0 %v228
    %1360 = vmatpush1.msra.mxu0 %v227
    %1361 = vmatprep.subr.mxu0 0.0
    %1362 = vmatpush2.msra.mxu0 0.0
    %1363 = vmatprep.subr.mxu0 0.0
    %1364 = vmatpush2.msra.mxu0 0.0
    %1365 = vmatprep.subr.mxu0 0.0
    %1366 = vmatpush2.msra.mxu0 0.0
    %1367 = vmatprep.subr.mxu0 0.0
    %1368 = vmatpush2.msra.mxu0 0.0
    %1369 = vmatprep.subr.mxu0 0.0
    %1370 = vmatpush2.msra.mxu0 0.0
    %1371 = vmatprep.subr.mxu0 0.0
    %1372 = vmatpush2.msra.mxu0 0.0
    %1373 = vmatprep.subr.mxu0 0.0
    %1374 = vmatpush2.msra.mxu0 0.0
    %1375 = vmatprep.subr.mxu0 0.0
    %1376 = vmatpush2.msra.mxu0 0.0
    %1377 = vmatprep.subr.mxu0 0.0
    %1378 = vmatpush2.msra.mxu0 0.0
    %1379 = vmatprep.subr.mxu0 0.0
    %1380 = vmatpush2.msra.mxu0 0.0
    %1381 = vmatprep.subr.mxu0 0.0
    %1382 = vmatpush2.msra.mxu0 0.0
    %1383 = vmatprep.subr.mxu0 0.0
    %1384 = vmatpush2.msra.mxu0 0.0
    %1385 = vmatprep.subr.mxu0 0.0
    %1386 = vmatpush2.msra.mxu0 0.0
    %1387 = vmatprep.subr.mxu0 0.0
    %1388 = vmatpush2.msra.mxu0 0.0
    %1389 = vmatprep.subr.mxu0 0.0
    %1390 = vmatpush2.msra.mxu0 0.0
    %1391 = vmatprep.subr.mxu0 0.0
    %1392 = vmatpush2.msra.mxu0 0.0
    %1393 = vmatprep.mubr.f32.mxu0 0.0
    %1394 = vmatmul.mubr.f32.gmra.mxu0 %v1327
    %v1395 = vpop.f32.mrf.mxu0
    %v1396 = vadd.f32 0.0, %v1395
    %v1397 = vpop.f32.mrf.mxu0
    %v1398 = vadd.f32 0.0, %v1397
    %1399 = vdwg.mxu0
    %v1400 = vadd.f32 %v1322, %v1396
    %v1401 = vadd.f32 %v1324, %v1398
    %v1402 = vadd.f32 %v1400, %v504
    %v1403 = vadd.f32 %v1401, %v508
    %v1404 = vxor.u32 %v1402, 2147483648
    %v1405 = vxor.u32 %v1403, 2147483648
    %v1406 = vmul.f32 %v1404, 1.442695
    %v1407 = vpow.pop %v1406
    %v1408 = vmul.f32 %v1405, 1.442695
    %v1409 = vpow.pop %v1408
    %v1410 = vadd.f32 %v1407, 1.0
    %v1411 = vadd.f32 %v1409, 1.0
    %v1412 = vrcp.pop %v1410
    %v1413 = vmul.f32 1.0, %v1412
    %v1414 = vrcp.pop %v1411
    %v1415 = vmul.f32 1.0, %v1414
    %v1416 = vtanh.pop %v1403
    %v1417 = vmul.f32 %v1413, %v1130
    %1419 = vrot.lane.b32.xlu0 %v1416, 64
    %v1420 = vpop.permute.xlu0 %1419
    %v1422 = vmul.f32 %v1413, %v1420
    %1424 = vrot.lane.b32.xlu0 %v1422, 64
    %v1425 = vpop.permute.xlu0 %1424
    %v1427 = vadd.f32 %v1417, %v1425
    %v1428 = vtanh.pop %v1427
    %1430 = vrot.lane.b32.xlu0 %v1428, 64
    %v1431 = vpop.permute.xlu0 %1430
    %v1433 = vmul.f32 %v1415, %v1431
    %v1434 = vld [vmem:[#allocation2 + $0x10] sm:$0x3]
    %v1435 = vld [vmem:[#allocation2 + $0x18] sm:$0x3]
    %v1436 = vadd.f32 %v1434, %v1251
    %v1437 = vadd.f32 %v1435, %v1253
    %v1438 = vxor.u32 %v1436, 2147483648
    %v1439 = vxor.u32 %v1437, 2147483648
    %v1440 = vmul.f32 %v1438, 1.442695
    %v1441 = vpow.pop %v1440
    %v1442 = vmul.f32 %v1439, 1.442695
    %v1443 = vpow.pop %v1442
    %v1444 = vadd.f32 %v1441, 1.0
    %v1445 = vadd.f32 %v1443, 1.0
    %v1446 = vrcp.pop %v1444
    %v1447 = vmul.f32 1.0, %v1446
    %v1448 = vrcp.pop %v1445
    %v1449 = vmul.f32 1.0, %v1448
    %v1450 = vtanh.pop %v1437
    %v1452 = vrot.slane %v1173, 6
    %v1454 = vmul.f32 %v1447, %v1452
    %1456 = vrot.lane.b32.xlu0 %v1450, 64
    %v1457 = vpop.permute.xlu0 %1456
    %v1459 = vmul.f32 %v1447, %v1457
    %1461 = vrot.lane.b32.xlu0 %v1459, 64
    %v1462 = vpop.permute.xlu0 %1461
    %v1464 = vadd.f32 %v1454, %v1462
    %v1465 = vtanh.pop %v1464
    %1467 = vrot.lane.b32.xlu0 %v1465, 64
    %v1468 = vpop.permute.xlu0 %1467
    %v1470 = vmul.f32 %v1449, %v1468
    %v1472 = vsel %vm278, %v1470, 0
    %1474 = vmatprep.subr.mxu0 0.0
    %1475 = vmatpush1.msra.mxu0 0.0
    %1476 = vmatprep.subr.mxu0 0.0
    %1477 = vmatpush1.msra.mxu0 0.0
    %1478 = vmatprep.subr.mxu0 0.0
    %1479 = vmatpush1.msra.mxu0 0.0
    %1480 = vmatprep.subr.mxu0 0.0
    %1481 = vmatpush1.msra.mxu0 0.0
    %1482 = vmatprep.subr.mxu0 0.0
    %1483 = vmatpush1.msra.mxu0 0.0
    %1484 = vmatprep.subr.mxu0 0.0
    %1485 = vmatpush1.msra.mxu0 0.0
    %1486 = vmatprep.subr.mxu0 0.0
    %1487 = vmatpush1.msra.mxu0 0.0
    %1488 = vmatprep.subr.mxu0 0.0
    %1489 = vmatpush1.msra.mxu0 0.0
    %1490 = vmatprep.subr.mxu0 %v224
    %1491 = vmatpush1.msra.mxu0 %v223
    %1492 = vmatprep.subr.mxu0 %v220
    %1493 = vmatpush1.msra.mxu0 %v219
    %1494 = vmatprep.subr.mxu0 %v216
    %1495 = vmatpush1.msra.mxu0 %v215
    %1496 = vmatprep.subr.mxu0 %v212
    %1497 = vmatpush1.msra.mxu0 %v211
    %1498 = vmatprep.subr.mxu0 %v208
    %1499 = vmatpush1.msra.mxu0 %v207
    %1500 = vmatprep.subr.mxu0 %v204
    %1501 = vmatpush1.msra.mxu0 %v203
    %1502 = vmatprep.subr.mxu0 %v200
    %1503 = vmatpush1.msra.mxu0 %v199
    %1504 = vmatprep.subr.mxu0 %v196
    %1505 = vmatpush1.msra.mxu0 %v195
    %1506 = vmatprep.subr.mxu0 0.0
    %1507 = vmatpush2.msra.mxu0 0.0
    %1508 = vmatprep.subr.mxu0 0.0
    %1509 = vmatpush2.msra.mxu0 0.0
    %1510 = vmatprep.subr.mxu0 0.0
    %1511 = vmatpush2.msra.mxu0 0.0
    %1512 = vmatprep.subr.mxu0 0.0
    %1513 = vmatpush2.msra.mxu0 0.0
    %1514 = vmatprep.subr.mxu0 0.0
    %1515 = vmatpush2.msra.mxu0 0.0
    %1516 = vmatprep.subr.mxu0 0.0
    %1517 = vmatpush2.msra.mxu0 0.0
    %1518 = vmatprep.subr.mxu0 0.0
    %1519 = vmatpush2.msra.mxu0 0.0
    %1520 = vmatprep.subr.mxu0 0.0
    %1521 = vmatpush2.msra.mxu0 0.0
    %1522 = vmatprep.subr.mxu0 0.0
    %1523 = vmatpush2.msra.mxu0 0.0
    %1524 = vmatprep.subr.mxu0 0.0
    %1525 = vmatpush2.msra.mxu0 0.0
    %1526 = vmatprep.subr.mxu0 0.0
    %1527 = vmatpush2.msra.mxu0 0.0
    %1528 = vmatprep.subr.mxu0 0.0
    %1529 = vmatpush2.msra.mxu0 0.0
    %1530 = vmatprep.subr.mxu0 0.0
    %1531 = vmatpush2.msra.mxu0 0.0
    %1532 = vmatprep.subr.mxu0 0.0
    %1533 = vmatpush2.msra.mxu0 0.0
    %1534 = vmatprep.subr.mxu0 0.0
    %1535 = vmatpush2.msra.mxu0 0.0
    %1536 = vmatprep.subr.mxu0 0.0
    %1537 = vmatpush2.msra.mxu0 0.0
    %1538 = vmatprep.mubr.f32.mxu0 0.0
    %1539 = vmatmul.mubr.f32.gmra.mxu0 %v1472
    %v1540 = vpop.f32.mrf.mxu0
    %v1541 = vadd.f32 0.0, %v1540
    %v1542 = vpop.f32.mrf.mxu0
    %v1543 = vadd.f32 0.0, %v1542
    %1544 = vdwg.mxu0
    %1545 = vmatprep.subr.mxu0 0.0
    %1546 = vmatpush1.msra.mxu0 0.0
    %1547 = vmatprep.subr.mxu0 0.0
    %1548 = vmatpush1.msra.mxu0 0.0
    %1549 = vmatprep.subr.mxu0 0.0
    %1550 = vmatpush1.msra.mxu0 0.0
    %1551 = vmatprep.subr.mxu0 0.0
    %1552 = vmatpush1.msra.mxu0 0.0
    %1553 = vmatprep.subr.mxu0 0.0
    %1554 = vmatpush1.msra.mxu0 0.0
    %1555 = vmatprep.subr.mxu0 0.0
    %1556 = vmatpush1.msra.mxu0 0.0
    %1557 = vmatprep.subr.mxu0 0.0
    %1558 = vmatpush1.msra.mxu0 0.0
    %1559 = vmatprep.subr.mxu0 0.0
    %1560 = vmatpush1.msra.mxu0 0.0
    %1561 = vmatprep.subr.mxu0 %v226
    %1562 = vmatpush1.msra.mxu0 %v225
    %1563 = vmatprep.subr.mxu0 %v222
    %1564 = vmatpush1.msra.mxu0 %v221
    %1565 = vmatprep.subr.mxu0 %v218
    %1566 = vmatpush1.msra.mxu0 %v217
    %1567 = vmatprep.subr.mxu0 %v214
    %1568 = vmatpush1.msra.mxu0 %v213
    %1569 = vmatprep.subr.mxu0 %v210
    %1570 = vmatpush1.msra.mxu0 %v209
    %1571 = vmatprep.subr.mxu0 %v206
    %1572 = vmatpush1.msra.mxu0 %v205
    %1573 = vmatprep.subr.mxu0 %v202
    %1574 = vmatpush1.msra.mxu0 %v201
    %1575 = vmatprep.subr.mxu0 %v198
    %1576 = vmatpush1.msra.mxu0 %v197
    %1577 = vmatprep.subr.mxu0 0.0
    %1578 = vmatpush2.msra.mxu0 0.0
    %1579 = vmatprep.subr.mxu0 0.0
    %1580 = vmatpush2.msra.mxu0 0.0
    %1581 = vmatprep.subr.mxu0 0.0
    %1582 = vmatpush2.msra.mxu0 0.0
    %1583 = vmatprep.subr.mxu0 0.0
    %1584 = vmatpush2.msra.mxu0 0.0
    %1585 = vmatprep.subr.mxu0 0.0
    %1586 = vmatpush2.msra.mxu0 0.0
    %1587 = vmatprep.subr.mxu0 0.0
    %1588 = vmatpush2.msra.mxu0 0.0
    %1589 = vmatprep.subr.mxu0 0.0
    %1590 = vmatpush2.msra.mxu0 0.0
    %1591 = vmatprep.subr.mxu0 0.0
    %1592 = vmatpush2.msra.mxu0 0.0
    %1593 = vmatprep.subr.mxu0 0.0
    %1594 = vmatpush2.msra.mxu0 0.0
    %1595 = vmatprep.subr.mxu0 0.0
    %1596 = vmatpush2.msra.mxu0 0.0
    %1597 = vmatprep.subr.mxu0 0.0
    %1598 = vmatpush2.msra.mxu0 0.0
    %1599 = vmatprep.subr.mxu0 0.0
    %1600 = vmatpush2.msra.mxu0 0.0
    %1601 = vmatprep.subr.mxu0 0.0
    %1602 = vmatpush2.msra.mxu0 0.0
    %1603 = vmatprep.subr.mxu0 0.0
    %1604 = vmatpush2.msra.mxu0 0.0
    %1605 = vmatprep.subr.mxu0 0.0
    %1606 = vmatpush2.msra.mxu0 0.0
    %1607 = vmatprep.subr.mxu0 0.0
    %1608 = vmatpush2.msra.mxu0 0.0
    %1609 = vmatprep.mubr.f32.mxu0 0.0
    %1610 = vmatmul.mubr.f32.gmra.mxu0 %v1472
    %v1611 = vpop.f32.mrf.mxu0
    %v1612 = vadd.f32 0.0, %v1611
    %v1613 = vpop.f32.mrf.mxu0
    %v1614 = vadd.f32 0.0, %v1613
    %1615 = vdwg.mxu0
    %v1617 = vsel %vm278, %v1433, 0
    %1619 = vmatprep.subr.mxu0 0.0
    %1620 = vmatpush1.msra.mxu0 0.0
    %1621 = vmatprep.subr.mxu0 0.0
    %1622 = vmatpush1.msra.mxu0 0.0
    %1623 = vmatprep.subr.mxu0 0.0
    %1624 = vmatpush1.msra.mxu0 0.0
    %1625 = vmatprep.subr.mxu0 0.0
    %1626 = vmatpush1.msra.mxu0 0.0
    %1627 = vmatprep.subr.mxu0 0.0
    %1628 = vmatpush1.msra.mxu0 0.0
    %1629 = vmatprep.subr.mxu0 0.0
    %1630 = vmatpush1.msra.mxu0 0.0
    %1631 = vmatprep.subr.mxu0 0.0
    %1632 = vmatpush1.msra.mxu0 0.0
    %1633 = vmatprep.subr.mxu0 0.0
    %1634 = vmatpush1.msra.mxu0 0.0
    %1635 = vmatprep.subr.mxu0 %v242
    %1636 = vmatpush1.msra.mxu0 %v241
    %1637 = vmatprep.subr.mxu0 %v240
    %1638 = vmatpush1.msra.mxu0 %v239
    %1639 = vmatprep.subr.mxu0 %v238
    %1640 = vmatpush1.msra.mxu0 %v237
    %1641 = vmatprep.subr.mxu0 %v236
    %1642 = vmatpush1.msra.mxu0 %v235
    %1643 = vmatprep.subr.mxu0 %v234
    %1644 = vmatpush1.msra.mxu0 %v233
    %1645 = vmatprep.subr.mxu0 %v232
    %1646 = vmatpush1.msra.mxu0 %v231
    %1647 = vmatprep.subr.mxu0 %v230
    %1648 = vmatpush1.msra.mxu0 %v229
    %1649 = vmatprep.subr.mxu0 %v228
    %1650 = vmatpush1.msra.mxu0 %v227
    %1651 = vmatprep.subr.mxu0 0.0
    %1652 = vmatpush2.msra.mxu0 0.0
    %1653 = vmatprep.subr.mxu0 0.0
    %1654 = vmatpush2.msra.mxu0 0.0
    %1655 = vmatprep.subr.mxu0 0.0
    %1656 = vmatpush2.msra.mxu0 0.0
    %1657 = vmatprep.subr.mxu0 0.0
    %1658 = vmatpush2.msra.mxu0 0.0
    %1659 = vmatprep.subr.mxu0 0.0
    %1660 = vmatpush2.msra.mxu0 0.0
    %1661 = vmatprep.subr.mxu0 0.0
    %1662 = vmatpush2.msra.mxu0 0.0
    %1663 = vmatprep.subr.mxu0 0.0
    %1664 = vmatpush2.msra.mxu0 0.0
    %1665 = vmatprep.subr.mxu0 0.0
    %1666 = vmatpush2.msra.mxu0 0.0
    %1667 = vmatprep.subr.mxu0 0.0
    %1668 = vmatpush2.msra.mxu0 0.0
    %1669 = vmatprep.subr.mxu0 0.0
    %1670 = vmatpush2.msra.mxu0 0.0
    %1671 = vmatprep.subr.mxu0 0.0
    %1672 = vmatpush2.msra.mxu0 0.0
    %1673 = vmatprep.subr.mxu0 0.0
    %1674 = vmatpush2.msra.mxu0 0.0
    %1675 = vmatprep.subr.mxu0 0.0
    %1676 = vmatpush2.msra.mxu0 0.0
    %1677 = vmatprep.subr.mxu0 0.0
    %1678 = vmatpush2.msra.mxu0 0.0
    %1679 = vmatprep.subr.mxu0 0.0
    %1680 = vmatpush2.msra.mxu0 0.0
    %1681 = vmatprep.subr.mxu0 0.0
    %1682 = vmatpush2.msra.mxu0 0.0
    %1683 = vmatprep.mubr.f32.mxu0 0.0
    %1684 = vmatmul.mubr.f32.gmra.mxu0 %v1617
    %v1685 = vpop.f32.mrf.mxu0
    %v1686 = vadd.f32 0.0, %v1685
    %v1687 = vpop.f32.mrf.mxu0
    %v1688 = vadd.f32 0.0, %v1687
    %1689 = vdwg.mxu0
    %v1690 = vadd.f32 %v1612, %v1686
    %v1691 = vadd.f32 %v1614, %v1688
    %v1692 = vadd.f32 %v1690, %v504
    %v1693 = vadd.f32 %v1691, %v508
    %v1694 = vxor.u32 %v1692, 2147483648
    %v1695 = vxor.u32 %v1693, 2147483648
    %v1696 = vmul.f32 %v1694, 1.442695
    %v1697 = vpow.pop %v1696
    %v1698 = vmul.f32 %v1695, 1.442695
    %v1699 = vpow.pop %v1698
    %v1700 = vadd.f32 %v1697, 1.0
    %v1701 = vadd.f32 %v1699, 1.0
    %v1702 = vrcp.pop %v1700
    %v1703 = vmul.f32 1.0, %v1702
    %v1704 = vrcp.pop %v1701
    %v1705 = vmul.f32 1.0, %v1704
    %v1706 = vtanh.pop %v1693
    %v1707 = vmul.f32 %v1703, %v1427
    %1709 = vrot.lane.b32.xlu0 %v1706, 64
    %v1710 = vpop.permute.xlu0 %1709
    %v1712 = vmul.f32 %v1703, %v1710
    %1714 = vrot.lane.b32.xlu0 %v1712, 64
    %v1715 = vpop.permute.xlu0 %1714
    %v1717 = vadd.f32 %v1707, %v1715
    %v1718 = vtanh.pop %v1717
    %1720 = vrot.lane.b32.xlu0 %v1718, 64
    %v1721 = vpop.permute.xlu0 %1720
    %v1723 = vmul.f32 %v1705, %v1721
    %v1724 = vld [vmem:[#allocation2 + $0x10] sm:$0xc]
    %v1725 = vld [vmem:[#allocation2 + $0x18] sm:$0xc]
    %v1728 = vrot.slane %v1541, 6
    %v1729 = vrot.slane %v1543, 6
    %v1732 = vadd.f32 %v1724, %v1728
    %v1733 = vadd.f32 %v1725, %v1729
    %v1734 = vxor.u32 %v1732, 2147483648
    %v1735 = vxor.u32 %v1733, 2147483648
    %v1736 = vmul.f32 %v1734, 1.442695
    %v1737 = vpow.pop %v1736
    %v1738 = vmul.f32 %v1735, 1.442695
    %v1739 = vpow.pop %v1738
    %v1740 = vadd.f32 %v1737, 1.0
    %v1741 = vadd.f32 %v1739, 1.0
    %v1742 = vrcp.pop %v1740
    %v1743 = vmul.f32 1.0, %v1742
    %v1744 = vrcp.pop %v1741
    %v1745 = vmul.f32 1.0, %v1744
    %v1746 = vtanh.pop %v1733
    %v1748 = vrot.slane %v1464, 6
    %v1750 = vmul.f32 %v1743, %v1748
    %1752 = vrot.lane.b32.xlu0 %v1746, 64
    %v1753 = vpop.permute.xlu0 %1752
    %v1755 = vmul.f32 %v1743, %v1753
    %1757 = vrot.lane.b32.xlu0 %v1755, 64
    %v1758 = vpop.permute.xlu0 %1757
    %v1760 = vadd.f32 %v1750, %v1758
    %v1761 = vtanh.pop %v1760
    %1763 = vrot.lane.b32.xlu0 %v1761, 64
    %v1764 = vpop.permute.xlu0 %1763
    %v1766 = vmul.f32 %v1745, %v1764
    %v1768 = vrot.slane %v1766, 2
    %v1769 = vsel %vm278, %v1768, 0
    %1771 = vmatprep.subr.mxu0 0.0
    %1772 = vmatpush1.msra.mxu0 0.0
    %1773 = vmatprep.subr.mxu0 0.0
    %1774 = vmatpush1.msra.mxu0 0.0
    %1775 = vmatprep.subr.mxu0 0.0
    %1776 = vmatpush1.msra.mxu0 0.0
    %1777 = vmatprep.subr.mxu0 0.0
    %1778 = vmatpush1.msra.mxu0 0.0
    %1779 = vmatprep.subr.mxu0 0.0
    %1780 = vmatpush1.msra.mxu0 0.0
    %1781 = vmatprep.subr.mxu0 0.0
    %1782 = vmatpush1.msra.mxu0 0.0
    %1783 = vmatprep.subr.mxu0 0.0
    %1784 = vmatpush1.msra.mxu0 0.0
    %1785 = vmatprep.subr.mxu0 0.0
    %1786 = vmatpush1.msra.mxu0 0.0
    %1787 = vmatprep.subr.mxu0 %v224
    %1788 = vmatpush1.msra.mxu0 %v223
    %1789 = vmatprep.subr.mxu0 %v220
    %1790 = vmatpush1.msra.mxu0 %v219
    %1791 = vmatprep.subr.mxu0 %v216
    %1792 = vmatpush1.msra.mxu0 %v215
    %1793 = vmatprep.subr.mxu0 %v212
    %1794 = vmatpush1.msra.mxu0 %v211
    %1795 = vmatprep.subr.mxu0 %v208
    %1796 = vmatpush1.msra.mxu0 %v207
    %1797 = vmatprep.subr.mxu0 %v204
    %1798 = vmatpush1.msra.mxu0 %v203
    %1799 = vmatprep.subr.mxu0 %v200
    %1800 = vmatpush1.msra.mxu0 %v199
    %1801 = vmatprep.subr.mxu0 %v196
    %1802 = vmatpush1.msra.mxu0 %v195
    %1803 = vmatprep.subr.mxu0 0.0
    %1804 = vmatpush2.msra.mxu0 0.0
    %1805 = vmatprep.subr.mxu0 0.0
    %1806 = vmatpush2.msra.mxu0 0.0
    %1807 = vmatprep.subr.mxu0 0.0
    %1808 = vmatpush2.msra.mxu0 0.0
    %1809 = vmatprep.subr.mxu0 0.0
    %1810 = vmatpush2.msra.mxu0 0.0
    %1811 = vmatprep.subr.mxu0 0.0
    %1812 = vmatpush2.msra.mxu0 0.0
    %1813 = vmatprep.subr.mxu0 0.0
    %1814 = vmatpush2.msra.mxu0 0.0
    %1815 = vmatprep.subr.mxu0 0.0
    %1816 = vmatpush2.msra.mxu0 0.0
    %1817 = vmatprep.subr.mxu0 0.0
    %1818 = vmatpush2.msra.mxu0 0.0
    %1819 = vmatprep.subr.mxu0 0.0
    %1820 = vmatpush2.msra.mxu0 0.0
    %1821 = vmatprep.subr.mxu0 0.0
    %1822 = vmatpush2.msra.mxu0 0.0
    %1823 = vmatprep.subr.mxu0 0.0
    %1824 = vmatpush2.msra.mxu0 0.0
    %1825 = vmatprep.subr.mxu0 0.0
    %1826 = vmatpush2.msra.mxu0 0.0
    %1827 = vmatprep.subr.mxu0 0.0
    %1828 = vmatpush2.msra.mxu0 0.0
    %1829 = vmatprep.subr.mxu0 0.0
    %1830 = vmatpush2.msra.mxu0 0.0
    %1831 = vmatprep.subr.mxu0 0.0
    %1832 = vmatpush2.msra.mxu0 0.0
    %1833 = vmatprep.subr.mxu0 0.0
    %1834 = vmatpush2.msra.mxu0 0.0
    %1835 = vmatprep.mubr.f32.mxu0 0.0
    %1836 = vmatmul.mubr.f32.gmra.mxu0 %v1769
    %v1837 = vpop.f32.mrf.mxu0
    %v1838 = vadd.f32 0.0, %v1837
    %v1839 = vpop.f32.mrf.mxu0
    %v1840 = vadd.f32 0.0, %v1839
    %1841 = vdwg.mxu0
    %1842 = vmatprep.subr.mxu0 0.0
    %1843 = vmatpush1.msra.mxu0 0.0
    %1844 = vmatprep.subr.mxu0 0.0
    %1845 = vmatpush1.msra.mxu0 0.0
    %1846 = vmatprep.subr.mxu0 0.0
    %1847 = vmatpush1.msra.mxu0 0.0
    %1848 = vmatprep.subr.mxu0 0.0
    %1849 = vmatpush1.msra.mxu0 0.0
    %1850 = vmatprep.subr.mxu0 0.0
    %1851 = vmatpush1.msra.mxu0 0.0
    %1852 = vmatprep.subr.mxu0 0.0
    %1853 = vmatpush1.msra.mxu0 0.0
    %1854 = vmatprep.subr.mxu0 0.0
    %1855 = vmatpush1.msra.mxu0 0.0
    %1856 = vmatprep.subr.mxu0 0.0
    %1857 = vmatpush1.msra.mxu0 0.0
    %1858 = vmatprep.subr.mxu0 %v226
    %1859 = vmatpush1.msra.mxu0 %v225
    %1860 = vmatprep.subr.mxu0 %v222
    %1861 = vmatpush1.msra.mxu0 %v221
    %1862 = vmatprep.subr.mxu0 %v218
    %1863 = vmatpush1.msra.mxu0 %v217
    %1864 = vmatprep.subr.mxu0 %v214
    %1865 = vmatpush1.msra.mxu0 %v213
    %1866 = vmatprep.subr.mxu0 %v210
    %1867 = vmatpush1.msra.mxu0 %v209
    %1868 = vmatprep.subr.mxu0 %v206
    %1869 = vmatpush1.msra.mxu0 %v205
    %1870 = vmatprep.subr.mxu0 %v202
    %1871 = vmatpush1.msra.mxu0 %v201
    %1872 = vmatprep.subr.mxu0 %v198
    %1873 = vmatpush1.msra.mxu0 %v197
    %1874 = vmatprep.subr.mxu0 0.0
    %1875 = vmatpush2.msra.mxu0 0.0
    %1876 = vmatprep.subr.mxu0 0.0
    %1877 = vmatpush2.msra.mxu0 0.0
    %1878 = vmatprep.subr.mxu0 0.0
    %1879 = vmatpush2.msra.mxu0 0.0
    %1880 = vmatprep.subr.mxu0 0.0
    %1881 = vmatpush2.msra.mxu0 0.0
    %1882 = vmatprep.subr.mxu0 0.0
    %1883 = vmatpush2.msra.mxu0 0.0
    %1884 = vmatprep.subr.mxu0 0.0
    %1885 = vmatpush2.msra.mxu0 0.0
    %1886 = vmatprep.subr.mxu0 0.0
    %1887 = vmatpush2.msra.mxu0 0.0
    %1888 = vmatprep.subr.mxu0 0.0
    %1889 = vmatpush2.msra.mxu0 0.0
    %1890 = vmatprep.subr.mxu0 0.0
    %1891 = vmatpush2.msra.mxu0 0.0
    %1892 = vmatprep.subr.mxu0 0.0
    %1893 = vmatpush2.msra.mxu0 0.0
    %1894 = vmatprep.subr.mxu0 0.0
    %1895 = vmatpush2.msra.mxu0 0.0
    %1896 = vmatprep.subr.mxu0 0.0
    %1897 = vmatpush2.msra.mxu0 0.0
    %1898 = vmatprep.subr.mxu0 0.0
    %1899 = vmatpush2.msra.mxu0 0.0
    %1900 = vmatprep.subr.mxu0 0.0
    %1901 = vmatpush2.msra.mxu0 0.0
    %1902 = vmatprep.subr.mxu0 0.0
    %1903 = vmatpush2.msra.mxu0 0.0
    %1904 = vmatprep.subr.mxu0 0.0
    %1905 = vmatpush2.msra.mxu0 0.0
    %1906 = vmatprep.mubr.f32.mxu0 0.0
    %1907 = vmatmul.mubr.f32.gmra.mxu0 %v1769
    %v1908 = vpop.f32.mrf.mxu0
    %v1909 = vadd.f32 0.0, %v1908
    %v1910 = vpop.f32.mrf.mxu0
    %v1911 = vadd.f32 0.0, %v1910
    %1912 = vdwg.mxu0
    %v1914 = vsel %vm278, %v1723, 0
    %1916 = vmatprep.subr.mxu0 0.0
    %1917 = vmatpush1.msra.mxu0 0.0
    %1918 = vmatprep.subr.mxu0 0.0
    %1919 = vmatpush1.msra.mxu0 0.0
    %1920 = vmatprep.subr.mxu0 0.0
    %1921 = vmatpush1.msra.mxu0 0.0
    %1922 = vmatprep.subr.mxu0 0.0
    %1923 = vmatpush1.msra.mxu0 0.0
    %1924 = vmatprep.subr.mxu0 0.0
    %1925 = vmatpush1.msra.mxu0 0.0
    %1926 = vmatprep.subr.mxu0 0.0
    %1927 = vmatpush1.msra.mxu0 0.0
    %1928 = vmatprep.subr.mxu0 0.0
    %1929 = vmatpush1.msra.mxu0 0.0
    %1930 = vmatprep.subr.mxu0 0.0
    %1931 = vmatpush1.msra.mxu0 0.0
    %1932 = vmatprep.subr.mxu0 %v242
    %1933 = vmatpush1.msra.mxu0 %v241
    %1934 = vmatprep.subr.mxu0 %v240
    %1935 = vmatpush1.msra.mxu0 %v239
    %1936 = vmatprep.subr.mxu0 %v238
    %1937 = vmatpush1.msra.mxu0 %v237
    %1938 = vmatprep.subr.mxu0 %v236
    %1939 = vmatpush1.msra.mxu0 %v235
    %1940 = vmatprep.subr.mxu0 %v234
    %1941 = vmatpush1.msra.mxu0 %v233
    %1942 = vmatprep.subr.mxu0 %v232
    %1943 = vmatpush1.msra.mxu0 %v231
    %1944 = vmatprep.subr.mxu0 %v230
    %1945 = vmatpush1.msra.mxu0 %v229
    %1946 = vmatprep.subr.mxu0 %v228
    %1947 = vmatpush1.msra.mxu0 %v227
    %1948 = vmatprep.subr.mxu0 0.0
    %1949 = vmatpush2.msra.mxu0 0.0
    %1950 = vmatprep.subr.mxu0 0.0
    %1951 = vmatpush2.msra.mxu0 0.0
    %1952 = vmatprep.subr.mxu0 0.0
    %1953 = vmatpush2.msra.mxu0 0.0
    %1954 = vmatprep.subr.mxu0 0.0
    %1955 = vmatpush2.msra.mxu0 0.0
    %1956 = vmatprep.subr.mxu0 0.0
    %1957 = vmatpush2.msra.mxu0 0.0
    %1958 = vmatprep.subr.mxu0 0.0
    %1959 = vmatpush2.msra.mxu0 0.0
    %1960 = vmatprep.subr.mxu0 0.0
    %1961 = vmatpush2.msra.mxu0 0.0
    %1962 = vmatprep.subr.mxu0 0.0
    %1963 = vmatpush2.msra.mxu0 0.0
    %1964 = vmatprep.subr.mxu0 0.0
    %1965 = vmatpush2.msra.mxu0 0.0
    %1966 = vmatprep.subr.mxu0 0.0
    %1967 = vmatpush2.msra.mxu0 0.0
    %1968 = vmatprep.subr.mxu0 0.0
    %1969 = vmatpush2.msra.mxu0 0.0
    %1970 = vmatprep.subr.mxu0 0.0
    %1971 = vmatpush2.msra.mxu0 0.0
    %1972 = vmatprep.subr.mxu0 0.0
    %1973 = vmatpush2.msra.mxu0 0.0
    %1974 = vmatprep.subr.mxu0 0.0
    %1975 = vmatpush2.msra.mxu0 0.0
    %1976 = vmatprep.subr.mxu0 0.0
    %1977 = vmatpush2.msra.mxu0 0.0
    %1978 = vmatprep.subr.mxu0 0.0
    %1979 = vmatpush2.msra.mxu0 0.0
    %1980 = vmatprep.mubr.f32.mxu0 0.0
    %1981 = vmatmul.mubr.f32.gmra.mxu0 %v1914
    %v1982 = vpop.f32.mrf.mxu0
    %v1983 = vadd.f32 0.0, %v1982
    %v1984 = vpop.f32.mrf.mxu0
    %v1985 = vadd.f32 0.0, %v1984
    %1986 = vdwg.mxu0
    %v1987 = vadd.f32 %v1909, %v1983
    %v1988 = vadd.f32 %v1911, %v1985
    %v1989 = vadd.f32 %v1987, %v504
    %v1990 = vadd.f32 %v1988, %v508
    %v1991 = vxor.u32 %v1989, 2147483648
    %v1992 = vxor.u32 %v1990, 2147483648
    %v1993 = vmul.f32 %v1991, 1.442695
    %v1994 = vpow.pop %v1993
    %v1995 = vmul.f32 %v1992, 1.442695
    %v1996 = vpow.pop %v1995
    %v1997 = vadd.f32 %v1994, 1.0
    %v1998 = vadd.f32 %v1996, 1.0
    %v1999 = vrcp.pop %v1997
    %v2000 = vmul.f32 1.0, %v1999
    %v2001 = vrcp.pop %v1998
    %v2002 = vmul.f32 1.0, %v2001
    %v2003 = vtanh.pop %v1990
    %v2004 = vmul.f32 %v2000, %v1717
    %2006 = vrot.lane.b32.xlu0 %v2003, 64
    %v2007 = vpop.permute.xlu0 %2006
    %v2009 = vmul.f32 %v2000, %v2007
    %2011 = vrot.lane.b32.xlu0 %v2009, 64
    %v2012 = vpop.permute.xlu0 %2011
    %v2014 = vadd.f32 %v2004, %v2012
    %v2015 = vtanh.pop %v2014
    %2017 = vrot.lane.b32.xlu0 %v2015, 64
    %v2018 = vpop.permute.xlu0 %2017
    %v2020 = vmul.f32 %v2002, %v2018
    %v2021 = vld [vmem:[#allocation2 + $0x10] sm:$0x30]
    %v2022 = vld [vmem:[#allocation2 + $0x18] sm:$0x30]
    %v2025 = vrot.slane %v1838, 4
    %v2026 = vrot.slane %v1840, 4
    %v2029 = vadd.f32 %v2021, %v2025
    %v2030 = vadd.f32 %v2022, %v2026
    %v2031 = vxor.u32 %v2029, 2147483648
    %v2032 = vxor.u32 %v2030, 2147483648
    %v2033 = vmul.f32 %v2031, 1.442695
    %v2034 = vpow.pop %v2033
    %v2035 = vmul.f32 %v2032, 1.442695
    %v2036 = vpow.pop %v2035
    %v2037 = vadd.f32 %v2034, 1.0
    %v2038 = vadd.f32 %v2036, 1.0
    %v2039 = vrcp.pop %v2037
    %v2040 = vmul.f32 1.0, %v2039
    %v2041 = vrcp.pop %v2038
    %v2042 = vmul.f32 1.0, %v2041
    %v2043 = vtanh.pop %v2030
    %v2045 = vrot.slane %v1760, 6
    %v2047 = vmul.f32 %v2040, %v2045
    %2049 = vrot.lane.b32.xlu0 %v2043, 64
    %v2050 = vpop.permute.xlu0 %2049
    %v2052 = vmul.f32 %v2040, %v2050
    %2054 = vrot.lane.b32.xlu0 %v2052, 64
    %v2055 = vpop.permute.xlu0 %2054
    %v2057 = vadd.f32 %v2047, %v2055
    %v2058 = vtanh.pop %v2057
    %2060 = vrot.lane.b32.xlu0 %v2058, 64
    %v2061 = vpop.permute.xlu0 %2060
    %v2063 = vmul.f32 %v2042, %v2061
    %v2065 = vrot.slane %v2063, 4
    %v2066 = vsel %vm278, %v2065, 0
    %2068 = vmatprep.subr.mxu0 0.0
    %2069 = vmatpush1.msra.mxu0 0.0
    %2070 = vmatprep.subr.mxu0 0.0
    %2071 = vmatpush1.msra.mxu0 0.0
    %2072 = vmatprep.subr.mxu0 0.0
    %2073 = vmatpush1.msra.mxu0 0.0
    %2074 = vmatprep.subr.mxu0 0.0
    %2075 = vmatpush1.msra.mxu0 0.0
    %2076 = vmatprep.subr.mxu0 0.0
    %2077 = vmatpush1.msra.mxu0 0.0
    %2078 = vmatprep.subr.mxu0 0.0
    %2079 = vmatpush1.msra.mxu0 0.0
    %2080 = vmatprep.subr.mxu0 0.0
    %2081 = vmatpush1.msra.mxu0 0.0
    %2082 = vmatprep.subr.mxu0 0.0
    %2083 = vmatpush1.msra.mxu0 0.0
    %2084 = vmatprep.subr.mxu0 %v224
    %2085 = vmatpush1.msra.mxu0 %v223
    %2086 = vmatprep.subr.mxu0 %v220
    %2087 = vmatpush1.msra.mxu0 %v219
    %2088 = vmatprep.subr.mxu0 %v216
    %2089 = vmatpush1.msra.mxu0 %v215
    %2090 = vmatprep.subr.mxu0 %v212
    %2091 = vmatpush1.msra.mxu0 %v211
    %2092 = vmatprep.subr.mxu0 %v208
    %2093 = vmatpush1.msra.mxu0 %v207
    %2094 = vmatprep.subr.mxu0 %v204
    %2095 = vmatpush1.msra.mxu0 %v203
    %2096 = vmatprep.subr.mxu0 %v200
    %2097 = vmatpush1.msra.mxu0 %v199
    %2098 = vmatprep.subr.mxu0 %v196
    %2099 = vmatpush1.msra.mxu0 %v195
    %2100 = vmatprep.subr.mxu0 0.0
    %2101 = vmatpush2.msra.mxu0 0.0
    %2102 = vmatprep.subr.mxu0 0.0
    %2103 = vmatpush2.msra.mxu0 0.0
    %2104 = vmatprep.subr.mxu0 0.0
    %2105 = vmatpush2.msra.mxu0 0.0
    %2106 = vmatprep.subr.mxu0 0.0
    %2107 = vmatpush2.msra.mxu0 0.0
    %2108 = vmatprep.subr.mxu0 0.0
    %2109 = vmatpush2.msra.mxu0 0.0
    %2110 = vmatprep.subr.mxu0 0.0
    %2111 = vmatpush2.msra.mxu0 0.0
    %2112 = vmatprep.subr.mxu0 0.0
    %2113 = vmatpush2.msra.mxu0 0.0
    %2114 = vmatprep.subr.mxu0 0.0
    %2115 = vmatpush2.msra.mxu0 0.0
    %2116 = vmatprep.subr.mxu0 0.0
    %2117 = vmatpush2.msra.mxu0 0.0
    %2118 = vmatprep.subr.mxu0 0.0
    %2119 = vmatpush2.msra.mxu0 0.0
    %2120 = vmatprep.subr.mxu0 0.0
    %2121 = vmatpush2.msra.mxu0 0.0
    %2122 = vmatprep.subr.mxu0 0.0
    %2123 = vmatpush2.msra.mxu0 0.0
    %2124 = vmatprep.subr.mxu0 0.0
    %2125 = vmatpush2.msra.mxu0 0.0
    %2126 = vmatprep.subr.mxu0 0.0
    %2127 = vmatpush2.msra.mxu0 0.0
    %2128 = vmatprep.subr.mxu0 0.0
    %2129 = vmatpush2.msra.mxu0 0.0
    %2130 = vmatprep.subr.mxu0 0.0
    %2131 = vmatpush2.msra.mxu0 0.0
    %2132 = vmatprep.mubr.f32.mxu0 0.0
    %2133 = vmatmul.mubr.f32.gmra.mxu0 %v2066
    %v2134 = vpop.f32.mrf.mxu0
    %v2135 = vadd.f32 0.0, %v2134
    %v2136 = vpop.f32.mrf.mxu0
    %v2137 = vadd.f32 0.0, %v2136
    %2138 = vdwg.mxu0
    %2139 = vmatprep.subr.mxu0 0.0
    %2140 = vmatpush1.msra.mxu0 0.0
    %2141 = vmatprep.subr.mxu0 0.0
    %2142 = vmatpush1.msra.mxu0 0.0
    %2143 = vmatprep.subr.mxu0 0.0
    %2144 = vmatpush1.msra.mxu0 0.0
    %2145 = vmatprep.subr.mxu0 0.0
    %2146 = vmatpush1.msra.mxu0 0.0
    %2147 = vmatprep.subr.mxu0 0.0
    %2148 = vmatpush1.msra.mxu0 0.0
    %2149 = vmatprep.subr.mxu0 0.0
    %2150 = vmatpush1.msra.mxu0 0.0
    %2151 = vmatprep.subr.mxu0 0.0
    %2152 = vmatpush1.msra.mxu0 0.0
    %2153 = vmatprep.subr.mxu0 0.0
    %2154 = vmatpush1.msra.mxu0 0.0
    %2155 = vmatprep.subr.mxu0 %v226
    %2156 = vmatpush1.msra.mxu0 %v225
    %2157 = vmatprep.subr.mxu0 %v222
    %2158 = vmatpush1.msra.mxu0 %v221
    %2159 = vmatprep.subr.mxu0 %v218
    %2160 = vmatpush1.msra.mxu0 %v217
    %2161 = vmatprep.subr.mxu0 %v214
    %2162 = vmatpush1.msra.mxu0 %v213
    %2163 = vmatprep.subr.mxu0 %v210
    %2164 = vmatpush1.msra.mxu0 %v209
    %2165 = vmatprep.subr.mxu0 %v206
    %2166 = vmatpush1.msra.mxu0 %v205
    %2167 = vmatprep.subr.mxu0 %v202
    %2168 = vmatpush1.msra.mxu0 %v201
    %2169 = vmatprep.subr.mxu0 %v198
    %2170 = vmatpush1.msra.mxu0 %v197
    %2171 = vmatprep.subr.mxu0 0.0
    %2172 = vmatpush2.msra.mxu0 0.0
    %2173 = vmatprep.subr.mxu0 0.0
    %2174 = vmatpush2.msra.mxu0 0.0
    %2175 = vmatprep.subr.mxu0 0.0
    %2176 = vmatpush2.msra.mxu0 0.0
    %2177 = vmatprep.subr.mxu0 0.0
    %2178 = vmatpush2.msra.mxu0 0.0
    %2179 = vmatprep.subr.mxu0 0.0
    %2180 = vmatpush2.msra.mxu0 0.0
    %2181 = vmatprep.subr.mxu0 0.0
    %2182 = vmatpush2.msra.mxu0 0.0
    %2183 = vmatprep.subr.mxu0 0.0
    %2184 = vmatpush2.msra.mxu0 0.0
    %2185 = vmatprep.subr.mxu0 0.0
    %2186 = vmatpush2.msra.mxu0 0.0
    %2187 = vmatprep.subr.mxu0 0.0
    %2188 = vmatpush2.msra.mxu0 0.0
    %2189 = vmatprep.subr.mxu0 0.0
    %2190 = vmatpush2.msra.mxu0 0.0
    %2191 = vmatprep.subr.mxu0 0.0
    %2192 = vmatpush2.msra.mxu0 0.0
    %2193 = vmatprep.subr.mxu0 0.0
    %2194 = vmatpush2.msra.mxu0 0.0
    %2195 = vmatprep.subr.mxu0 0.0
    %2196 = vmatpush2.msra.mxu0 0.0
    %2197 = vmatprep.subr.mxu0 0.0
    %2198 = vmatpush2.msra.mxu0 0.0
    %2199 = vmatprep.subr.mxu0 0.0
    %2200 = vmatpush2.msra.mxu0 0.0
    %2201 = vmatprep.subr.mxu0 0.0
    %2202 = vmatpush2.msra.mxu0 0.0
    %2203 = vmatprep.mubr.f32.mxu0 0.0
    %2204 = vmatmul.mubr.f32.gmra.mxu0 %v2066
    %v2205 = vpop.f32.mrf.mxu0
    %v2206 = vadd.f32 0.0, %v2205
    %v2207 = vpop.f32.mrf.mxu0
    %v2208 = vadd.f32 0.0, %v2207
    %2209 = vdwg.mxu0
    %v2211 = vsel %vm278, %v2020, 0
    %2213 = vmatprep.subr.mxu0 0.0
    %2214 = vmatpush1.msra.mxu0 0.0
    %2215 = vmatprep.subr.mxu0 0.0
    %2216 = vmatpush1.msra.mxu0 0.0
    %2217 = vmatprep.subr.mxu0 0.0
    %2218 = vmatpush1.msra.mxu0 0.0
    %2219 = vmatprep.subr.mxu0 0.0
    %2220 = vmatpush1.msra.mxu0 0.0
    %2221 = vmatprep.subr.mxu0 0.0
    %2222 = vmatpush1.msra.mxu0 0.0
    %2223 = vmatprep.subr.mxu0 0.0
    %2224 = vmatpush1.msra.mxu0 0.0
    %2225 = vmatprep.subr.mxu0 0.0
    %2226 = vmatpush1.msra.mxu0 0.0
    %2227 = vmatprep.subr.mxu0 0.0
    %2228 = vmatpush1.msra.mxu0 0.0
    %2229 = vmatprep.subr.mxu0 %v242
    %2230 = vmatpush1.msra.mxu0 %v241
    %2231 = vmatprep.subr.mxu0 %v240
    %2232 = vmatpush1.msra.mxu0 %v239
    %2233 = vmatprep.subr.mxu0 %v238
    %2234 = vmatpush1.msra.mxu0 %v237
    %2235 = vmatprep.subr.mxu0 %v236
    %2236 = vmatpush1.msra.mxu0 %v235
    %2237 = vmatprep.subr.mxu0 %v234
    %2238 = vmatpush1.msra.mxu0 %v233
    %2239 = vmatprep.subr.mxu0 %v232
    %2240 = vmatpush1.msra.mxu0 %v231
    %2241 = vmatprep.subr.mxu0 %v230
    %2242 = vmatpush1.msra.mxu0 %v229
    %2243 = vmatprep.subr.mxu0 %v228
    %2244 = vmatpush1.msra.mxu0 %v227
    %2245 = vmatprep.subr.mxu0 0.0
    %2246 = vmatpush2.msra.mxu0 0.0
    %2247 = vmatprep.subr.mxu0 0.0
    %2248 = vmatpush2.msra.mxu0 0.0
    %2249 = vmatprep.subr.mxu0 0.0
    %2250 = vmatpush2.msra.mxu0 0.0
    %2251 = vmatprep.subr.mxu0 0.0
    %2252 = vmatpush2.msra.mxu0 0.0
    %2253 = vmatprep.subr.mxu0 0.0
    %2254 = vmatpush2.msra.mxu0 0.0
    %2255 = vmatprep.subr.mxu0 0.0
    %2256 = vmatpush2.msra.mxu0 0.0
    %2257 = vmatprep.subr.mxu0 0.0
    %2258 = vmatpush2.msra.mxu0 0.0
    %2259 = vmatprep.subr.mxu0 0.0
    %2260 = vmatpush2.msra.mxu0 0.0
    %2261 = vmatprep.subr.mxu0 0.0
    %2262 = vmatpush2.msra.mxu0 0.0
    %2263 = vmatprep.subr.mxu0 0.0
    %2264 = vmatpush2.msra.mxu0 0.0
    %2265 = vmatprep.subr.mxu0 0.0
    %2266 = vmatpush2.msra.mxu0 0.0
    %2267 = vmatprep.subr.mxu0 0.0
    %2268 = vmatpush2.msra.mxu0 0.0
    %2269 = vmatprep.subr.mxu0 0.0
    %2270 = vmatpush2.msra.mxu0 0.0
    %2271 = vmatprep.subr.mxu0 0.0
    %2272 = vmatpush2.msra.mxu0 0.0
    %2273 = vmatprep.subr.mxu0 0.0
    %2274 = vmatpush2.msra.mxu0 0.0
    %2275 = vmatprep.subr.mxu0 0.0
    %2276 = vmatpush2.msra.mxu0 0.0
    %2277 = vmatprep.mubr.f32.mxu0 0.0
    %2278 = vmatmul.mubr.f32.gmra.mxu0 %v2211
    %v2279 = vpop.f32.mrf.mxu0
    %v2280 = vadd.f32 0.0, %v2279
    %v2281 = vpop.f32.mrf.mxu0
    %v2282 = vadd.f32 0.0, %v2281
    %2283 = vdwg.mxu0
    %v2284 = vadd.f32 %v2206, %v2280
    %v2285 = vadd.f32 %v2208, %v2282
    %v2286 = vadd.f32 %v2284, %v504
    %v2287 = vadd.f32 %v2285, %v508
    %v2288 = vxor.u32 %v2286, 2147483648
    %v2289 = vxor.u32 %v2287, 2147483648
    %v2290 = vmul.f32 %v2288, 1.442695
    %v2291 = vpow.pop %v2290
    %v2292 = vmul.f32 %v2289, 1.442695
    %v2293 = vpow.pop %v2292
    %v2294 = vadd.f32 %v2291, 1.0
    %v2295 = vadd.f32 %v2293, 1.0
    %v2296 = vrcp.pop %v2294
    %v2297 = vmul.f32 1.0, %v2296
    %v2298 = vrcp.pop %v2295
    %v2299 = vmul.f32 1.0, %v2298
    %v2300 = vtanh.pop %v2287
    %v2301 = vmul.f32 %v2297, %v2014
    %2303 = vrot.lane.b32.xlu0 %v2300, 64
    %v2304 = vpop.permute.xlu0 %2303
    %v2306 = vmul.f32 %v2297, %v2304
    %2308 = vrot.lane.b32.xlu0 %v2306, 64
    %v2309 = vpop.permute.xlu0 %2308
    %v2311 = vadd.f32 %v2301, %v2309
    %v2312 = vtanh.pop %v2311
    %2314 = vrot.lane.b32.xlu0 %v2312, 64
    %v2315 = vpop.permute.xlu0 %2314
    %v2317 = vmul.f32 %v2299, %v2315
    %v2318 = vld [vmem:[#allocation2 + $0x10] sm:$0xc0]
    %v2319 = vld [vmem:[#allocation2 + $0x18] sm:$0xc0]
    %v2322 = vrot.slane %v2135, 2
    %v2323 = vrot.slane %v2137, 2
    %v2326 = vadd.f32 %v2318, %v2322
    %v2327 = vadd.f32 %v2319, %v2323
    %v2328 = vxor.u32 %v2326, 2147483648
    %v2329 = vxor.u32 %v2327, 2147483648
    %v2330 = vmul.f32 %v2328, 1.442695
    %v2331 = vpow.pop %v2330
    %v2332 = vmul.f32 %v2329, 1.442695
    %v2333 = vpow.pop %v2332
    %v2334 = vadd.f32 %v2331, 1.0
    %v2335 = vadd.f32 %v2333, 1.0
    %v2336 = vrcp.pop %v2334
    %v2337 = vmul.f32 1.0, %v2336
    %v2338 = vrcp.pop %v2335
    %v2339 = vmul.f32 1.0, %v2338
    %v2340 = vtanh.pop %v2327
    %v2342 = vrot.slane %v2057, 6
    %v2344 = vmul.f32 %v2337, %v2342
    %2346 = vrot.lane.b32.xlu0 %v2340, 64
    %v2347 = vpop.permute.xlu0 %2346
    %v2349 = vmul.f32 %v2337, %v2347
    %2351 = vrot.lane.b32.xlu0 %v2349, 64
    %v2352 = vpop.permute.xlu0 %2351
    %v2354 = vadd.f32 %v2344, %v2352
    %v2355 = vtanh.pop %v2354
    %2357 = vrot.lane.b32.xlu0 %v2355, 64
    %v2358 = vpop.permute.xlu0 %2357
    %v2360 = vmul.f32 %v2339, %v2358
    %v2362 = vrot.slane %v2360, 6
    %v2363 = vsel %vm278, %v2362, 0
    %2365 = vmatprep.subr.mxu0 0.0
    %2366 = vmatpush1.msra.mxu0 0.0
    %2367 = vmatprep.subr.mxu0 0.0
    %2368 = vmatpush1.msra.mxu0 0.0
    %2369 = vmatprep.subr.mxu0 0.0
    %2370 = vmatpush1.msra.mxu0 0.0
    %2371 = vmatprep.subr.mxu0 0.0
    %2372 = vmatpush1.msra.mxu0 0.0
    %2373 = vmatprep.subr.mxu0 0.0
    %2374 = vmatpush1.msra.mxu0 0.0
    %2375 = vmatprep.subr.mxu0 0.0
    %2376 = vmatpush1.msra.mxu0 0.0
    %2377 = vmatprep.subr.mxu0 0.0
    %2378 = vmatpush1.msra.mxu0 0.0
    %2379 = vmatprep.subr.mxu0 0.0
    %2380 = vmatpush1.msra.mxu0 0.0
    %2381 = vmatprep.subr.mxu0 %v226
    %2382 = vmatpush1.msra.mxu0 %v225
    %2383 = vmatprep.subr.mxu0 %v222
    %2384 = vmatpush1.msra.mxu0 %v221
    %2385 = vmatprep.subr.mxu0 %v218
    %2386 = vmatpush1.msra.mxu0 %v217
    %2387 = vmatprep.subr.mxu0 %v214
    %2388 = vmatpush1.msra.mxu0 %v213
    %2389 = vmatprep.subr.mxu0 %v210
    %2390 = vmatpush1.msra.mxu0 %v209
    %2391 = vmatprep.subr.mxu0 %v206
    %2392 = vmatpush1.msra.mxu0 %v205
    %2393 = vmatprep.subr.mxu0 %v202
    %2394 = vmatpush1.msra.mxu0 %v201
    %2395 = vmatprep.subr.mxu0 %v198
    %2396 = vmatpush1.msra.mxu0 %v197
    %2397 = vmatprep.subr.mxu0 0.0
    %2398 = vmatpush2.msra.mxu0 0.0
    %2399 = vmatprep.subr.mxu0 0.0
    %2400 = vmatpush2.msra.mxu0 0.0
    %2401 = vmatprep.subr.mxu0 0.0
    %2402 = vmatpush2.msra.mxu0 0.0
    %2403 = vmatprep.subr.mxu0 0.0
    %2404 = vmatpush2.msra.mxu0 0.0
    %2405 = vmatprep.subr.mxu0 0.0
    %2406 = vmatpush2.msra.mxu0 0.0
    %2407 = vmatprep.subr.mxu0 0.0
    %2408 = vmatpush2.msra.mxu0 0.0
    %2409 = vmatprep.subr.mxu0 0.0
    %2410 = vmatpush2.msra.mxu0 0.0
    %2411 = vmatprep.subr.mxu0 0.0
    %2412 = vmatpush2.msra.mxu0 0.0
    %2413 = vmatprep.subr.mxu0 0.0
    %2414 = vmatpush2.msra.mxu0 0.0
    %2415 = vmatprep.subr.mxu0 0.0
    %2416 = vmatpush2.msra.mxu0 0.0
    %2417 = vmatprep.subr.mxu0 0.0
    %2418 = vmatpush2.msra.mxu0 0.0
    %2419 = vmatprep.subr.mxu0 0.0
    %2420 = vmatpush2.msra.mxu0 0.0
    %2421 = vmatprep.subr.mxu0 0.0
    %2422 = vmatpush2.msra.mxu0 0.0
    %2423 = vmatprep.subr.mxu0 0.0
    %2424 = vmatpush2.msra.mxu0 0.0
    %2425 = vmatprep.subr.mxu0 0.0
    %2426 = vmatpush2.msra.mxu0 0.0
    %2427 = vmatprep.subr.mxu0 0.0
    %2428 = vmatpush2.msra.mxu0 0.0
    %2429 = vmatprep.mubr.f32.mxu0 0.0
    %2430 = vmatmul.mubr.f32.gmra.mxu0 %v2363
    %v2431 = vpop.f32.mrf.mxu0
    %v2432 = vadd.f32 0.0, %v2431
    %v2433 = vpop.f32.mrf.mxu0
    %v2434 = vadd.f32 0.0, %v2433
    %2435 = vdwg.mxu0
    %v2437 = vsel %vm278, %v2317, 0
    %2439 = vmatprep.subr.mxu0 0.0
    %2440 = vmatpush1.msra.mxu0 0.0
    %2441 = vmatprep.subr.mxu0 0.0
    %2442 = vmatpush1.msra.mxu0 0.0
    %2443 = vmatprep.subr.mxu0 0.0
    %2444 = vmatpush1.msra.mxu0 0.0
    %2445 = vmatprep.subr.mxu0 0.0
    %2446 = vmatpush1.msra.mxu0 0.0
    %2447 = vmatprep.subr.mxu0 0.0
    %2448 = vmatpush1.msra.mxu0 0.0
    %2449 = vmatprep.subr.mxu0 0.0
    %2450 = vmatpush1.msra.mxu0 0.0
    %2451 = vmatprep.subr.mxu0 0.0
    %2452 = vmatpush1.msra.mxu0 0.0
    %2453 = vmatprep.subr.mxu0 0.0
    %2454 = vmatpush1.msra.mxu0 0.0
    %2455 = vmatprep.subr.mxu0 %v242
    %2456 = vmatpush1.msra.mxu0 %v241
    %2457 = vmatprep.subr.mxu0 %v240
    %2458 = vmatpush1.msra.mxu0 %v239
    %2459 = vmatprep.subr.mxu0 %v238
    %2460 = vmatpush1.msra.mxu0 %v237
    %2461 = vmatprep.subr.mxu0 %v236
    %2462 = vmatpush1.msra.mxu0 %v235
    %2463 = vmatprep.subr.mxu0 %v234
    %2464 = vmatpush1.msra.mxu0 %v233
    %2465 = vmatprep.subr.mxu0 %v232
    %2466 = vmatpush1.msra.mxu0 %v231
    %2467 = vmatprep.subr.mxu0 %v230
    %2468 = vmatpush1.msra.mxu0 %v229
    %2469 = vmatprep.subr.mxu0 %v228
    %2470 = vmatpush1.msra.mxu0 %v227
    %2471 = vmatprep.subr.mxu0 0.0
    %2472 = vmatpush2.msra.mxu0 0.0
    %2473 = vmatprep.subr.mxu0 0.0
    %2474 = vmatpush2.msra.mxu0 0.0
    %2475 = vmatprep.subr.mxu0 0.0
    %2476 = vmatpush2.msra.mxu0 0.0
    %2477 = vmatprep.subr.mxu0 0.0
    %2478 = vmatpush2.msra.mxu0 0.0
    %2479 = vmatprep.subr.mxu0 0.0
    %2480 = vmatpush2.msra.mxu0 0.0
    %2481 = vmatprep.subr.mxu0 0.0
    %2482 = vmatpush2.msra.mxu0 0.0
    %2483 = vmatprep.subr.mxu0 0.0
    %2484 = vmatpush2.msra.mxu0 0.0
    %2485 = vmatprep.subr.mxu0 0.0
    %2486 = vmatpush2.msra.mxu0 0.0
    %2487 = vmatprep.subr.mxu0 0.0
    %2488 = vmatpush2.msra.mxu0 0.0
    %2489 = vmatprep.subr.mxu0 0.0
    %2490 = vmatpush2.msra.mxu0 0.0
    %2491 = vmatprep.subr.mxu0 0.0
    %2492 = vmatpush2.msra.mxu0 0.0
    %2493 = vmatprep.subr.mxu0 0.0
    %2494 = vmatpush2.msra.mxu0 0.0
    %2495 = vmatprep.subr.mxu0 0.0
    %2496 = vmatpush2.msra.mxu0 0.0
    %2497 = vmatprep.subr.mxu0 0.0
    %2498 = vmatpush2.msra.mxu0 0.0
    %2499 = vmatprep.subr.mxu0 0.0
    %2500 = vmatpush2.msra.mxu0 0.0
    %2501 = vmatprep.subr.mxu0 0.0
    %2502 = vmatpush2.msra.mxu0 0.0
    %2503 = vmatprep.mubr.f32.mxu0 0.0
    %2504 = vmatmul.mubr.f32.gmra.mxu0 %v2437
    %v2505 = vpop.f32.mrf.mxu0
    %v2506 = vadd.f32 0.0, %v2505
    %v2507 = vpop.f32.mrf.mxu0
    %v2508 = vadd.f32 0.0, %v2507
    %2509 = vdwg.mxu0
    %v2510 = vadd.f32 %v2432, %v2506
    %v2511 = vadd.f32 %v2434, %v2508
    %v2512 = vadd.f32 %v2510, %v504
    %v2513 = vadd.f32 %v2511, %v508
    %v2514 = vxor.u32 %v2512, 2147483648
    %v2515 = vxor.u32 %v2513, 2147483648
    %v2516 = vmul.f32 %v2514, 1.442695
    %v2517 = vpow.pop %v2516
    %v2518 = vmul.f32 %v2515, 1.442695
    %v2519 = vpow.pop %v2518
    %v2520 = vadd.f32 %v2517, 1.0
    %v2521 = vadd.f32 %v2519, 1.0
    %v2522 = vrcp.pop %v2520
    %v2523 = vmul.f32 1.0, %v2522
    %v2524 = vrcp.pop %v2521
    %v2525 = vmul.f32 1.0, %v2524
    %v2526 = vtanh.pop %v2513
    %v2527 = vmul.f32 %v2523, %v2311
    %2529 = vrot.lane.b32.xlu0 %v2526, 64
    %v2530 = vpop.permute.xlu0 %2529
    %v2532 = vmul.f32 %v2523, %v2530
    %2534 = vrot.lane.b32.xlu0 %v2532, 64
    %v2535 = vpop.permute.xlu0 %2534
    %v2537 = vadd.f32 %v2527, %v2535
    %v2538 = vtanh.pop %v2537
    %2540 = vrot.lane.b32.xlu0 %v2538, 64
    %v2541 = vpop.permute.xlu0 %2540
    %v2543 = vmul.f32 %v2525, %v2541
    %v2544 = vld [vmem:[%s8] sm:$0xff]
    %v2545 = vld [vmem:[%s8 + $0x8] sm:$0xff]
    %v2546 = vld [vmem:[%s8 + $0x10] sm:$0xff]
    %v2547 = vld [vmem:[%s8 + $0x18] sm:$0xff]
    %v2548 = vld [vmem:[%s8 + $0x20] sm:$0xff]
    %v2549 = vld [vmem:[%s8 + $0x28] sm:$0xff]
    %v2550 = vld [vmem:[%s8 + $0x30] sm:$0xff]
    %v2551 = vld [vmem:[%s8 + $0x38] sm:$0xff]
    %v2552 = vld [vmem:[%s1] sm:$0x3]
    %v2553 = vld [vmem:[%s9] sm:$0x1]
    %2555 = vset.pattern.permute.xlu0 0
    %2556 = vperm.xlu0 %2555, %v2552
    %v2557 = vpop.permute.xlu0 %2556
    %v2560 = vlaneseq
    %v2561 = vshrl.u32 %v2560, 7
    %v2562 = vsub.s32 0, %v2561
    %v2563 = vrot.slane %v2553, %v2562
    %v2565 = vmul.f32 %v2557, %v2563
    %v2567 = vsel %vm278, %v2543, 0
    %2569 = vmatprep.subr.mxu0 0.0
    %2570 = vmatpush1.msra.mxu0 0.0
    %2571 = vmatprep.subr.mxu0 0.0
    %2572 = vmatpush1.msra.mxu0 0.0
    %2573 = vmatprep.subr.mxu0 0.0
    %2574 = vmatpush1.msra.mxu0 0.0
    %2575 = vmatprep.subr.mxu0 0.0
    %2576 = vmatpush1.msra.mxu0 0.0
    %2577 = vmatprep.subr.mxu0 0.0
    %2578 = vmatpush1.msra.mxu0 0.0
    %2579 = vmatprep.subr.mxu0 0.0
    %2580 = vmatpush1.msra.mxu0 0.0
    %2581 = vmatprep.subr.mxu0 0.0
    %2582 = vmatpush1.msra.mxu0 0.0
    %2583 = vmatprep.subr.mxu0 0.0
    %2584 = vmatpush1.msra.mxu0 0.0
    %2585 = vmatprep.subr.mxu0 0.0
    %2586 = vmatpush1.msra.mxu0 %v2551
    %2587 = vmatprep.subr.mxu0 0.0
    %2588 = vmatpush1.msra.mxu0 %v2550
    %2589 = vmatprep.subr.mxu0 0.0
    %2590 = vmatpush1.msra.mxu0 %v2549
    %2591 = vmatprep.subr.mxu0 0.0
    %2592 = vmatpush1.msra.mxu0 %v2548
    %2593 = vmatprep.subr.mxu0 0.0
    %2594 = vmatpush1.msra.mxu0 %v2547
    %2595 = vmatprep.subr.mxu0 0.0
    %2596 = vmatpush1.msra.mxu0 %v2546
    %2597 = vmatprep.subr.mxu0 0.0
    %2598 = vmatpush1.msra.mxu0 %v2545
    %2599 = vmatprep.subr.mxu0 0.0
    %2600 = vmatpush1.msra.mxu0 %v2544
    %2601 = vmatprep.subr.mxu0 0.0
    %2602 = vmatpush2.msra.mxu0 0.0
    %2603 = vmatprep.subr.mxu0 0.0
    %2604 = vmatpush2.msra.mxu0 0.0
    %2605 = vmatprep.subr.mxu0 0.0
    %2606 = vmatpush2.msra.mxu0 0.0
    %2607 = vmatprep.subr.mxu0 0.0
    %2608 = vmatpush2.msra.mxu0 0.0
    %2609 = vmatprep.subr.mxu0 0.0
    %2610 = vmatpush2.msra.mxu0 0.0
    %2611 = vmatprep.subr.mxu0 0.0
    %2612 = vmatpush2.msra.mxu0 0.0
    %2613 = vmatprep.subr.mxu0 0.0
    %2614 = vmatpush2.msra.mxu0 0.0
    %2615 = vmatprep.subr.mxu0 0.0
    %2616 = vmatpush2.msra.mxu0 0.0
    %2617 = vmatprep.subr.mxu0 0.0
    %2618 = vmatpush2.msra.mxu0 0.0
    %2619 = vmatprep.subr.mxu0 0.0
    %2620 = vmatpush2.msra.mxu0 0.0
    %2621 = vmatprep.subr.mxu0 0.0
    %2622 = vmatpush2.msra.mxu0 0.0
    %2623 = vmatprep.subr.mxu0 0.0
    %2624 = vmatpush2.msra.mxu0 0.0
    %2625 = vmatprep.subr.mxu0 0.0
    %2626 = vmatpush2.msra.mxu0 0.0
    %2627 = vmatprep.subr.mxu0 0.0
    %2628 = vmatpush2.msra.mxu0 0.0
    %2629 = vmatprep.subr.mxu0 0.0
    %2630 = vmatpush2.msra.mxu0 0.0
    %2631 = vmatprep.subr.mxu0 0.0
    %2632 = vmatpush2.msra.mxu0 0.0
    %2633 = vmatprep.mubr.f32.mxu0 0.0
    %2634 = vmatmul.mubr.f32.gmra.mxu0 %v2567
    %v2635 = vpop.f32.mrf.mxu0
    %v2636 = vadd.f32 %v2565, %v2635
    %v2637 = vpop.f32.mrf.mxu0
    %2638 = vdwg.mxu0
    %v2639 = vld [vmem:[%s2] sm:$0x3]
    %v2640 = vld [vmem:[%s10] sm:$0x1]
    %2642 = vset.pattern.permute.xlu0 0
    %2643 = vperm.xlu0 %2642, %v2639
    %v2644 = vpop.permute.xlu0 %2643
    %v2647 = vlaneseq
    %v2648 = vshrl.u32 %v2647, 7
    %v2649 = vsub.s32 0, %v2648
    %v2650 = vrot.slane %v2640, %v2649
    %v2652 = vmul.f32 %v2644, %v2650
    %v2653 = vadd.f32 %v2636, %v2652
    %v2654 = vld [vmem:[%s11] sm:$0x1]
    %v2656 = vlaneseq
    %v2657 = vshrl.u32 %v2656, 7
    %v2658 = vsub.s32 0, %v2657
    %v2659 = vrot.slane %v2654, %v2658
    %v2661 = vadd.f32 %v2653, %v2659
    %v2662 = vmax.f32 %v2661, 0.0
    %v2663 = vld [vmem:[%s12] sm:$0xff]
    %v2664 = vld [vmem:[%s12 + $0x8] sm:$0xff]
    %v2665 = vld [vmem:[%s12 + $0x10] sm:$0xff]
    %v2666 = vld [vmem:[%s12 + $0x18] sm:$0xff]
    %v2667 = vld [vmem:[%s13] sm:$0x1]
    %v2669 = vlaneseq
    %v2670 = vshrl.u32 %v2669, 7
    %v2671 = vsub.s32 0, %v2670
    %v2672 = vrot.slane %v2667, %v2671
    %vm2674 = vcmask 261120
    %v2676 = vsel %vm2674, %v2662, 0
    %2678 = vmatprep.subr.mxu0 0.0
    %2679 = vmatpush1.msra.mxu0 0.0
    %2680 = vmatprep.subr.mxu0 0.0
    %2681 = vmatpush1.msra.mxu0 0.0
    %2682 = vmatprep.subr.mxu0 0.0
    %2683 = vmatpush1.msra.mxu0 0.0
    %2684 = vmatprep.subr.mxu0 0.0
    %2685 = vmatpush1.msra.mxu0 0.0
    %2686 = vmatprep.subr.mxu0 0.0
    %2687 = vmatpush1.msra.mxu0 0.0
    %2688 = vmatprep.subr.mxu0 0.0
    %2689 = vmatpush1.msra.mxu0 0.0
    %2690 = vmatprep.subr.mxu0 0.0
    %2691 = vmatpush1.msra.mxu0 0.0
    %2692 = vmatprep.subr.mxu0 0.0
    %2693 = vmatpush1.msra.mxu0 0.0
    %2694 = vmatprep.subr.mxu0 0.0
    %2695 = vmatpush1.msra.mxu0 0.0
    %2696 = vmatprep.subr.mxu0 0.0
    %2697 = vmatpush1.msra.mxu0 0.0
    %2698 = vmatprep.subr.mxu0 0.0
    %2699 = vmatpush1.msra.mxu0 0.0
    %2700 = vmatprep.subr.mxu0 0.0
    %2701 = vmatpush1.msra.mxu0 0.0
    %2702 = vmatprep.subr.mxu0 0.0
    %2703 = vmatpush1.msra.mxu0 %v2666
    %2704 = vmatprep.subr.mxu0 0.0
    %2705 = vmatpush1.msra.mxu0 %v2665
    %2706 = vmatprep.subr.mxu0 0.0
    %2707 = vmatpush1.msra.mxu0 %v2664
    %2708 = vmatprep.subr.mxu0 0.0
    %2709 = vmatpush1.msra.mxu0 %v2663
    %2710 = vmatprep.subr.mxu0 0.0
    %2711 = vmatpush2.msra.mxu0 0.0
    %2712 = vmatprep.subr.mxu0 0.0
    %2713 = vmatpush2.msra.mxu0 0.0
    %2714 = vmatprep.subr.mxu0 0.0
    %2715 = vmatpush2.msra.mxu0 0.0
    %2716 = vmatprep.subr.mxu0 0.0
    %2717 = vmatpush2.msra.mxu0 0.0
    %2718 = vmatprep.subr.mxu0 0.0
    %2719 = vmatpush2.msra.mxu0 0.0
    %2720 = vmatprep.subr.mxu0 0.0
    %2721 = vmatpush2.msra.mxu0 0.0
    %2722 = vmatprep.subr.mxu0 0.0
    %2723 = vmatpush2.msra.mxu0 0.0
    %2724 = vmatprep.subr.mxu0 0.0
    %2725 = vmatpush2.msra.mxu0 0.0
    %2726 = vmatprep.subr.mxu0 0.0
    %2727 = vmatpush2.msra.mxu0 0.0
    %2728 = vmatprep.subr.mxu0 0.0
    %2729 = vmatpush2.msra.mxu0 0.0
    %2730 = vmatprep.subr.mxu0 0.0
    %2731 = vmatpush2.msra.mxu0 0.0
    %2732 = vmatprep.subr.mxu0 0.0
    %2733 = vmatpush2.msra.mxu0 0.0
    %2734 = vmatprep.subr.mxu0 0.0
    %2735 = vmatpush2.msra.mxu0 0.0
    %2736 = vmatprep.subr.mxu0 0.0
    %2737 = vmatpush2.msra.mxu0 0.0
    %2738 = vmatprep.subr.mxu0 0.0
    %2739 = vmatpush2.msra.mxu0 0.0
    %2740 = vmatprep.subr.mxu0 0.0
    %2741 = vmatpush2.msra.mxu0 0.0
    %2742 = vmatprep.mubr.f32.mxu0 0.0
    %2743 = vmatmul.mubr.f32.gmra.mxu0 %v2676
    %v2744 = vpop.f32.mrf.mxu0
    %v2745 = vadd.f32 %v2672, %v2744
    %v2746 = vpop.f32.mrf.mxu0
    %2747 = vdwg.mxu0
    %vm2748 = vcmask 17408
    %2749 = vst.msk [vmem:[#allocation9] sm:$0x3] %vm2748, %v2745
    // Predicated region
    $region70: #{tpu_custom_call.1} parent=1 // pred_check
      _
    $region71: #{tpu_custom_call.1} parent=1 // pred_check_branch
      %2751 = sbr.rel (0) target = $region73
    $region72: #{tpu_custom_call.1} parent=1 // pred_region
      %s2753 = ssub.s32 32, 32
      %2754 = vsyncadd [#allocation5], %s2753
      %s2756 = sshll.u32 [#allocation9], 4
      %s2757 = int_to_ptr.vmem [resolvable:$true] %s2756
      %2759 = dma.vmem_to_hbm [thread:$0]  %s2757, 32, %s14, [#allocation5]
    $region73: #{tpu_custom_call.1} parent=1 // pred_fallthru
      _
    // Predicated region
    $region74: #{tpu_custom_call.1} parent=1 // pred_check
      _
    $region75: #{tpu_custom_call.1} parent=1 // pred_check_branch
      %2761 = sbr.rel (0) target = $region77
    $region76: #{tpu_custom_call.1} parent=1 // pred_region
      %2762 = dma.done [#allocation5], 32
    $region77: #{tpu_custom_call.1} parent=1 // pred_fallthru
      _
    %2763 = vsyncpa [#allocation4], 1
    %2764 = vsyncpa [#allocation7], 1
    %2765 = vsyncpa [#allocation5], 1

</llo_original>
